<compile_context>
chip_gen: v7x
topology: tpu7x:2x2x1
jax: 0.10.0
libtpu: 0.0.40
codegen_flags: <defaults>
</compile_context>

<pallas_src>
import jax
import jax.numpy as jnp
from jax.experimental import pallas as pl
from jax.experimental.pallas import tpu as pltpu


# ---------------------------------------------------------------------------
# Kernel 1: fc1  --  h1 = relu(x @ W1 + b1)
#   grid = (N // tn, K // tk): parallel N axis (outer), K reduction (inner).
#   Output block index is constant across k -> resident accumulator.
# ---------------------------------------------------------------------------
def _fc1_kernel(x_ref, w_ref, b_ref, o_ref):
    k = pl.program_id(1)

    @pl.when(k == 0)
    def _():
        # Initialize the resident accumulator with the bias.
        o_ref[...] = jnp.broadcast_to(b_ref[...], o_ref.shape)

    o_ref[...] += jnp.dot(
        x_ref[...], w_ref[...], preferred_element_type=jnp.float32
    )

    @pl.when(k == pl.num_programs(1) - 1)
    def _():
        o_ref[...] = jnp.maximum(o_ref[...], 0.0)


def fc1_pallas(x_bf16, w_bf16, b_f32, *, tk=3584, tn=512):
    """x: (M, K) bf16, w: (K, N) bf16, b: (1, N) f32 -> relu(x@w+b) (M, N) f32."""
    M, K = x_bf16.shape
    K2, N = w_bf16.shape
    assert K == K2 and K % tk == 0 and N % tn == 0
    grid = (N // tn, K // tk)

    return pl.pallas_call(
        _fc1_kernel,
        out_shape=jax.ShapeDtypeStruct((M, N), jnp.float32),
        grid_spec=pltpu.PrefetchScalarGridSpec(
            num_scalar_prefetch=0,
            grid=grid,
            in_specs=[
                pl.BlockSpec((M, tk), lambda j, k: (0, k)),   # x slab along K
                pl.BlockSpec((tk, tn), lambda j, k: (k, j)),  # streamed bf16 weight
                pl.BlockSpec((1, tn), lambda j, k: (0, j)),   # bias slice
            ],
            out_specs=pl.BlockSpec((M, tn), lambda j, k: (0, j)),
        ),
        compiler_params=pltpu.CompilerParams(
            dimension_semantics=("parallel", "arbitrary"),
            vmem_limit_bytes=48 * 1024 * 1024,
        ),
    )(x_bf16, w_bf16, b_f32)


# ---------------------------------------------------------------------------
# Kernel 2: fused fc2 + ReLU + fc3 + log_softmax(dim=1)
#   Everything is tiny (<= ~2.2 MiB of weights, KB-scale activations):
#   keep all operands fully resident in a single grid step.
# ---------------------------------------------------------------------------
def _fc2_fc3_logsoftmax_kernel(h_ref, w2_ref, b2_ref, w3_ref, b3_ref, o_ref):
    h2 = jnp.dot(h_ref[...], w2_ref[...], preferred_element_type=jnp.float32)
    h2 = jnp.maximum(h2 + b2_ref[...], 0.0)

    logits = jnp.dot(h2, w3_ref[...], preferred_element_type=jnp.float32)
    logits = logits + b3_ref[...]

    m = jnp.max(logits, axis=-1, keepdims=True)
    shifted = logits - m
    lse = jnp.log(jnp.sum(jnp.exp(shifted), axis=-1, keepdims=True))
    o_ref[...] = (shifted - lse).astype(o_ref.dtype)


def fc2_fc3_pallas(h1, w2, b2, w3, b3):
    """h1: (M, 1024) f32 -> log_softmax(relu(h1@w2+b2) @ w3 + b3) (M, 102) f32."""
    M, K = h1.shape
    K2, H = w2.shape
    H2, N = w3.shape
    assert K == K2 and H == H2

    return pl.pallas_call(
        _fc2_fc3_logsoftmax_kernel,
        out_shape=jax.ShapeDtypeStruct((M, N), jnp.float32),
        grid_spec=pltpu.PrefetchScalarGridSpec(
            num_scalar_prefetch=0,
            grid=(1,),
            in_specs=[
                pl.BlockSpec((M, K), lambda i: (0, 0)),
                pl.BlockSpec((K, H), lambda i: (0, 0)),
                pl.BlockSpec((1, H), lambda i: (0, 0)),
                pl.BlockSpec((H, N), lambda i: (0, 0)),
                pl.BlockSpec((1, N), lambda i: (0, 0)),
            ],
            out_specs=pl.BlockSpec((M, N), lambda i: (0, 0)),
        ),
        compiler_params=pltpu.CompilerParams(
            dimension_semantics=("arbitrary",),
        ),
    )(h1, w2, b2, w3, b3)


# ---------------------------------------------------------------------------
# Full classifier forward
# ---------------------------------------------------------------------------
def classifier_forward(x, params):
    B = x.shape[0]
    # x.view(B, -1); stream the fc1 matmul in bf16 (f32 accumulation).
    xf = x.reshape(B, -1).astype(jnp.bfloat16)

    # fc1 (25088 -> 1024) + ReLU    (dropout = identity, eval mode)
    h1 = fc1_pallas(xf, params["w1"], params["b1"], tk=3584, tn=512)

    # fc2 (1024 -> hidden) + ReLU, fc3 (hidden -> 102) + log_softmax, fused.
    return fc2_fc3_pallas(
        h1, params["w2"], params["b2"], params["w3"], params["b3"]
    )


def init_params(key, hidden_layer_size):
    """Deterministic init mimicking nn.Linear's U(-1/sqrt(fan_in), 1/sqrt(fan_in)).

    w1 is stored in bfloat16 (fc1 is HBM-bandwidth bound); all other params f32.
    """
    def make(key, fan_in, fan_out):
        kw, kb = jax.random.split(key)
        bound = 1.0 / (fan_in ** 0.5)
        w = jax.random.uniform(kw, (fan_in, fan_out), jnp.float32, -bound, bound)
        b = jax.random.uniform(kb, (1, fan_out), jnp.float32, -bound, bound)
        return w, b

    k1, k2, k3 = jax.random.split(key, 3)
    w1, b1 = make(k1, 25088, 1024)
    w2, b2 = make(k2, 1024, hidden_layer_size)
    w3, b3 = make(k3, hidden_layer_size, 102)
    return {
        "w1": w1.astype(jnp.bfloat16), "b1": b1,
        "w2": w2, "b2": b2,
        "w3": w3, "b3": b3,
    }


if __name__ == "__main__":
    key = jax.random.PRNGKey(0)
    k_params, k_x = jax.random.split(key)

    hidden_layer_size = 512
    params = init_params(k_params, hidden_layer_size)

    # Input consistent with fc1's 25088 = 512*7*7 (e.g. VGG feature map), batch=2.
    x = jax.random.normal(k_x, (2, 512, 7, 7), dtype=jnp.float32)

    out = classifier_forward(x, params)
    out = jax.block_until_ready(out)

    # Sanity check vs. a pure-JAX reference that mirrors the bf16 fc1 stream.
    xf = x.reshape(2, -1)
    h1 = jnp.maximum(
        jnp.dot(xf.astype(jnp.bfloat16), params["w1"],
                preferred_element_type=jnp.float32) + params["b1"],
        0.0,
    )
    h2 = jnp.maximum(
        jnp.dot(h1, params["w2"], precision=jax.lax.Precision.HIGHEST)
        + params["b2"],
        0.0,
    )
    logits = (
        jnp.dot(h2, params["w3"], precision=jax.lax.Precision.HIGHEST)
        + params["b3"]
    )
    ref = jax.nn.log_softmax(logits, axis=1)

    assert out.shape == (2, 102), out.shape
    assert jnp.allclose(out, ref, atol=5e-3, rtol=5e-3), float(
        jnp.max(jnp.abs(out - ref))
    )

    print("KERNEL_OK")
</pallas_src>

<mosaic_0001>
module attributes {stable_mosaic.version = 11 : i64} {
  func.func @_fc1_kernel(%arg0: i32, %arg1: i32, %arg2: memref<2x3584xbf16, #tpu.memory_space<vmem>>, %arg3: memref<3584x512xbf16, #tpu.memory_space<vmem>>, %arg4: memref<1x512xf32, #tpu.memory_space<vmem>>, %arg5: memref<2x512xf32, #tpu.memory_space<vmem>>) attributes {dimension_semantics = [#tpu.dimension_semantics<parallel>, #tpu.dimension_semantics<arbitrary>], iteration_bounds = array<i64: 2, 7>, scalar_prefetch = 0 : i64, scratch_operands = 0 : i64, tpu.core_type = #tpu.core_type<tc>, window_params = [{transform_indices = @transform_0, window_bounds = array<i64: 2, 3584>}, {transform_indices = @transform_1, window_bounds = array<i64: 3584, 512>}, {transform_indices = @transform_2, window_bounds = array<i64: 1, 512>}, {transform_indices = @transform_3, window_bounds = array<i64: 2, 512>}]} {
    %c0_i32 = arith.constant 0 : i32
    %0 = arith.cmpi eq, %arg1, %c0_i32 : i32
    %1 = arith.extui %0 : i1 to i32
    %c0_i32_0 = arith.constant 0 : i32
    %2 = arith.cmpi ne, %1, %c0_i32_0 : i32
    scf.if %2 {
      %c0_9 = arith.constant 0 : index
      %c0_10 = arith.constant 0 : index
      %12 = vector.load %arg4[%c0_9, %c0_10] : memref<1x512xf32, #tpu.memory_space<vmem>>, vector<1x512xf32>
      %13 = vector.shape_cast %12 : vector<1x512xf32> to vector<1x512xf32>
      %14 = vector.broadcast %13 : vector<1x512xf32> to vector<2x512xf32>
      %c0_11 = arith.constant 0 : index
      %c0_12 = arith.constant 0 : index
      %15 = vector.load %arg5[%c0_11, %c0_12] : memref<2x512xf32, #tpu.memory_space<vmem>>, vector<2x512xf32>
      tpu.vector_store %arg5[%c0_11, %c0_12], %14 {strides = array<i32>} : memref<2x512xf32, #tpu.memory_space<vmem>>, vector<2x512xf32>,
    } else {
    }
    %c0 = arith.constant 0 : index
    %c0_1 = arith.constant 0 : index
    %3 = vector.load %arg5[%c0, %c0_1] : memref<2x512xf32, #tpu.memory_space<vmem>>, vector<2x512xf32>
    %c0_2 = arith.constant 0 : index
    %c0_3 = arith.constant 0 : index
    %4 = vector.load %arg2[%c0_2, %c0_3] : memref<2x3584xbf16, #tpu.memory_space<vmem>>, vector<2x3584xbf16>
    %c0_4 = arith.constant 0 : index
    %c0_5 = arith.constant 0 : index
    %5 = vector.load %arg3[%c0_4, %c0_5] : memref<3584x512xbf16, #tpu.memory_space<vmem>>, vector<3584x512xbf16>
    %cst = arith.constant dense<0.000000e+00> : vector<2x512xf32>
    %6 = tpu.matmul %4, %5, %cst {dimension_numbers = #tpu.dot_dimension_numbers<[1], [0], [0], [1], [0, 0, 1, 1], [], []>} : vector<2x3584xbf16>, vector<3584x512xbf16>, vector<2x512xf32> -> vector<2x512xf32>
    %7 = arith.addf %3, %6 : vector<2x512xf32>
    %c0_6 = arith.constant 0 : index
    %c0_7 = arith.constant 0 : index
    %8 = vector.load %arg5[%c0_6, %c0_7] : memref<2x512xf32, #tpu.memory_space<vmem>>, vector<2x512xf32>
    tpu.vector_store %arg5[%c0_6, %c0_7], %7 {strides = array<i32>} : memref<2x512xf32, #tpu.memory_space<vmem>>, vector<2x512xf32>,
    %c6_i32 = arith.constant 6 : i32
    %9 = arith.cmpi eq, %arg1, %c6_i32 : i32
    %10 = arith.extui %9 : i1 to i32
    %c0_i32_8 = arith.constant 0 : i32
    %11 = arith.cmpi ne, %10, %c0_i32_8 : i32
    scf.if %11 {
      %c0_9 = arith.constant 0 : index
      %c0_10 = arith.constant 0 : index
      %12 = vector.load %arg5[%c0_9, %c0_10] : memref<2x512xf32, #tpu.memory_space<vmem>>, vector<2x512xf32>
      %cst_11 = arith.constant 0.000000e+00 : f32
      %13 = vector.broadcast %cst_11 : f32 to vector<2x512xf32>
      %14 = arith.maximumf %12, %13 : vector<2x512xf32>
      %c0_12 = arith.constant 0 : index
      %c0_13 = arith.constant 0 : index
      %15 = vector.load %arg5[%c0_12, %c0_13] : memref<2x512xf32, #tpu.memory_space<vmem>>, vector<2x512xf32>
      tpu.vector_store %arg5[%c0_12, %c0_13], %14 {strides = array<i32>} : memref<2x512xf32, #tpu.memory_space<vmem>>, vector<2x512xf32>,
    } else {
    }
    return
  }
  func.func @transform_0(%arg0: i32, %arg1: i32) -> (i32, i32) {
    %c0_i32 = arith.constant 0 : i32
    %c0_i32_0 = arith.constant 0 : i32
    return %c0_i32, %arg1 : i32, i32
  }
  func.func @transform_1(%arg0: i32, %arg1: i32) -> (i32, i32) {
    %c0_i32 = arith.constant 0 : i32
    return %arg1, %arg0 : i32, i32
  }
  func.func @transform_2(%arg0: i32, %arg1: i32) -> (i32, i32) {
    %c0_i32 = arith.constant 0 : i32
    %c0_i32_0 = arith.constant 0 : i32
    return %c0_i32, %arg0 : i32, i32
  }
  func.func @transform_3(%arg0: i32, %arg1: i32) -> (i32, i32) {
    %c0_i32 = arith.constant 0 : i32
    %c0_i32_0 = arith.constant 0 : i32
    return %c0_i32, %arg0 : i32, i32
  }
}

</mosaic_0001>

<llo_original>
// kernel: tpu_custom_call.1
$region0: #{tpu_custom_call.1}
  #allocation0 [shape = 'u32[]', space=smem, size = 0x4, offset = 0x4, fixed_abs, tag = 'smem constant byte address 0x4 - core index']
  #allocation1 [shape = 'u32[144,128]{1,0:T(1,128)}', space=vmem, size = 0x12000, scoped, tag = 'internal scratch']
  %s0 = inlined_call_operand.hbm [shape: bf16[2,25088], index: 0, kind: input, shape index: {}]
  %s1 = inlined_call_operand.hbm [shape: bf16[25088,1024], index: 1, kind: input, shape index: {}]
  %s2 = inlined_call_operand.hbm [shape: f32[1,1024], index: 2, kind: input, shape index: {}]
  %s3 = inlined_call_operand.hbm [shape: f32[2,1024], index: 3, kind: output, shape index: {}]
  %s4 = sld [smem:[#allocation0]]
  $region65: #{tpu_custom_call.1} parent=0
    _
  %s6 = ssub.s32 1, %s4
  %s7 = scalar_select 0, %s6, %s4
  $region1: #{tpu_custom_call.1} parent=0
    #allocation2 [shape = 'u8[28672]{0}', space=vmem, size = 0x7000, scoped, tag = 'input window, operand 0']
    #allocation3 [shape = 's32[2]{0}', space=sflag, size = 0x8, scoped, tag = 'scoped memory for tpu_custom_call.1']
    #allocation4 [shape = 's32[2]{0}', space=sflag, size = 0x8, scoped, tag = 'scoped memory for tpu_custom_call.1']
    #allocation5 [shape = 'u8[7340032]{0}', space=vmem, size = 0x700000, scoped, tag = 'input window, operand 1']
    #allocation6 [shape = 's32[2]{0}', space=sflag, size = 0x8, scoped, tag = 'scoped memory for tpu_custom_call.1']
    #allocation7 [shape = 'u8[4096]{0}', space=vmem, size = 0x1000, scoped, tag = 'input window, operand 2']
    #allocation8 [shape = 'u8[8192]{0}', space=vmem, size = 0x2000, scoped, tag = 'output window, operand 0']
    %8 = vsyncpa [#allocation3], 0
    %s9 = scalar_lea.sflag [#allocation3], 1
    %10 = vsyncpa %s9, 0
    %11 = vsyncpa [#allocation6], 0
    %s12 = scalar_lea.sflag [#allocation6], 1
    %13 = vsyncpa %s12, 0
    %14 = vsyncpa [#allocation4], 0
    %s15 = scalar_lea.sflag [#allocation4], 1
    %16 = vsyncpa %s15, 0
    loop: start=0, step=1, limit=16
    $region2: #{tpu_custom_call.1} parent=1 // loop_pre_header
      _
    $region3: #{tpu_custom_call.1} parent=1 // loop_header
      %s18 = sphi 0, %s22
      %p19 = scmp.ge.s32.totalorder %s18, 16
      %s25 = sphi 0, %s37
      %s26 = sphi 0, %s33
      %s27 = sphi 0, %s25
      %s28 = sphi 0, %s26
      %s29 = sphi 0, %s27
      %s30 = sphi 0, %s28
      %s40 = sphi 0, %s42
      %s43 = sphi 0, %s40
      %s44 = sphi 0, %s43
      %s60 = sphi 0, %s44
      %s68 = sphi 0, %s70
      %s71 = sphi 0, %s68
      %s72 = sphi 0, %s71
      %s88 = sphi 0, %s72
      %s94 = sphi 0, %s96
      %s97 = sphi 0, %s94
      %s98 = sphi 0, %s97
      %s114 = sphi 0, %s98
      %s120 = sphi 0, %s122
      %s123 = sphi 0, %s120
      %s124 = sphi 0, %s123
      %s140 = sphi 0, %s124
    $region4: #{tpu_custom_call.1} parent=1 // loop_header_branch
      %21 = sbr.rel (%p19) target = $region8
    $region5: #{tpu_custom_call.1} parent=1 // loop_body
      %s23 = ssub.s32 %s18, 1
      %s24 = ssub.s32 %s18, 2
      %s31 = sadd.s32 1, %s26
      %p32 = scmp.ge.s32.totalorder %s31, 7
      %s33 = scalar_select %p32, 0, %s31
      %s34 = sadd.s32 1, %s25
      %s35 = scalar_select %p32, %s34, %s25
      %p36 = scmp.ge.s32.totalorder %s35, 2
      %s37 = scalar_select %p36, 0, %s35
      %s38 = ssub.s32 %s26, %s33
      %p39 = scmp.eq.s32.totalorder %s38, 0
      %s41 = sadd.s32 %s40, 1
      %s42 = scalar_select %p39, %s40, %s41
      %p45 = pneg %p39
      %p46 = scmp.eq.s32.totalorder %s18, 13
      %p47 = por %p45, %p46
      %p48 = scmp.ne.s32.totalorder %s40, %s43
      %p49 = scmp.eq.s32.totalorder %s18, 0
      %p50 = por %p48, %p49
      %p51 = scmp.ne.s32.totalorder %s40, %s43
      %p52 = scmp.eq.s32.totalorder %s23, 13
      %p53 = por %p51, %p52
      %p54 = scmp.ne.s32.totalorder %s43, %s44
      %p55 = scmp.eq.s32.totalorder %s23, 0
      %p56 = por %p54, %p55
      %p57 = scmp.ne.s32.totalorder %s43, %s44
      %p58 = scmp.eq.s32.totalorder %s24, 13
      %p59 = por %p57, %p58
      %p61 = scmp.ne.s32.totalorder %s44, %s60
      %p62 = scmp.eq.s32.totalorder %s24, 0
      %p63 = por %p61, %p62
      %s64 = ssub.s32 %s26, %s33
      %s65 = ssub.s32 %s25, %s37
      %s66 = sor.u32 %s64, %s65
      %p67 = scmp.eq.s32.totalorder %s66, 0
      %s69 = sadd.s32 %s68, 1
      %s70 = scalar_select %p67, %s68, %s69
      %p73 = pneg %p67
      %p74 = scmp.eq.s32.totalorder %s18, 13
      %p75 = por %p73, %p74
      %p76 = scmp.ne.s32.totalorder %s68, %s71
      %p77 = scmp.eq.s32.totalorder %s18, 0
      %p78 = por %p76, %p77
      %p79 = scmp.ne.s32.totalorder %s68, %s71
      %p80 = scmp.eq.s32.totalorder %s23, 13
      %p81 = por %p79, %p80
      %p82 = scmp.ne.s32.totalorder %s71, %s72
      %p83 = scmp.eq.s32.totalorder %s23, 0
      %p84 = por %p82, %p83
      %p85 = scmp.ne.s32.totalorder %s71, %s72
      %p86 = scmp.eq.s32.totalorder %s24, 13
      %p87 = por %p85, %p86
      %p89 = scmp.ne.s32.totalorder %s72, %s88
      %p90 = scmp.eq.s32.totalorder %s24, 0
      %p91 = por %p89, %p90
      %s92 = ssub.s32 %s25, %s37
      %p93 = scmp.eq.s32.totalorder %s92, 0
      %s95 = sadd.s32 %s94, 1
      %s96 = scalar_select %p93, %s94, %s95
      %p99 = pneg %p93
      %p100 = scmp.eq.s32.totalorder %s18, 13
      %p101 = por %p99, %p100
      %p102 = scmp.ne.s32.totalorder %s94, %s97
      %p103 = scmp.eq.s32.totalorder %s18, 0
      %p104 = por %p102, %p103
      %p105 = scmp.ne.s32.totalorder %s94, %s97
      %p106 = scmp.eq.s32.totalorder %s23, 13
      %p107 = por %p105, %p106
      %p108 = scmp.ne.s32.totalorder %s97, %s98
      %p109 = scmp.eq.s32.totalorder %s23, 0
      %p110 = por %p108, %p109
      %p111 = scmp.ne.s32.totalorder %s97, %s98
      %p112 = scmp.eq.s32.totalorder %s24, 13
      %p113 = por %p111, %p112
      %p115 = scmp.ne.s32.totalorder %s98, %s114
      %p116 = scmp.eq.s32.totalorder %s24, 0
      %p117 = por %p115, %p116
      %s118 = ssub.s32 %s25, %s37
      %p119 = scmp.eq.s32.totalorder %s118, 0
      %s121 = sadd.s32 %s120, 1
      %s122 = scalar_select %p119, %s120, %s121
      %p125 = pneg %p119
      %p126 = scmp.eq.s32.totalorder %s18, 13
      %p127 = por %p125, %p126
      %p128 = scmp.ne.s32.totalorder %s120, %s123
      %p129 = scmp.eq.s32.totalorder %s18, 0
      %p130 = por %p128, %p129
      %p131 = scmp.ne.s32.totalorder %s120, %s123
      %p132 = scmp.eq.s32.totalorder %s23, 13
      %p133 = por %p131, %p132
      %p134 = scmp.ne.s32.totalorder %s123, %s124
      %p135 = scmp.eq.s32.totalorder %s23, 0
      %p136 = por %p134, %p135
      %p137 = scmp.ne.s32.totalorder %s123, %s124
      %p138 = scmp.eq.s32.totalorder %s24, 13
      %p139 = por %p137, %p138
      %p141 = scmp.ne.s32.totalorder %s124, %s140
      %p142 = scmp.eq.s32.totalorder %s24, 0
      %p143 = por %p141, %p142
      %p144 = scmp.le.s32.totalorder 1, %s18
      %p145 = scmp.lt.s32.totalorder %s18, 15
      %p146 = pnand %p144, %p145
      %p147 = pneg %p146
      // Predicated region
      $region9: #{tpu_custom_call.1} parent=5 // pred_check
        _
      $region10: #{tpu_custom_call.1} parent=5 // pred_check_branch
        %149 = sbr.rel (%p146) target = $region12
      $region11: #{tpu_custom_call.1} parent=5 // pred_region
        %s150 = ssub.s32 %s18, 1
      $region12: #{tpu_custom_call.1} parent=5 // pred_fallthru
        _
      %p151 = scmp.lt.s32.totalorder %s18, 14
      // Predicated region
      $region13: #{tpu_custom_call.1} parent=5 // pred_check
        %p152 = pneg %p151
      $region14: #{tpu_custom_call.1} parent=5 // pred_check_branch
        %154 = sbr.rel (%p152) target = $region16
      $region15: #{tpu_custom_call.1} parent=5 // pred_region
        // Predicated region
        $region17: #{tpu_custom_call.1} parent=15 // pred_check
          %p155 = pneg %p50
        $region18: #{tpu_custom_call.1} parent=15 // pred_check_branch
          %157 = sbr.rel (%p155) target = $region20
        $region19: #{tpu_custom_call.1} parent=15 // pred_region
          %s158 = sand.u32 %s40, 1
          %s159 = scalar_lea.sflag [#allocation3], %s158
          %s160 = sand.u32 %s40, 1
          %s161 = smul.addr %s160, 28
          %s162 = scalar_lea.vmem [#allocation2], %s161
          %s163 = smul.u32 28, %s26
          %s165 = ssub.s32 448, 448
          %166 = vsyncadd %s159, %s165
          %s167 = smul.addr %s163, 16
          %s168 = scalar_lea.hbm %s0, %s167
          %s170 = sshll.u32 %s162, 4
          %s171 = int_to_ptr.vmem [resolvable:$true] %s170
          %173 = dma.hbm_to_vmem [thread:$0]  %s168, 448, %s171, %s159
        $region20: #{tpu_custom_call.1} parent=15 // pred_fallthru
          _
        // Predicated region
        $region21: #{tpu_custom_call.1} parent=15 // pred_check
          %p174 = pneg %p78
        $region22: #{tpu_custom_call.1} parent=15 // pred_check_branch
          %176 = sbr.rel (%p174) target = $region24
        $region23: #{tpu_custom_call.1} parent=15 // pred_region
          %s177 = sand.u32 %s18, 1
          %s178 = scalar_lea.sflag [#allocation6], %s177
          %s179 = sand.u32 %s68, 1
          %s180 = smul.addr %s179, 7168
          %s181 = scalar_lea.vmem [#allocation5], %s180
          %s182 = smul.u32 448, %s26
          %s183 = smul.u32 4, %s25
          %s185 = ssub.s32 114688, 114688
          %186 = vsyncadd %s178, %s185
          %s187 = smul.addr %s182, 8
          %s188 = sadd.s32 %s183, %s187
          %s189 = smul.addr %s188, 64
          %s190 = scalar_lea.hbm %s1, %s189
          %s191 = sshll.u32 %s181, 4
          %s192 = int_to_ptr.vmem [resolvable:$true] %s191
          %197 = dma.hbm_to_vmem [thread:$0]  %s190, 114688, %s192, %s178, 512, 256, 16
        $region24: #{tpu_custom_call.1} parent=15 // pred_fallthru
          _
        // Predicated region
        $region25: #{tpu_custom_call.1} parent=15 // pred_check
          %p198 = pneg %p104
        $region26: #{tpu_custom_call.1} parent=15 // pred_check_branch
          %200 = sbr.rel (%p198) target = $region28
        $region27: #{tpu_custom_call.1} parent=15 // pred_region
          %s201 = sand.u32 %s18, 1
          %s202 = scalar_lea.sflag [#allocation6], %s201
          %s203 = sand.u32 %s94, 1
          %s204 = smul.addr %s203, 4
          %s205 = scalar_lea.vmem [#allocation7], %s204
          %s206 = smul.u32 4, %s25
          %s208 = ssub.s32 64, 64
          %209 = vsyncadd %s202, %s208
          %s210 = smul.addr %s206, 16
          %s211 = scalar_lea.hbm %s2, %s210
          %s213 = sshll.u32 %s205, 4
          %s214 = int_to_ptr.vmem [resolvable:$true] %s213
          %216 = dma.hbm_to_vmem [thread:$0]  %s211, 64, %s214, %s202
        $region28: #{tpu_custom_call.1} parent=15 // pred_fallthru
          _
      $region16: #{tpu_custom_call.1} parent=5 // pred_fallthru
        _
      %p217 = scmp.le.s32.totalorder 1, %s18
      %p218 = scmp.lt.s32.totalorder %s18, 15
      %p219 = pnand %p217, %p218
      %p220 = pneg %p219
      // Predicated region
      $region29: #{tpu_custom_call.1} parent=5 // pred_check
        _
      $region30: #{tpu_custom_call.1} parent=5 // pred_check_branch
        %222 = sbr.rel (%p219) target = $region32
      $region31: #{tpu_custom_call.1} parent=5 // pred_region
        %s223 = ssub.s32 %s18, 1
        %s224 = sand.u32 %s43, 1
        %s225 = scalar_lea.sflag [#allocation3], %s224
        %s226 = sand.u32 %s43, 1
        %s227 = smul.addr %s226, 28
        %s228 = scalar_lea.vmem [#allocation2], %s227
        // Predicated region
        $region33: #{tpu_custom_call.1} parent=31 // pred_check
          %p229 = pneg %p56
        $region34: #{tpu_custom_call.1} parent=31 // pred_check_branch
          %231 = sbr.rel (%p229) target = $region36
        $region35: #{tpu_custom_call.1} parent=31 // pred_region
          %232 = dma.done %s225, 448
        $region36: #{tpu_custom_call.1} parent=31 // pred_fallthru
          _
        %s233 = sand.u32 %s23, 1
        %s234 = scalar_lea.sflag [#allocation6], %s233
        %s235 = sand.u32 %s71, 1
        %s236 = smul.addr %s235, 7168
        %s237 = scalar_lea.vmem [#allocation5], %s236
        // Predicated region
        $region37: #{tpu_custom_call.1} parent=31 // pred_check
          %p238 = pneg %p84
        $region38: #{tpu_custom_call.1} parent=31 // pred_check_branch
          %240 = sbr.rel (%p238) target = $region40
        $region39: #{tpu_custom_call.1} parent=31 // pred_region
          %241 = dma.done %s234, 114688
        $region40: #{tpu_custom_call.1} parent=31 // pred_fallthru
          _
        %s242 = sand.u32 %s23, 1
        %s243 = scalar_lea.sflag [#allocation6], %s242
        %s244 = sand.u32 %s97, 1
        %s245 = smul.addr %s244, 4
        %s246 = scalar_lea.vmem [#allocation7], %s245
        // Predicated region
        $region41: #{tpu_custom_call.1} parent=31 // pred_check
          %p247 = pneg %p110
        $region42: #{tpu_custom_call.1} parent=31 // pred_check_branch
          %249 = sbr.rel (%p247) target = $region44
        $region43: #{tpu_custom_call.1} parent=31 // pred_region
          %250 = dma.done %s243, 64
        $region44: #{tpu_custom_call.1} parent=31 // pred_fallthru
          _
        %s251 = sand.u32 %s43, 1
        %s252 = scalar_lea.sflag [#allocation3], %s251
        %s253 = sand.u32 %s43, 1
        %s254 = smul.addr %s253, 28
        %s255 = scalar_lea.vmem [#allocation2], %s254
        %p256 = pneg %p56
        %p257 = pneg %p53
        %s258 = sand.u32 %s23, 1
        %s259 = scalar_lea.sflag [#allocation6], %s258
        %s260 = sand.u32 %s71, 1
        %s261 = smul.addr %s260, 7168
        %s262 = scalar_lea.vmem [#allocation5], %s261
        %p263 = pneg %p84
        %p264 = pneg %p81
        %s265 = sand.u32 %s23, 1
        %s266 = scalar_lea.sflag [#allocation6], %s265
        %s267 = sand.u32 %s97, 1
        %s268 = smul.addr %s267, 4
        %s269 = scalar_lea.vmem [#allocation7], %s268
        %p270 = pneg %p110
        %p271 = pneg %p107
        %p272 = pneg %p136
        %p273 = pneg %p133
        %s274 = sand.u32 %s123, 1
        %s275 = scalar_lea.sflag [#allocation4], %s274
        %s276 = sand.u32 %s123, 1
        %s277 = smul.addr %s276, 8
        %s278 = scalar_lea.vmem [#allocation8], %s277
        %s279 = smul.u32 28, %s28
        %s280 = smul.u32 448, %s28
        %s281 = smul.u32 4, %s27
        %s282 = smul.u32 4, %s27
        %s283 = smul.u32 4, %s27
        %p284 = scmp.eq.s32.totalorder %s28, 0
        // Predicated region
        $region45: #{tpu_custom_call.1} parent=31 // pred_check
          %p285 = pneg %p284
        $region46: #{tpu_custom_call.1} parent=31 // pred_check_branch
          %287 = sbr.rel (%p285) target = $region48
        $region47: #{tpu_custom_call.1} parent=31 // pred_region
          %v288 = vld [vmem:[%s246] sm:$0xf]
          %v290 = vlaneseq
          %v291 = vshrl.u32 %v290, 7
          %v292 = vsub.s32 0, %v291
          %v293 = vrot.slane %v288, %v292
          %v294 = vlaneseq
          %v295 = vshrl.u32 %v294, 7
          %v296 = vsub.s32 1, %v295
          %v297 = vrot.slane %v288, %v296
          %v298 = vlaneseq
          %v299 = vshrl.u32 %v298, 7
          %v300 = vsub.s32 2, %v299
          %v301 = vrot.slane %v288, %v300
          %v302 = vlaneseq
          %v303 = vshrl.u32 %v302, 7
          %v304 = vsub.s32 3, %v303
          %v305 = vrot.slane %v288, %v304
          %v306 = vcombine.low %v293, %v297
          %v307 = vcombine.low %v301, %v305
          %v309 = vunpack.c.l.s4 1983009808
          %v310 = vunpack.c.0.s8 %v309
          %v311 = vlaneseq
          %v312 = vshrl.u32 %v311, 7
          %v313 = vsub.s32 %v310, %v312
          %v314 = vrot.slane %v306, %v313
          %v316 = vunpack.c.l.s4 1983009808
          %v317 = vunpack.c.0.s8 %v316
          %v318 = vlaneseq
          %v319 = vshrl.u32 %v318, 7
          %v320 = vsub.s32 %v317, %v319
          %v321 = vrot.slane %v307, %v320
          %v322 = vcombine.low %v314, %v321
          %324 = vst [vmem:[%s278] sm:$0xff] %v322
        $region48: #{tpu_custom_call.1} parent=31 // pred_fallthru
          _
        %v325 = vld [vmem:[%s278] sm:$0xff]
        %v326 = vld [vmem:[%s228] sm:$0xff]
        %v327 = vld [vmem:[%s228 + $0x8] sm:$0xff]
        %v328 = vld [vmem:[%s228 + $0x10] sm:$0xff]
        %v329 = vld [vmem:[%s228 + $0x18] sm:$0xf]
        %v330 = vld [vmem:[%s237] sm:$0xff]
        %v331 = vld [vmem:[%s237 + $0x8] sm:$0xff]
        %v332 = vld [vmem:[%s237 + $0x10] sm:$0xff]
        %v333 = vld [vmem:[%s237 + $0x18] sm:$0xff]
        %v334 = vld [vmem:[%s237 + $0x20] sm:$0xff]
        %v335 = vld [vmem:[%s237 + $0x28] sm:$0xff]
        %v336 = vld [vmem:[%s237 + $0x30] sm:$0xff]
        %v337 = vld [vmem:[%s237 + $0x38] sm:$0xff]
        %v338 = vld [vmem:[%s237 + $0x40] sm:$0xff]
        %v339 = vld [vmem:[%s237 + $0x48] sm:$0xff]
        %v340 = vld [vmem:[%s237 + $0x50] sm:$0xff]
        %v341 = vld [vmem:[%s237 + $0x58] sm:$0xff]
        %v342 = vld [vmem:[%s237 + $0x60] sm:$0xff]
        %v343 = vld [vmem:[%s237 + $0x68] sm:$0xff]
        %v344 = vld [vmem:[%s237 + $0x70] sm:$0xff]
        %v345 = vld [vmem:[%s237 + $0x78] sm:$0xff]
        %v346 = vld [vmem:[%s237 + $0x80] sm:$0xff]
        %v347 = vld [vmem:[%s237 + $0x88] sm:$0xff]
        %v348 = vld [vmem:[%s237 + $0x90] sm:$0xff]
        %v349 = vld [vmem:[%s237 + $0x98] sm:$0xff]
        %v350 = vld [vmem:[%s237 + $0xa0] sm:$0xff]
        %v351 = vld [vmem:[%s237 + $0xa8] sm:$0xff]
        %v352 = vld [vmem:[%s237 + $0xb0] sm:$0xff]
        %v353 = vld [vmem:[%s237 + $0xb8] sm:$0xff]
        %v354 = vld [vmem:[%s237 + $0xc0] sm:$0xff]
        %v355 = vld [vmem:[%s237 + $0xc8] sm:$0xff]
        %v356 = vld [vmem:[%s237 + $0xd0] sm:$0xff]
        %v357 = vld [vmem:[%s237 + $0xd8] sm:$0xff]
        %v358 = vld [vmem:[%s237 + $0xe0] sm:$0xff]
        %v359 = vld [vmem:[%s237 + $0xe8] sm:$0xff]
        %v360 = vld [vmem:[%s237 + $0xf0] sm:$0xff]
        %v361 = vld [vmem:[%s237 + $0xf8] sm:$0xff]
        %v362 = vld [vmem:[%s237 + $0x100] sm:$0xff]
        %v363 = vld [vmem:[%s237 + $0x108] sm:$0xff]
        %v364 = vld [vmem:[%s237 + $0x110] sm:$0xff]
        %v365 = vld [vmem:[%s237 + $0x118] sm:$0xff]
        %v366 = vld [vmem:[%s237 + $0x120] sm:$0xff]
        %v367 = vld [vmem:[%s237 + $0x128] sm:$0xff]
        %v368 = vld [vmem:[%s237 + $0x130] sm:$0xff]
        %v369 = vld [vmem:[%s237 + $0x138] sm:$0xff]
        %v370 = vld [vmem:[%s237 + $0x140] sm:$0xff]
        %v371 = vld [vmem:[%s237 + $0x148] sm:$0xff]
        %v372 = vld [vmem:[%s237 + $0x150] sm:$0xff]
        %v373 = vld [vmem:[%s237 + $0x158] sm:$0xff]
        %v374 = vld [vmem:[%s237 + $0x160] sm:$0xff]
        %v375 = vld [vmem:[%s237 + $0x168] sm:$0xff]
        %v376 = vld [vmem:[%s237 + $0x170] sm:$0xff]
        %v377 = vld [vmem:[%s237 + $0x178] sm:$0xff]
        %v378 = vld [vmem:[%s237 + $0x180] sm:$0xff]
        %v379 = vld [vmem:[%s237 + $0x188] sm:$0xff]
        %v380 = vld [vmem:[%s237 + $0x190] sm:$0xff]
        %v381 = vld [vmem:[%s237 + $0x198] sm:$0xff]
        %v382 = vld [vmem:[%s237 + $0x1a0] sm:$0xff]
        %v383 = vld [vmem:[%s237 + $0x1a8] sm:$0xff]
        %v384 = vld [vmem:[%s237 + $0x1b0] sm:$0xff]
        %v385 = vld [vmem:[%s237 + $0x1b8] sm:$0xff]
        %v386 = vld [vmem:[%s237 + $0x1c0] sm:$0xff]
        %v387 = vld [vmem:[%s237 + $0x1c8] sm:$0xff]
        %v388 = vld [vmem:[%s237 + $0x1d0] sm:$0xff]
        %v389 = vld [vmem:[%s237 + $0x1d8] sm:$0xff]
        %v390 = vld [vmem:[%s237 + $0x1e0] sm:$0xff]
        %v391 = vld [vmem:[%s237 + $0x1e8] sm:$0xff]
        %v392 = vld [vmem:[%s237 + $0x1f0] sm:$0xff]
        %v393 = vld [vmem:[%s237 + $0x1f8] sm:$0xff]
        %v394 = vld [vmem:[%s237 + $0x200] sm:$0xff]
        %v395 = vld [vmem:[%s237 + $0x208] sm:$0xff]
        %v396 = vld [vmem:[%s237 + $0x210] sm:$0xff]
        %v397 = vld [vmem:[%s237 + $0x218] sm:$0xff]
        %v398 = vld [vmem:[%s237 + $0x220] sm:$0xff]
        %v399 = vld [vmem:[%s237 + $0x228] sm:$0xff]
        %v400 = vld [vmem:[%s237 + $0x230] sm:$0xff]
        %v401 = vld [vmem:[%s237 + $0x238] sm:$0xff]
        %v402 = vld [vmem:[%s237 + $0x240] sm:$0xff]
        %v403 = vld [vmem:[%s237 + $0x248] sm:$0xff]
        %v404 = vld [vmem:[%s237 + $0x250] sm:$0xff]
        %v405 = vld [vmem:[%s237 + $0x258] sm:$0xff]
        %v406 = vld [vmem:[%s237 + $0x260] sm:$0xff]
        %v407 = vld [vmem:[%s237 + $0x268] sm:$0xff]
        %v408 = vld [vmem:[%s237 + $0x270] sm:$0xff]
        %v409 = vld [vmem:[%s237 + $0x278] sm:$0xff]
        %v410 = vld [vmem:[%s237 + $0x280] sm:$0xff]
        %v411 = vld [vmem:[%s237 + $0x288] sm:$0xff]
        %v412 = vld [vmem:[%s237 + $0x290] sm:$0xff]
        %v413 = vld [vmem:[%s237 + $0x298] sm:$0xff]
        %v414 = vld [vmem:[%s237 + $0x2a0] sm:$0xff]
        %v415 = vld [vmem:[%s237 + $0x2a8] sm:$0xff]
        %v416 = vld [vmem:[%s237 + $0x2b0] sm:$0xff]
        %v417 = vld [vmem:[%s237 + $0x2b8] sm:$0xff]
        %v418 = vld [vmem:[%s237 + $0x2c0] sm:$0xff]
        %v419 = vld [vmem:[%s237 + $0x2c8] sm:$0xff]
        %v420 = vld [vmem:[%s237 + $0x2d0] sm:$0xff]
        %v421 = vld [vmem:[%s237 + $0x2d8] sm:$0xff]
        %v422 = vld [vmem:[%s237 + $0x2e0] sm:$0xff]
        %v423 = vld [vmem:[%s237 + $0x2e8] sm:$0xff]
        %v424 = vld [vmem:[%s237 + $0x2f0] sm:$0xff]
        %v425 = vld [vmem:[%s237 + $0x2f8] sm:$0xff]
        %v426 = vld [vmem:[%s237 + $0x300] sm:$0xff]
        %v427 = vld [vmem:[%s237 + $0x308] sm:$0xff]
        %v428 = vld [vmem:[%s237 + $0x310] sm:$0xff]
        %v429 = vld [vmem:[%s237 + $0x318] sm:$0xff]
        %v430 = vld [vmem:[%s237 + $0x320] sm:$0xff]
        %v431 = vld [vmem:[%s237 + $0x328] sm:$0xff]
        %v432 = vld [vmem:[%s237 + $0x330] sm:$0xff]
        %v433 = vld [vmem:[%s237 + $0x338] sm:$0xff]
        %v434 = vld [vmem:[%s237 + $0x340] sm:$0xff]
        %v435 = vld [vmem:[%s237 + $0x348] sm:$0xff]
        %v436 = vld [vmem:[%s237 + $0x350] sm:$0xff]
        %v437 = vld [vmem:[%s237 + $0x358] sm:$0xff]
        %v438 = vld [vmem:[%s237 + $0x360] sm:$0xff]
        %v439 = vld [vmem:[%s237 + $0x368] sm:$0xff]
        %v440 = vld [vmem:[%s237 + $0x370] sm:$0xff]
        %v441 = vld [vmem:[%s237 + $0x378] sm:$0xff]
        %v442 = vld [vmem:[%s237 + $0x380] sm:$0xff]
        %v443 = vld [vmem:[%s237 + $0x388] sm:$0xff]
        %v444 = vld [vmem:[%s237 + $0x390] sm:$0xff]
        %v445 = vld [vmem:[%s237 + $0x398] sm:$0xff]
        %v446 = vld [vmem:[%s237 + $0x3a0] sm:$0xff]
        %v447 = vld [vmem:[%s237 + $0x3a8] sm:$0xff]
        %v448 = vld [vmem:[%s237 + $0x3b0] sm:$0xff]
        %v449 = vld [vmem:[%s237 + $0x3b8] sm:$0xff]
        %v450 = vld [vmem:[%s237 + $0x3c0] sm:$0xff]
        %v451 = vld [vmem:[%s237 + $0x3c8] sm:$0xff]
        %v452 = vld [vmem:[%s237 + $0x3d0] sm:$0xff]
        %v453 = vld [vmem:[%s237 + $0x3d8] sm:$0xff]
        %v454 = vld [vmem:[%s237 + $0x3e0] sm:$0xff]
        %v455 = vld [vmem:[%s237 + $0x3e8] sm:$0xff]
        %v456 = vld [vmem:[%s237 + $0x3f0] sm:$0xff]
        %v457 = vld [vmem:[%s237 + $0x3f8] sm:$0xff]
        %v458 = vld [vmem:[%s237 + $0x400] sm:$0xff]
        %v459 = vld [vmem:[%s237 + $0x408] sm:$0xff]
        %v460 = vld [vmem:[%s237 + $0x410] sm:$0xff]
        %v461 = vld [vmem:[%s237 + $0x418] sm:$0xff]
        %v462 = vld [vmem:[%s237 + $0x420] sm:$0xff]
        %v463 = vld [vmem:[%s237 + $0x428] sm:$0xff]
        %v464 = vld [vmem:[%s237 + $0x430] sm:$0xff]
        %v465 = vld [vmem:[%s237 + $0x438] sm:$0xff]
        %v466 = vld [vmem:[%s237 + $0x440] sm:$0xff]
        %v467 = vld [vmem:[%s237 + $0x448] sm:$0xff]
        %v468 = vld [vmem:[%s237 + $0x450] sm:$0xff]
        %v469 = vld [vmem:[%s237 + $0x458] sm:$0xff]
        %v470 = vld [vmem:[%s237 + $0x460] sm:$0xff]
        %v471 = vld [vmem:[%s237 + $0x468] sm:$0xff]
        %v472 = vld [vmem:[%s237 + $0x470] sm:$0xff]
        %v473 = vld [vmem:[%s237 + $0x478] sm:$0xff]
        %v474 = vld [vmem:[%s237 + $0x480] sm:$0xff]
        %v475 = vld [vmem:[%s237 + $0x488] sm:$0xff]
        %v476 = vld [vmem:[%s237 + $0x490] sm:$0xff]
        %v477 = vld [vmem:[%s237 + $0x498] sm:$0xff]
        %v478 = vld [vmem:[%s237 + $0x4a0] sm:$0xff]
        %v479 = vld [vmem:[%s237 + $0x4a8] sm:$0xff]
        %v480 = vld [vmem:[%s237 + $0x4b0] sm:$0xff]
        %v481 = vld [vmem:[%s237 + $0x4b8] sm:$0xff]
        %v482 = vld [vmem:[%s237 + $0x4c0] sm:$0xff]
        %v483 = vld [vmem:[%s237 + $0x4c8] sm:$0xff]
        %v484 = vld [vmem:[%s237 + $0x4d0] sm:$0xff]
        %v485 = vld [vmem:[%s237 + $0x4d8] sm:$0xff]
        %v486 = vld [vmem:[%s237 + $0x4e0] sm:$0xff]
        %v487 = vld [vmem:[%s237 + $0x4e8] sm:$0xff]
        %v488 = vld [vmem:[%s237 + $0x4f0] sm:$0xff]
        %v489 = vld [vmem:[%s237 + $0x4f8] sm:$0xff]
        %v490 = vld [vmem:[%s237 + $0x500] sm:$0xff]
        %v491 = vld [vmem:[%s237 + $0x508] sm:$0xff]
        %v492 = vld [vmem:[%s237 + $0x510] sm:$0xff]
        %v493 = vld [vmem:[%s237 + $0x518] sm:$0xff]
        %v494 = vld [vmem:[%s237 + $0x520] sm:$0xff]
        %v495 = vld [vmem:[%s237 + $0x528] sm:$0xff]
        %v496 = vld [vmem:[%s237 + $0x530] sm:$0xff]
        %v497 = vld [vmem:[%s237 + $0x538] sm:$0xff]
        %v498 = vld [vmem:[%s237 + $0x540] sm:$0xff]
        %v499 = vld [vmem:[%s237 + $0x548] sm:$0xff]
        %v500 = vld [vmem:[%s237 + $0x550] sm:$0xff]
        %v501 = vld [vmem:[%s237 + $0x558] sm:$0xff]
        %v502 = vld [vmem:[%s237 + $0x560] sm:$0xff]
        %v503 = vld [vmem:[%s237 + $0x568] sm:$0xff]
        %v504 = vld [vmem:[%s237 + $0x570] sm:$0xff]
        %v505 = vld [vmem:[%s237 + $0x578] sm:$0xff]
        %v506 = vld [vmem:[%s237 + $0x580] sm:$0xff]
        %v507 = vld [vmem:[%s237 + $0x588] sm:$0xff]
        %v508 = vld [vmem:[%s237 + $0x590] sm:$0xff]
        %v509 = vld [vmem:[%s237 + $0x598] sm:$0xff]
        %v510 = vld [vmem:[%s237 + $0x5a0] sm:$0xff]
        %v511 = vld [vmem:[%s237 + $0x5a8] sm:$0xff]
        %v512 = vld [vmem:[%s237 + $0x5b0] sm:$0xff]
        %v513 = vld [vmem:[%s237 + $0x5b8] sm:$0xff]
        %v514 = vld [vmem:[%s237 + $0x5c0] sm:$0xff]
        %v515 = vld [vmem:[%s237 + $0x5c8] sm:$0xff]
        %v516 = vld [vmem:[%s237 + $0x5d0] sm:$0xff]
        %v517 = vld [vmem:[%s237 + $0x5d8] sm:$0xff]
        %v518 = vld [vmem:[%s237 + $0x5e0] sm:$0xff]
        %v519 = vld [vmem:[%s237 + $0x5e8] sm:$0xff]
        %v520 = vld [vmem:[%s237 + $0x5f0] sm:$0xff]
        %v521 = vld [vmem:[%s237 + $0x5f8] sm:$0xff]
        %v522 = vld [vmem:[%s237 + $0x600] sm:$0xff]
        %v523 = vld [vmem:[%s237 + $0x608] sm:$0xff]
        %v524 = vld [vmem:[%s237 + $0x610] sm:$0xff]
        %v525 = vld [vmem:[%s237 + $0x618] sm:$0xff]
        %v526 = vld [vmem:[%s237 + $0x620] sm:$0xff]
        %v527 = vld [vmem:[%s237 + $0x628] sm:$0xff]
        %v528 = vld [vmem:[%s237 + $0x630] sm:$0xff]
        %v529 = vld [vmem:[%s237 + $0x638] sm:$0xff]
        %v530 = vld [vmem:[%s237 + $0x640] sm:$0xff]
        %v531 = vld [vmem:[%s237 + $0x648] sm:$0xff]
        %v532 = vld [vmem:[%s237 + $0x650] sm:$0xff]
        %v533 = vld [vmem:[%s237 + $0x658] sm:$0xff]
        %v534 = vld [vmem:[%s237 + $0x660] sm:$0xff]
        %v535 = vld [vmem:[%s237 + $0x668] sm:$0xff]
        %v536 = vld [vmem:[%s237 + $0x670] sm:$0xff]
        %v537 = vld [vmem:[%s237 + $0x678] sm:$0xff]
        %v538 = vld [vmem:[%s237 + $0x680] sm:$0xff]
        %v539 = vld [vmem:[%s237 + $0x688] sm:$0xff]
        %v540 = vld [vmem:[%s237 + $0x690] sm:$0xff]
        %v541 = vld [vmem:[%s237 + $0x698] sm:$0xff]
        %v542 = vld [vmem:[%s237 + $0x6a0] sm:$0xff]
        %v543 = vld [vmem:[%s237 + $0x6a8] sm:$0xff]
        %v544 = vld [vmem:[%s237 + $0x6b0] sm:$0xff]
        %v545 = vld [vmem:[%s237 + $0x6b8] sm:$0xff]
        %v546 = vld [vmem:[%s237 + $0x6c0] sm:$0xff]
        %v547 = vld [vmem:[%s237 + $0x6c8] sm:$0xff]
        %v548 = vld [vmem:[%s237 + $0x6d0] sm:$0xff]
        %v549 = vld [vmem:[%s237 + $0x6d8] sm:$0xff]
        %v550 = vld [vmem:[%s237 + $0x6e0] sm:$0xff]
        %v551 = vld [vmem:[%s237 + $0x6e8] sm:$0xff]
        %v552 = vld [vmem:[%s237 + $0x6f0] sm:$0xff]
        %v553 = vld [vmem:[%s237 + $0x6f8] sm:$0xff]
        %v554 = vld [vmem:[%s237 + $0x700] sm:$0xff]
        %v555 = vld [vmem:[%s237 + $0x708] sm:$0xff]
        %v556 = vld [vmem:[%s237 + $0x710] sm:$0xff]
        %v557 = vld [vmem:[%s237 + $0x718] sm:$0xff]
        %v558 = vld [vmem:[%s237 + $0x720] sm:$0xff]
        %v559 = vld [vmem:[%s237 + $0x728] sm:$0xff]
        %v560 = vld [vmem:[%s237 + $0x730] sm:$0xff]
        %v561 = vld [vmem:[%s237 + $0x738] sm:$0xff]
        %v562 = vld [vmem:[%s237 + $0x740] sm:$0xff]
        %v563 = vld [vmem:[%s237 + $0x748] sm:$0xff]
        %v564 = vld [vmem:[%s237 + $0x750] sm:$0xff]
        %v565 = vld [vmem:[%s237 + $0x758] sm:$0xff]
        %v566 = vld [vmem:[%s237 + $0x760] sm:$0xff]
        %v567 = vld [vmem:[%s237 + $0x768] sm:$0xff]
        %v568 = vld [vmem:[%s237 + $0x770] sm:$0xff]
        %v569 = vld [vmem:[%s237 + $0x778] sm:$0xff]
        %v570 = vld [vmem:[%s237 + $0x780] sm:$0xff]
        %v571 = vld [vmem:[%s237 + $0x788] sm:$0xff]
        %v572 = vld [vmem:[%s237 + $0x790] sm:$0xff]
        %v573 = vld [vmem:[%s237 + $0x798] sm:$0xff]
        %v574 = vld [vmem:[%s237 + $0x7a0] sm:$0xff]
        %v575 = vld [vmem:[%s237 + $0x7a8] sm:$0xff]
        %v576 = vld [vmem:[%s237 + $0x7b0] sm:$0xff]
        %v577 = vld [vmem:[%s237 + $0x7b8] sm:$0xff]
        %v578 = vld [vmem:[%s237 + $0x7c0] sm:$0xff]
        %v579 = vld [vmem:[%s237 + $0x7c8] sm:$0xff]
        %v580 = vld [vmem:[%s237 + $0x7d0] sm:$0xff]
        %v581 = vld [vmem:[%s237 + $0x7d8] sm:$0xff]
        %v582 = vld [vmem:[%s237 + $0x7e0] sm:$0xff]
        %v583 = vld [vmem:[%s237 + $0x7e8] sm:$0xff]
        %v584 = vld [vmem:[%s237 + $0x7f0] sm:$0xff]
        %v585 = vld [vmem:[%s237 + $0x7f8] sm:$0xff]
        %v586 = vld [vmem:[%s237 + $0x800] sm:$0xff]
        %v587 = vld [vmem:[%s237 + $0x808] sm:$0xff]
        %v588 = vld [vmem:[%s237 + $0x810] sm:$0xff]
        %v589 = vld [vmem:[%s237 + $0x818] sm:$0xff]
        %v590 = vld [vmem:[%s237 + $0x820] sm:$0xff]
        %v591 = vld [vmem:[%s237 + $0x828] sm:$0xff]
        %v592 = vld [vmem:[%s237 + $0x830] sm:$0xff]
        %v593 = vld [vmem:[%s237 + $0x838] sm:$0xff]
        %v594 = vld [vmem:[%s237 + $0x840] sm:$0xff]
        %v595 = vld [vmem:[%s237 + $0x848] sm:$0xff]
        %v596 = vld [vmem:[%s237 + $0x850] sm:$0xff]
        %v597 = vld [vmem:[%s237 + $0x858] sm:$0xff]
        %v598 = vld [vmem:[%s237 + $0x860] sm:$0xff]
        %v599 = vld [vmem:[%s237 + $0x868] sm:$0xff]
        %v600 = vld [vmem:[%s237 + $0x870] sm:$0xff]
        %v601 = vld [vmem:[%s237 + $0x878] sm:$0xff]
        %v602 = vld [vmem:[%s237 + $0x880] sm:$0xff]
        %v603 = vld [vmem:[%s237 + $0x888] sm:$0xff]
        %v604 = vld [vmem:[%s237 + $0x890] sm:$0xff]
        %v605 = vld [vmem:[%s237 + $0x898] sm:$0xff]
        %v606 = vld [vmem:[%s237 + $0x8a0] sm:$0xff]
        %v607 = vld [vmem:[%s237 + $0x8a8] sm:$0xff]
        %v608 = vld [vmem:[%s237 + $0x8b0] sm:$0xff]
        %v609 = vld [vmem:[%s237 + $0x8b8] sm:$0xff]
        %v610 = vld [vmem:[%s237 + $0x8c0] sm:$0xff]
        %v611 = vld [vmem:[%s237 + $0x8c8] sm:$0xff]
        %v612 = vld [vmem:[%s237 + $0x8d0] sm:$0xff]
        %v613 = vld [vmem:[%s237 + $0x8d8] sm:$0xff]
        %v614 = vld [vmem:[%s237 + $0x8e0] sm:$0xff]
        %v615 = vld [vmem:[%s237 + $0x8e8] sm:$0xff]
        %v616 = vld [vmem:[%s237 + $0x8f0] sm:$0xff]
        %v617 = vld [vmem:[%s237 + $0x8f8] sm:$0xff]
        %v618 = vld [vmem:[%s237 + $0x900] sm:$0xff]
        %v619 = vld [vmem:[%s237 + $0x908] sm:$0xff]
        %v620 = vld [vmem:[%s237 + $0x910] sm:$0xff]
        %v621 = vld [vmem:[%s237 + $0x918] sm:$0xff]
        %v622 = vld [vmem:[%s237 + $0x920] sm:$0xff]
        %v623 = vld [vmem:[%s237 + $0x928] sm:$0xff]
        %v624 = vld [vmem:[%s237 + $0x930] sm:$0xff]
        %v625 = vld [vmem:[%s237 + $0x938] sm:$0xff]
        %v626 = vld [vmem:[%s237 + $0x940] sm:$0xff]
        %v627 = vld [vmem:[%s237 + $0x948] sm:$0xff]
        %v628 = vld [vmem:[%s237 + $0x950] sm:$0xff]
        %v629 = vld [vmem:[%s237 + $0x958] sm:$0xff]
        %v630 = vld [vmem:[%s237 + $0x960] sm:$0xff]
        %v631 = vld [vmem:[%s237 + $0x968] sm:$0xff]
        %v632 = vld [vmem:[%s237 + $0x970] sm:$0xff]
        %v633 = vld [vmem:[%s237 + $0x978] sm:$0xff]
        %v634 = vld [vmem:[%s237 + $0x980] sm:$0xff]
        %v635 = vld [vmem:[%s237 + $0x988] sm:$0xff]
        %v636 = vld [vmem:[%s237 + $0x990] sm:$0xff]
        %v637 = vld [vmem:[%s237 + $0x998] sm:$0xff]
        %v638 = vld [vmem:[%s237 + $0x9a0] sm:$0xff]
        %v639 = vld [vmem:[%s237 + $0x9a8] sm:$0xff]
        %v640 = vld [vmem:[%s237 + $0x9b0] sm:$0xff]
        %v641 = vld [vmem:[%s237 + $0x9b8] sm:$0xff]
        %v642 = vld [vmem:[%s237 + $0x9c0] sm:$0xff]
        %v643 = vld [vmem:[%s237 + $0x9c8] sm:$0xff]
        %v644 = vld [vmem:[%s237 + $0x9d0] sm:$0xff]
        %v645 = vld [vmem:[%s237 + $0x9d8] sm:$0xff]
        %v646 = vld [vmem:[%s237 + $0x9e0] sm:$0xff]
        %v647 = vld [vmem:[%s237 + $0x9e8] sm:$0xff]
        %v648 = vld [vmem:[%s237 + $0x9f0] sm:$0xff]
        %v649 = vld [vmem:[%s237 + $0x9f8] sm:$0xff]
        %v650 = vld [vmem:[%s237 + $0xa00] sm:$0xff]
        %v651 = vld [vmem:[%s237 + $0xa08] sm:$0xff]
        %v652 = vld [vmem:[%s237 + $0xa10] sm:$0xff]
        %v653 = vld [vmem:[%s237 + $0xa18] sm:$0xff]
        %v654 = vld [vmem:[%s237 + $0xa20] sm:$0xff]
        %v655 = vld [vmem:[%s237 + $0xa28] sm:$0xff]
        %v656 = vld [vmem:[%s237 + $0xa30] sm:$0xff]
        %v657 = vld [vmem:[%s237 + $0xa38] sm:$0xff]
        %v658 = vld [vmem:[%s237 + $0xa40] sm:$0xff]
        %v659 = vld [vmem:[%s237 + $0xa48] sm:$0xff]
        %v660 = vld [vmem:[%s237 + $0xa50] sm:$0xff]
        %v661 = vld [vmem:[%s237 + $0xa58] sm:$0xff]
        %v662 = vld [vmem:[%s237 + $0xa60] sm:$0xff]
        %v663 = vld [vmem:[%s237 + $0xa68] sm:$0xff]
        %v664 = vld [vmem:[%s237 + $0xa70] sm:$0xff]
        %v665 = vld [vmem:[%s237 + $0xa78] sm:$0xff]
        %v666 = vld [vmem:[%s237 + $0xa80] sm:$0xff]
        %v667 = vld [vmem:[%s237 + $0xa88] sm:$0xff]
        %v668 = vld [vmem:[%s237 + $0xa90] sm:$0xff]
        %v669 = vld [vmem:[%s237 + $0xa98] sm:$0xff]
        %v670 = vld [vmem:[%s237 + $0xaa0] sm:$0xff]
        %v671 = vld [vmem:[%s237 + $0xaa8] sm:$0xff]
        %v672 = vld [vmem:[%s237 + $0xab0] sm:$0xff]
        %v673 = vld [vmem:[%s237 + $0xab8] sm:$0xff]
        %v674 = vld [vmem:[%s237 + $0xac0] sm:$0xff]
        %v675 = vld [vmem:[%s237 + $0xac8] sm:$0xff]
        %v676 = vld [vmem:[%s237 + $0xad0] sm:$0xff]
        %v677 = vld [vmem:[%s237 + $0xad8] sm:$0xff]
        %v678 = vld [vmem:[%s237 + $0xae0] sm:$0xff]
        %v679 = vld [vmem:[%s237 + $0xae8] sm:$0xff]
        %v680 = vld [vmem:[%s237 + $0xaf0] sm:$0xff]
        %v681 = vld [vmem:[%s237 + $0xaf8] sm:$0xff]
        %v682 = vld [vmem:[%s237 + $0xb00] sm:$0xff]
        %v683 = vld [vmem:[%s237 + $0xb08] sm:$0xff]
        %v684 = vld [vmem:[%s237 + $0xb10] sm:$0xff]
        %v685 = vld [vmem:[%s237 + $0xb18] sm:$0xff]
        %v686 = vld [vmem:[%s237 + $0xb20] sm:$0xff]
        %v687 = vld [vmem:[%s237 + $0xb28] sm:$0xff]
        %v688 = vld [vmem:[%s237 + $0xb30] sm:$0xff]
        %v689 = vld [vmem:[%s237 + $0xb38] sm:$0xff]
        %v690 = vld [vmem:[%s237 + $0xb40] sm:$0xff]
        %v691 = vld [vmem:[%s237 + $0xb48] sm:$0xff]
        %v692 = vld [vmem:[%s237 + $0xb50] sm:$0xff]
        %v693 = vld [vmem:[%s237 + $0xb58] sm:$0xff]
        %v694 = vld [vmem:[%s237 + $0xb60] sm:$0xff]
        %v695 = vld [vmem:[%s237 + $0xb68] sm:$0xff]
        %v696 = vld [vmem:[%s237 + $0xb70] sm:$0xff]
        %v697 = vld [vmem:[%s237 + $0xb78] sm:$0xff]
        %v698 = vld [vmem:[%s237 + $0xb80] sm:$0xff]
        %v699 = vld [vmem:[%s237 + $0xb88] sm:$0xff]
        %v700 = vld [vmem:[%s237 + $0xb90] sm:$0xff]
        %v701 = vld [vmem:[%s237 + $0xb98] sm:$0xff]
        %v702 = vld [vmem:[%s237 + $0xba0] sm:$0xff]
        %v703 = vld [vmem:[%s237 + $0xba8] sm:$0xff]
        %v704 = vld [vmem:[%s237 + $0xbb0] sm:$0xff]
        %v705 = vld [vmem:[%s237 + $0xbb8] sm:$0xff]
        %v706 = vld [vmem:[%s237 + $0xbc0] sm:$0xff]
        %v707 = vld [vmem:[%s237 + $0xbc8] sm:$0xff]
        %v708 = vld [vmem:[%s237 + $0xbd0] sm:$0xff]
        %v709 = vld [vmem:[%s237 + $0xbd8] sm:$0xff]
        %v710 = vld [vmem:[%s237 + $0xbe0] sm:$0xff]
        %v711 = vld [vmem:[%s237 + $0xbe8] sm:$0xff]
        %v712 = vld [vmem:[%s237 + $0xbf0] sm:$0xff]
        %v713 = vld [vmem:[%s237 + $0xbf8] sm:$0xff]
        %v714 = vld [vmem:[%s237 + $0xc00] sm:$0xff]
        %v715 = vld [vmem:[%s237 + $0xc08] sm:$0xff]
        %v716 = vld [vmem:[%s237 + $0xc10] sm:$0xff]
        %v717 = vld [vmem:[%s237 + $0xc18] sm:$0xff]
        %v718 = vld [vmem:[%s237 + $0xc20] sm:$0xff]
        %v719 = vld [vmem:[%s237 + $0xc28] sm:$0xff]
        %v720 = vld [vmem:[%s237 + $0xc30] sm:$0xff]
        %v721 = vld [vmem:[%s237 + $0xc38] sm:$0xff]
        %v722 = vld [vmem:[%s237 + $0xc40] sm:$0xff]
        %v723 = vld [vmem:[%s237 + $0xc48] sm:$0xff]
        %v724 = vld [vmem:[%s237 + $0xc50] sm:$0xff]
        %v725 = vld [vmem:[%s237 + $0xc58] sm:$0xff]
        %v726 = vld [vmem:[%s237 + $0xc60] sm:$0xff]
        %v727 = vld [vmem:[%s237 + $0xc68] sm:$0xff]
        %v728 = vld [vmem:[%s237 + $0xc70] sm:$0xff]
        %v729 = vld [vmem:[%s237 + $0xc78] sm:$0xff]
        %v730 = vld [vmem:[%s237 + $0xc80] sm:$0xff]
        %v731 = vld [vmem:[%s237 + $0xc88] sm:$0xff]
        %v732 = vld [vmem:[%s237 + $0xc90] sm:$0xff]
        %v733 = vld [vmem:[%s237 + $0xc98] sm:$0xff]
        %v734 = vld [vmem:[%s237 + $0xca0] sm:$0xff]
        %v735 = vld [vmem:[%s237 + $0xca8] sm:$0xff]
        %v736 = vld [vmem:[%s237 + $0xcb0] sm:$0xff]
        %v737 = vld [vmem:[%s237 + $0xcb8] sm:$0xff]
        %v738 = vld [vmem:[%s237 + $0xcc0] sm:$0xff]
        %v739 = vld [vmem:[%s237 + $0xcc8] sm:$0xff]
        %v740 = vld [vmem:[%s237 + $0xcd0] sm:$0xff]
        %v741 = vld [vmem:[%s237 + $0xcd8] sm:$0xff]
        %v742 = vld [vmem:[%s237 + $0xce0] sm:$0xff]
        %v743 = vld [vmem:[%s237 + $0xce8] sm:$0xff]
        %v744 = vld [vmem:[%s237 + $0xcf0] sm:$0xff]
        %v745 = vld [vmem:[%s237 + $0xcf8] sm:$0xff]
        %v746 = vld [vmem:[%s237 + $0xd00] sm:$0xff]
        %v747 = vld [vmem:[%s237 + $0xd08] sm:$0xff]
        %v748 = vld [vmem:[%s237 + $0xd10] sm:$0xff]
        %v749 = vld [vmem:[%s237 + $0xd18] sm:$0xff]
        %v750 = vld [vmem:[%s237 + $0xd20] sm:$0xff]
        %v751 = vld [vmem:[%s237 + $0xd28] sm:$0xff]
        %v752 = vld [vmem:[%s237 + $0xd30] sm:$0xff]
        %v753 = vld [vmem:[%s237 + $0xd38] sm:$0xff]
        %v754 = vld [vmem:[%s237 + $0xd40] sm:$0xff]
        %v755 = vld [vmem:[%s237 + $0xd48] sm:$0xff]
        %v756 = vld [vmem:[%s237 + $0xd50] sm:$0xff]
        %v757 = vld [vmem:[%s237 + $0xd58] sm:$0xff]
        %v758 = vld [vmem:[%s237 + $0xd60] sm:$0xff]
        %v759 = vld [vmem:[%s237 + $0xd68] sm:$0xff]
        %v760 = vld [vmem:[%s237 + $0xd70] sm:$0xff]
        %v761 = vld [vmem:[%s237 + $0xd78] sm:$0xff]
        %v762 = vld [vmem:[%s237 + $0xd80] sm:$0xff]
        %v763 = vld [vmem:[%s237 + $0xd88] sm:$0xff]
        %v764 = vld [vmem:[%s237 + $0xd90] sm:$0xff]
        %v765 = vld [vmem:[%s237 + $0xd98] sm:$0xff]
        %v766 = vld [vmem:[%s237 + $0xda0] sm:$0xff]
        %v767 = vld [vmem:[%s237 + $0xda8] sm:$0xff]
        %v768 = vld [vmem:[%s237 + $0xdb0] sm:$0xff]
        %v769 = vld [vmem:[%s237 + $0xdb8] sm:$0xff]
        %v770 = vld [vmem:[%s237 + $0xdc0] sm:$0xff]
        %v771 = vld [vmem:[%s237 + $0xdc8] sm:$0xff]
        %v772 = vld [vmem:[%s237 + $0xdd0] sm:$0xff]
        %v773 = vld [vmem:[%s237 + $0xdd8] sm:$0xff]
        %v774 = vld [vmem:[%s237 + $0xde0] sm:$0xff]
        %v775 = vld [vmem:[%s237 + $0xde8] sm:$0xff]
        %v776 = vld [vmem:[%s237 + $0xdf0] sm:$0xff]
        %v777 = vld [vmem:[%s237 + $0xdf8] sm:$0xff]
        %v778 = vld [vmem:[%s237 + $0xe00] sm:$0xff]
        %v779 = vld [vmem:[%s237 + $0xe08] sm:$0xff]
        %v780 = vld [vmem:[%s237 + $0xe10] sm:$0xff]
        %v781 = vld [vmem:[%s237 + $0xe18] sm:$0xff]
        %v782 = vld [vmem:[%s237 + $0xe20] sm:$0xff]
        %v783 = vld [vmem:[%s237 + $0xe28] sm:$0xff]
        %v784 = vld [vmem:[%s237 + $0xe30] sm:$0xff]
        %v785 = vld [vmem:[%s237 + $0xe38] sm:$0xff]
        %v786 = vld [vmem:[%s237 + $0xe40] sm:$0xff]
        %v787 = vld [vmem:[%s237 + $0xe48] sm:$0xff]
        %v788 = vld [vmem:[%s237 + $0xe50] sm:$0xff]
        %v789 = vld [vmem:[%s237 + $0xe58] sm:$0xff]
        %v790 = vld [vmem:[%s237 + $0xe60] sm:$0xff]
        %v791 = vld [vmem:[%s237 + $0xe68] sm:$0xff]
        %v792 = vld [vmem:[%s237 + $0xe70] sm:$0xff]
        %v793 = vld [vmem:[%s237 + $0xe78] sm:$0xff]
        %v794 = vld [vmem:[%s237 + $0xe80] sm:$0xff]
        %v795 = vld [vmem:[%s237 + $0xe88] sm:$0xff]
        %v796 = vld [vmem:[%s237 + $0xe90] sm:$0xff]
        %v797 = vld [vmem:[%s237 + $0xe98] sm:$0xff]
        %v798 = vld [vmem:[%s237 + $0xea0] sm:$0xff]
        %v799 = vld [vmem:[%s237 + $0xea8] sm:$0xff]
        %v800 = vld [vmem:[%s237 + $0xeb0] sm:$0xff]
        %v801 = vld [vmem:[%s237 + $0xeb8] sm:$0xff]
        %v802 = vld [vmem:[%s237 + $0xec0] sm:$0xff]
        %v803 = vld [vmem:[%s237 + $0xec8] sm:$0xff]
        %v804 = vld [vmem:[%s237 + $0xed0] sm:$0xff]
        %v805 = vld [vmem:[%s237 + $0xed8] sm:$0xff]
        %v806 = vld [vmem:[%s237 + $0xee0] sm:$0xff]
        %v807 = vld [vmem:[%s237 + $0xee8] sm:$0xff]
        %v808 = vld [vmem:[%s237 + $0xef0] sm:$0xff]
        %v809 = vld [vmem:[%s237 + $0xef8] sm:$0xff]
        %v810 = vld [vmem:[%s237 + $0xf00] sm:$0xff]
        %v811 = vld [vmem:[%s237 + $0xf08] sm:$0xff]
        %v812 = vld [vmem:[%s237 + $0xf10] sm:$0xff]
        %v813 = vld [vmem:[%s237 + $0xf18] sm:$0xff]
        %v814 = vld [vmem:[%s237 + $0xf20] sm:$0xff]
        %v815 = vld [vmem:[%s237 + $0xf28] sm:$0xff]
        %v816 = vld [vmem:[%s237 + $0xf30] sm:$0xff]
        %v817 = vld [vmem:[%s237 + $0xf38] sm:$0xff]
        %v818 = vld [vmem:[%s237 + $0xf40] sm:$0xff]
        %v819 = vld [vmem:[%s237 + $0xf48] sm:$0xff]
        %v820 = vld [vmem:[%s237 + $0xf50] sm:$0xff]
        %v821 = vld [vmem:[%s237 + $0xf58] sm:$0xff]
        %v822 = vld [vmem:[%s237 + $0xf60] sm:$0xff]
        %v823 = vld [vmem:[%s237 + $0xf68] sm:$0xff]
        %v824 = vld [vmem:[%s237 + $0xf70] sm:$0xff]
        %v825 = vld [vmem:[%s237 + $0xf78] sm:$0xff]
        %v826 = vld [vmem:[%s237 + $0xf80] sm:$0xff]
        %v827 = vld [vmem:[%s237 + $0xf88] sm:$0xff]
        %v828 = vld [vmem:[%s237 + $0xf90] sm:$0xff]
        %v829 = vld [vmem:[%s237 + $0xf98] sm:$0xff]
        %v830 = vld [vmem:[%s237 + $0xfa0] sm:$0xff]
        %v831 = vld [vmem:[%s237 + $0xfa8] sm:$0xff]
        %v832 = vld [vmem:[%s237 + $0xfb0] sm:$0xff]
        %v833 = vld [vmem:[%s237 + $0xfb8] sm:$0xff]
        %v834 = vld [vmem:[%s237 + $0xfc0] sm:$0xff]
        %v835 = vld [vmem:[%s237 + $0xfc8] sm:$0xff]
        %v836 = vld [vmem:[%s237 + $0xfd0] sm:$0xff]
        %v837 = vld [vmem:[%s237 + $0xfd8] sm:$0xff]
        %v838 = vld [vmem:[%s237 + $0xfe0] sm:$0xff]
        %v839 = vld [vmem:[%s237 + $0xfe8] sm:$0xff]
        %v840 = vld [vmem:[%s237 + $0xff0] sm:$0xff]
        %v841 = vld [vmem:[%s237 + $0xff8] sm:$0xff]
        %v842 = vld [vmem:[%s237 + $0x1000] sm:$0xff]
        %v843 = vld [vmem:[%s237 + $0x1008] sm:$0xff]
        %v844 = vld [vmem:[%s237 + $0x1010] sm:$0xff]
        %v845 = vld [vmem:[%s237 + $0x1018] sm:$0xff]
        %v846 = vld [vmem:[%s237 + $0x1020] sm:$0xff]
        %v847 = vld [vmem:[%s237 + $0x1028] sm:$0xff]
        %v848 = vld [vmem:[%s237 + $0x1030] sm:$0xff]
        %v849 = vld [vmem:[%s237 + $0x1038] sm:$0xff]
        %v850 = vld [vmem:[%s237 + $0x1040] sm:$0xff]
        %v851 = vld [vmem:[%s237 + $0x1048] sm:$0xff]
        %v852 = vld [vmem:[%s237 + $0x1050] sm:$0xff]
        %v853 = vld [vmem:[%s237 + $0x1058] sm:$0xff]
        %v854 = vld [vmem:[%s237 + $0x1060] sm:$0xff]
        %v855 = vld [vmem:[%s237 + $0x1068] sm:$0xff]
        %v856 = vld [vmem:[%s237 + $0x1070] sm:$0xff]
        %v857 = vld [vmem:[%s237 + $0x1078] sm:$0xff]
        %v858 = vld [vmem:[%s237 + $0x1080] sm:$0xff]
        %v859 = vld [vmem:[%s237 + $0x1088] sm:$0xff]
        %v860 = vld [vmem:[%s237 + $0x1090] sm:$0xff]
        %v861 = vld [vmem:[%s237 + $0x1098] sm:$0xff]
        %v862 = vld [vmem:[%s237 + $0x10a0] sm:$0xff]
        %v863 = vld [vmem:[%s237 + $0x10a8] sm:$0xff]
        %v864 = vld [vmem:[%s237 + $0x10b0] sm:$0xff]
        %v865 = vld [vmem:[%s237 + $0x10b8] sm:$0xff]
        %v866 = vld [vmem:[%s237 + $0x10c0] sm:$0xff]
        %v867 = vld [vmem:[%s237 + $0x10c8] sm:$0xff]
        %v868 = vld [vmem:[%s237 + $0x10d0] sm:$0xff]
        %v869 = vld [vmem:[%s237 + $0x10d8] sm:$0xff]
        %v870 = vld [vmem:[%s237 + $0x10e0] sm:$0xff]
        %v871 = vld [vmem:[%s237 + $0x10e8] sm:$0xff]
        %v872 = vld [vmem:[%s237 + $0x10f0] sm:$0xff]
        %v873 = vld [vmem:[%s237 + $0x10f8] sm:$0xff]
        %v874 = vld [vmem:[%s237 + $0x1100] sm:$0xff]
        %v875 = vld [vmem:[%s237 + $0x1108] sm:$0xff]
        %v876 = vld [vmem:[%s237 + $0x1110] sm:$0xff]
        %v877 = vld [vmem:[%s237 + $0x1118] sm:$0xff]
        %v878 = vld [vmem:[%s237 + $0x1120] sm:$0xff]
        %v879 = vld [vmem:[%s237 + $0x1128] sm:$0xff]
        %v880 = vld [vmem:[%s237 + $0x1130] sm:$0xff]
        %v881 = vld [vmem:[%s237 + $0x1138] sm:$0xff]
        %v882 = vld [vmem:[%s237 + $0x1140] sm:$0xff]
        %v883 = vld [vmem:[%s237 + $0x1148] sm:$0xff]
        %v884 = vld [vmem:[%s237 + $0x1150] sm:$0xff]
        %v885 = vld [vmem:[%s237 + $0x1158] sm:$0xff]
        %v886 = vld [vmem:[%s237 + $0x1160] sm:$0xff]
        %v887 = vld [vmem:[%s237 + $0x1168] sm:$0xff]
        %v888 = vld [vmem:[%s237 + $0x1170] sm:$0xff]
        %v889 = vld [vmem:[%s237 + $0x1178] sm:$0xff]
        %v890 = vld [vmem:[%s237 + $0x1180] sm:$0xff]
        %v891 = vld [vmem:[%s237 + $0x1188] sm:$0xff]
        %v892 = vld [vmem:[%s237 + $0x1190] sm:$0xff]
        %v893 = vld [vmem:[%s237 + $0x1198] sm:$0xff]
        %v894 = vld [vmem:[%s237 + $0x11a0] sm:$0xff]
        %v895 = vld [vmem:[%s237 + $0x11a8] sm:$0xff]
        %v896 = vld [vmem:[%s237 + $0x11b0] sm:$0xff]
        %v897 = vld [vmem:[%s237 + $0x11b8] sm:$0xff]
        %v898 = vld [vmem:[%s237 + $0x11c0] sm:$0xff]
        %v899 = vld [vmem:[%s237 + $0x11c8] sm:$0xff]
        %v900 = vld [vmem:[%s237 + $0x11d0] sm:$0xff]
        %v901 = vld [vmem:[%s237 + $0x11d8] sm:$0xff]
        %v902 = vld [vmem:[%s237 + $0x11e0] sm:$0xff]
        %v903 = vld [vmem:[%s237 + $0x11e8] sm:$0xff]
        %v904 = vld [vmem:[%s237 + $0x11f0] sm:$0xff]
        %v905 = vld [vmem:[%s237 + $0x11f8] sm:$0xff]
        %v906 = vld [vmem:[%s237 + $0x1200] sm:$0xff]
        %v907 = vld [vmem:[%s237 + $0x1208] sm:$0xff]
        %v908 = vld [vmem:[%s237 + $0x1210] sm:$0xff]
        %v909 = vld [vmem:[%s237 + $0x1218] sm:$0xff]
        %v910 = vld [vmem:[%s237 + $0x1220] sm:$0xff]
        %v911 = vld [vmem:[%s237 + $0x1228] sm:$0xff]
        %v912 = vld [vmem:[%s237 + $0x1230] sm:$0xff]
        %v913 = vld [vmem:[%s237 + $0x1238] sm:$0xff]
        %v914 = vld [vmem:[%s237 + $0x1240] sm:$0xff]
        %v915 = vld [vmem:[%s237 + $0x1248] sm:$0xff]
        %v916 = vld [vmem:[%s237 + $0x1250] sm:$0xff]
        %v917 = vld [vmem:[%s237 + $0x1258] sm:$0xff]
        %v918 = vld [vmem:[%s237 + $0x1260] sm:$0xff]
        %v919 = vld [vmem:[%s237 + $0x1268] sm:$0xff]
        %v920 = vld [vmem:[%s237 + $0x1270] sm:$0xff]
        %v921 = vld [vmem:[%s237 + $0x1278] sm:$0xff]
        %v922 = vld [vmem:[%s237 + $0x1280] sm:$0xff]
        %v923 = vld [vmem:[%s237 + $0x1288] sm:$0xff]
        %v924 = vld [vmem:[%s237 + $0x1290] sm:$0xff]
        %v925 = vld [vmem:[%s237 + $0x1298] sm:$0xff]
        %v926 = vld [vmem:[%s237 + $0x12a0] sm:$0xff]
        %v927 = vld [vmem:[%s237 + $0x12a8] sm:$0xff]
        %v928 = vld [vmem:[%s237 + $0x12b0] sm:$0xff]
        %v929 = vld [vmem:[%s237 + $0x12b8] sm:$0xff]
        %v930 = vld [vmem:[%s237 + $0x12c0] sm:$0xff]
        %v931 = vld [vmem:[%s237 + $0x12c8] sm:$0xff]
        %v932 = vld [vmem:[%s237 + $0x12d0] sm:$0xff]
        %v933 = vld [vmem:[%s237 + $0x12d8] sm:$0xff]
        %v934 = vld [vmem:[%s237 + $0x12e0] sm:$0xff]
        %v935 = vld [vmem:[%s237 + $0x12e8] sm:$0xff]
        %v936 = vld [vmem:[%s237 + $0x12f0] sm:$0xff]
        %v937 = vld [vmem:[%s237 + $0x12f8] sm:$0xff]
        %v938 = vld [vmem:[%s237 + $0x1300] sm:$0xff]
        %v939 = vld [vmem:[%s237 + $0x1308] sm:$0xff]
        %v940 = vld [vmem:[%s237 + $0x1310] sm:$0xff]
        %v941 = vld [vmem:[%s237 + $0x1318] sm:$0xff]
        %v942 = vld [vmem:[%s237 + $0x1320] sm:$0xff]
        %v943 = vld [vmem:[%s237 + $0x1328] sm:$0xff]
        %v944 = vld [vmem:[%s237 + $0x1330] sm:$0xff]
        %v945 = vld [vmem:[%s237 + $0x1338] sm:$0xff]
        %v946 = vld [vmem:[%s237 + $0x1340] sm:$0xff]
        %v947 = vld [vmem:[%s237 + $0x1348] sm:$0xff]
        %v948 = vld [vmem:[%s237 + $0x1350] sm:$0xff]
        %v949 = vld [vmem:[%s237 + $0x1358] sm:$0xff]
        %v950 = vld [vmem:[%s237 + $0x1360] sm:$0xff]
        %v951 = vld [vmem:[%s237 + $0x1368] sm:$0xff]
        %v952 = vld [vmem:[%s237 + $0x1370] sm:$0xff]
        %v953 = vld [vmem:[%s237 + $0x1378] sm:$0xff]
        %v954 = vld [vmem:[%s237 + $0x1380] sm:$0xff]
        %v955 = vld [vmem:[%s237 + $0x1388] sm:$0xff]
        %v956 = vld [vmem:[%s237 + $0x1390] sm:$0xff]
        %v957 = vld [vmem:[%s237 + $0x1398] sm:$0xff]
        %v958 = vld [vmem:[%s237 + $0x13a0] sm:$0xff]
        %v959 = vld [vmem:[%s237 + $0x13a8] sm:$0xff]
        %v960 = vld [vmem:[%s237 + $0x13b0] sm:$0xff]
        %v961 = vld [vmem:[%s237 + $0x13b8] sm:$0xff]
        %v962 = vld [vmem:[%s237 + $0x13c0] sm:$0xff]
        %v963 = vld [vmem:[%s237 + $0x13c8] sm:$0xff]
        %v964 = vld [vmem:[%s237 + $0x13d0] sm:$0xff]
        %v965 = vld [vmem:[%s237 + $0x13d8] sm:$0xff]
        %v966 = vld [vmem:[%s237 + $0x13e0] sm:$0xff]
        %v967 = vld [vmem:[%s237 + $0x13e8] sm:$0xff]
        %v968 = vld [vmem:[%s237 + $0x13f0] sm:$0xff]
        %v969 = vld [vmem:[%s237 + $0x13f8] sm:$0xff]
        %v970 = vld [vmem:[%s237 + $0x1400] sm:$0xff]
        %v971 = vld [vmem:[%s237 + $0x1408] sm:$0xff]
        %v972 = vld [vmem:[%s237 + $0x1410] sm:$0xff]
        %v973 = vld [vmem:[%s237 + $0x1418] sm:$0xff]
        %v974 = vld [vmem:[%s237 + $0x1420] sm:$0xff]
        %v975 = vld [vmem:[%s237 + $0x1428] sm:$0xff]
        %v976 = vld [vmem:[%s237 + $0x1430] sm:$0xff]
        %v977 = vld [vmem:[%s237 + $0x1438] sm:$0xff]
        %v978 = vld [vmem:[%s237 + $0x1440] sm:$0xff]
        %v979 = vld [vmem:[%s237 + $0x1448] sm:$0xff]
        %v980 = vld [vmem:[%s237 + $0x1450] sm:$0xff]
        %v981 = vld [vmem:[%s237 + $0x1458] sm:$0xff]
        %v982 = vld [vmem:[%s237 + $0x1460] sm:$0xff]
        %v983 = vld [vmem:[%s237 + $0x1468] sm:$0xff]
        %v984 = vld [vmem:[%s237 + $0x1470] sm:$0xff]
        %v985 = vld [vmem:[%s237 + $0x1478] sm:$0xff]
        %v986 = vld [vmem:[%s237 + $0x1480] sm:$0xff]
        %v987 = vld [vmem:[%s237 + $0x1488] sm:$0xff]
        %v988 = vld [vmem:[%s237 + $0x1490] sm:$0xff]
        %v989 = vld [vmem:[%s237 + $0x1498] sm:$0xff]
        %v990 = vld [vmem:[%s237 + $0x14a0] sm:$0xff]
        %v991 = vld [vmem:[%s237 + $0x14a8] sm:$0xff]
        %v992 = vld [vmem:[%s237 + $0x14b0] sm:$0xff]
        %v993 = vld [vmem:[%s237 + $0x14b8] sm:$0xff]
        %v994 = vld [vmem:[%s237 + $0x14c0] sm:$0xff]
        %v995 = vld [vmem:[%s237 + $0x14c8] sm:$0xff]
        %v996 = vld [vmem:[%s237 + $0x14d0] sm:$0xff]
        %v997 = vld [vmem:[%s237 + $0x14d8] sm:$0xff]
        %v998 = vld [vmem:[%s237 + $0x14e0] sm:$0xff]
        %v999 = vld [vmem:[%s237 + $0x14e8] sm:$0xff]
        %v1000 = vld [vmem:[%s237 + $0x14f0] sm:$0xff]
        %v1001 = vld [vmem:[%s237 + $0x14f8] sm:$0xff]
        %v1002 = vld [vmem:[%s237 + $0x1500] sm:$0xff]
        %v1003 = vld [vmem:[%s237 + $0x1508] sm:$0xff]
        %v1004 = vld [vmem:[%s237 + $0x1510] sm:$0xff]
        %v1005 = vld [vmem:[%s237 + $0x1518] sm:$0xff]
        %v1006 = vld [vmem:[%s237 + $0x1520] sm:$0xff]
        %v1007 = vld [vmem:[%s237 + $0x1528] sm:$0xff]
        %v1008 = vld [vmem:[%s237 + $0x1530] sm:$0xff]
        %v1009 = vld [vmem:[%s237 + $0x1538] sm:$0xff]
        %v1010 = vld [vmem:[%s237 + $0x1540] sm:$0xff]
        %v1011 = vld [vmem:[%s237 + $0x1548] sm:$0xff]
        %v1012 = vld [vmem:[%s237 + $0x1550] sm:$0xff]
        %v1013 = vld [vmem:[%s237 + $0x1558] sm:$0xff]
        %v1014 = vld [vmem:[%s237 + $0x1560] sm:$0xff]
        %v1015 = vld [vmem:[%s237 + $0x1568] sm:$0xff]
        %v1016 = vld [vmem:[%s237 + $0x1570] sm:$0xff]
        %v1017 = vld [vmem:[%s237 + $0x1578] sm:$0xff]
        %v1018 = vld [vmem:[%s237 + $0x1580] sm:$0xff]
        %v1019 = vld [vmem:[%s237 + $0x1588] sm:$0xff]
        %v1020 = vld [vmem:[%s237 + $0x1590] sm:$0xff]
        %v1021 = vld [vmem:[%s237 + $0x1598] sm:$0xff]
        %v1022 = vld [vmem:[%s237 + $0x15a0] sm:$0xff]
        %v1023 = vld [vmem:[%s237 + $0x15a8] sm:$0xff]
        %v1024 = vld [vmem:[%s237 + $0x15b0] sm:$0xff]
        %v1025 = vld [vmem:[%s237 + $0x15b8] sm:$0xff]
        %v1026 = vld [vmem:[%s237 + $0x15c0] sm:$0xff]
        %v1027 = vld [vmem:[%s237 + $0x15c8] sm:$0xff]
        %v1028 = vld [vmem:[%s237 + $0x15d0] sm:$0xff]
        %v1029 = vld [vmem:[%s237 + $0x15d8] sm:$0xff]
        %v1030 = vld [vmem:[%s237 + $0x15e0] sm:$0xff]
        %v1031 = vld [vmem:[%s237 + $0x15e8] sm:$0xff]
        %v1032 = vld [vmem:[%s237 + $0x15f0] sm:$0xff]
        %v1033 = vld [vmem:[%s237 + $0x15f8] sm:$0xff]
        %v1034 = vld [vmem:[%s237 + $0x1600] sm:$0xff]
        %v1035 = vld [vmem:[%s237 + $0x1608] sm:$0xff]
        %v1036 = vld [vmem:[%s237 + $0x1610] sm:$0xff]
        %v1037 = vld [vmem:[%s237 + $0x1618] sm:$0xff]
        %v1038 = vld [vmem:[%s237 + $0x1620] sm:$0xff]
        %v1039 = vld [vmem:[%s237 + $0x1628] sm:$0xff]
        %v1040 = vld [vmem:[%s237 + $0x1630] sm:$0xff]
        %v1041 = vld [vmem:[%s237 + $0x1638] sm:$0xff]
        %v1042 = vld [vmem:[%s237 + $0x1640] sm:$0xff]
        %v1043 = vld [vmem:[%s237 + $0x1648] sm:$0xff]
        %v1044 = vld [vmem:[%s237 + $0x1650] sm:$0xff]
        %v1045 = vld [vmem:[%s237 + $0x1658] sm:$0xff]
        %v1046 = vld [vmem:[%s237 + $0x1660] sm:$0xff]
        %v1047 = vld [vmem:[%s237 + $0x1668] sm:$0xff]
        %v1048 = vld [vmem:[%s237 + $0x1670] sm:$0xff]
        %v1049 = vld [vmem:[%s237 + $0x1678] sm:$0xff]
        %v1050 = vld [vmem:[%s237 + $0x1680] sm:$0xff]
        %v1051 = vld [vmem:[%s237 + $0x1688] sm:$0xff]
        %v1052 = vld [vmem:[%s237 + $0x1690] sm:$0xff]
        %v1053 = vld [vmem:[%s237 + $0x1698] sm:$0xff]
        %v1054 = vld [vmem:[%s237 + $0x16a0] sm:$0xff]
        %v1055 = vld [vmem:[%s237 + $0x16a8] sm:$0xff]
        %v1056 = vld [vmem:[%s237 + $0x16b0] sm:$0xff]
        %v1057 = vld [vmem:[%s237 + $0x16b8] sm:$0xff]
        %v1058 = vld [vmem:[%s237 + $0x16c0] sm:$0xff]
        %v1059 = vld [vmem:[%s237 + $0x16c8] sm:$0xff]
        %v1060 = vld [vmem:[%s237 + $0x16d0] sm:$0xff]
        %v1061 = vld [vmem:[%s237 + $0x16d8] sm:$0xff]
        %v1062 = vld [vmem:[%s237 + $0x16e0] sm:$0xff]
        %v1063 = vld [vmem:[%s237 + $0x16e8] sm:$0xff]
        %v1064 = vld [vmem:[%s237 + $0x16f0] sm:$0xff]
        %v1065 = vld [vmem:[%s237 + $0x16f8] sm:$0xff]
        %v1066 = vld [vmem:[%s237 + $0x1700] sm:$0xff]
        %v1067 = vld [vmem:[%s237 + $0x1708] sm:$0xff]
        %v1068 = vld [vmem:[%s237 + $0x1710] sm:$0xff]
        %v1069 = vld [vmem:[%s237 + $0x1718] sm:$0xff]
        %v1070 = vld [vmem:[%s237 + $0x1720] sm:$0xff]
        %v1071 = vld [vmem:[%s237 + $0x1728] sm:$0xff]
        %v1072 = vld [vmem:[%s237 + $0x1730] sm:$0xff]
        %v1073 = vld [vmem:[%s237 + $0x1738] sm:$0xff]
        %v1074 = vld [vmem:[%s237 + $0x1740] sm:$0xff]
        %v1075 = vld [vmem:[%s237 + $0x1748] sm:$0xff]
        %v1076 = vld [vmem:[%s237 + $0x1750] sm:$0xff]
        %v1077 = vld [vmem:[%s237 + $0x1758] sm:$0xff]
        %v1078 = vld [vmem:[%s237 + $0x1760] sm:$0xff]
        %v1079 = vld [vmem:[%s237 + $0x1768] sm:$0xff]
        %v1080 = vld [vmem:[%s237 + $0x1770] sm:$0xff]
        %v1081 = vld [vmem:[%s237 + $0x1778] sm:$0xff]
        %v1082 = vld [vmem:[%s237 + $0x1780] sm:$0xff]
        %v1083 = vld [vmem:[%s237 + $0x1788] sm:$0xff]
        %v1084 = vld [vmem:[%s237 + $0x1790] sm:$0xff]
        %v1085 = vld [vmem:[%s237 + $0x1798] sm:$0xff]
        %v1086 = vld [vmem:[%s237 + $0x17a0] sm:$0xff]
        %v1087 = vld [vmem:[%s237 + $0x17a8] sm:$0xff]
        %v1088 = vld [vmem:[%s237 + $0x17b0] sm:$0xff]
        %v1089 = vld [vmem:[%s237 + $0x17b8] sm:$0xff]
        %v1090 = vld [vmem:[%s237 + $0x17c0] sm:$0xff]
        %v1091 = vld [vmem:[%s237 + $0x17c8] sm:$0xff]
        %v1092 = vld [vmem:[%s237 + $0x17d0] sm:$0xff]
        %v1093 = vld [vmem:[%s237 + $0x17d8] sm:$0xff]
        %v1094 = vld [vmem:[%s237 + $0x17e0] sm:$0xff]
        %v1095 = vld [vmem:[%s237 + $0x17e8] sm:$0xff]
        %v1096 = vld [vmem:[%s237 + $0x17f0] sm:$0xff]
        %v1097 = vld [vmem:[%s237 + $0x17f8] sm:$0xff]
        %v1098 = vld [vmem:[%s237 + $0x1800] sm:$0xff]
        %v1099 = vld [vmem:[%s237 + $0x1808] sm:$0xff]
        %v1100 = vld [vmem:[%s237 + $0x1810] sm:$0xff]
        %v1101 = vld [vmem:[%s237 + $0x1818] sm:$0xff]
        %v1102 = vld [vmem:[%s237 + $0x1820] sm:$0xff]
        %v1103 = vld [vmem:[%s237 + $0x1828] sm:$0xff]
        %v1104 = vld [vmem:[%s237 + $0x1830] sm:$0xff]
        %v1105 = vld [vmem:[%s237 + $0x1838] sm:$0xff]
        %v1106 = vld [vmem:[%s237 + $0x1840] sm:$0xff]
        %v1107 = vld [vmem:[%s237 + $0x1848] sm:$0xff]
        %v1108 = vld [vmem:[%s237 + $0x1850] sm:$0xff]
        %v1109 = vld [vmem:[%s237 + $0x1858] sm:$0xff]
        %v1110 = vld [vmem:[%s237 + $0x1860] sm:$0xff]
        %v1111 = vld [vmem:[%s237 + $0x1868] sm:$0xff]
        %v1112 = vld [vmem:[%s237 + $0x1870] sm:$0xff]
        %v1113 = vld [vmem:[%s237 + $0x1878] sm:$0xff]
        %v1114 = vld [vmem:[%s237 + $0x1880] sm:$0xff]
        %v1115 = vld [vmem:[%s237 + $0x1888] sm:$0xff]
        %v1116 = vld [vmem:[%s237 + $0x1890] sm:$0xff]
        %v1117 = vld [vmem:[%s237 + $0x1898] sm:$0xff]
        %v1118 = vld [vmem:[%s237 + $0x18a0] sm:$0xff]
        %v1119 = vld [vmem:[%s237 + $0x18a8] sm:$0xff]
        %v1120 = vld [vmem:[%s237 + $0x18b0] sm:$0xff]
        %v1121 = vld [vmem:[%s237 + $0x18b8] sm:$0xff]
        %v1122 = vld [vmem:[%s237 + $0x18c0] sm:$0xff]
        %v1123 = vld [vmem:[%s237 + $0x18c8] sm:$0xff]
        %v1124 = vld [vmem:[%s237 + $0x18d0] sm:$0xff]
        %v1125 = vld [vmem:[%s237 + $0x18d8] sm:$0xff]
        %v1126 = vld [vmem:[%s237 + $0x18e0] sm:$0xff]
        %v1127 = vld [vmem:[%s237 + $0x18e8] sm:$0xff]
        %v1128 = vld [vmem:[%s237 + $0x18f0] sm:$0xff]
        %v1129 = vld [vmem:[%s237 + $0x18f8] sm:$0xff]
        %v1130 = vld [vmem:[%s237 + $0x1900] sm:$0xff]
        %v1131 = vld [vmem:[%s237 + $0x1908] sm:$0xff]
        %v1132 = vld [vmem:[%s237 + $0x1910] sm:$0xff]
        %v1133 = vld [vmem:[%s237 + $0x1918] sm:$0xff]
        %v1134 = vld [vmem:[%s237 + $0x1920] sm:$0xff]
        %v1135 = vld [vmem:[%s237 + $0x1928] sm:$0xff]
        %v1136 = vld [vmem:[%s237 + $0x1930] sm:$0xff]
        %v1137 = vld [vmem:[%s237 + $0x1938] sm:$0xff]
        %v1138 = vld [vmem:[%s237 + $0x1940] sm:$0xff]
        %v1139 = vld [vmem:[%s237 + $0x1948] sm:$0xff]
        %v1140 = vld [vmem:[%s237 + $0x1950] sm:$0xff]
        %v1141 = vld [vmem:[%s237 + $0x1958] sm:$0xff]
        %v1142 = vld [vmem:[%s237 + $0x1960] sm:$0xff]
        %v1143 = vld [vmem:[%s237 + $0x1968] sm:$0xff]
        %v1144 = vld [vmem:[%s237 + $0x1970] sm:$0xff]
        %v1145 = vld [vmem:[%s237 + $0x1978] sm:$0xff]
        %v1146 = vld [vmem:[%s237 + $0x1980] sm:$0xff]
        %v1147 = vld [vmem:[%s237 + $0x1988] sm:$0xff]
        %v1148 = vld [vmem:[%s237 + $0x1990] sm:$0xff]
        %v1149 = vld [vmem:[%s237 + $0x1998] sm:$0xff]
        %v1150 = vld [vmem:[%s237 + $0x19a0] sm:$0xff]
        %v1151 = vld [vmem:[%s237 + $0x19a8] sm:$0xff]
        %v1152 = vld [vmem:[%s237 + $0x19b0] sm:$0xff]
        %v1153 = vld [vmem:[%s237 + $0x19b8] sm:$0xff]
        %v1154 = vld [vmem:[%s237 + $0x19c0] sm:$0xff]
        %v1155 = vld [vmem:[%s237 + $0x19c8] sm:$0xff]
        %v1156 = vld [vmem:[%s237 + $0x19d0] sm:$0xff]
        %v1157 = vld [vmem:[%s237 + $0x19d8] sm:$0xff]
        %v1158 = vld [vmem:[%s237 + $0x19e0] sm:$0xff]
        %v1159 = vld [vmem:[%s237 + $0x19e8] sm:$0xff]
        %v1160 = vld [vmem:[%s237 + $0x19f0] sm:$0xff]
        %v1161 = vld [vmem:[%s237 + $0x19f8] sm:$0xff]
        %v1162 = vld [vmem:[%s237 + $0x1a00] sm:$0xff]
        %v1163 = vld [vmem:[%s237 + $0x1a08] sm:$0xff]
        %v1164 = vld [vmem:[%s237 + $0x1a10] sm:$0xff]
        %v1165 = vld [vmem:[%s237 + $0x1a18] sm:$0xff]
        %v1166 = vld [vmem:[%s237 + $0x1a20] sm:$0xff]
        %v1167 = vld [vmem:[%s237 + $0x1a28] sm:$0xff]
        %v1168 = vld [vmem:[%s237 + $0x1a30] sm:$0xff]
        %v1169 = vld [vmem:[%s237 + $0x1a38] sm:$0xff]
        %v1170 = vld [vmem:[%s237 + $0x1a40] sm:$0xff]
        %v1171 = vld [vmem:[%s237 + $0x1a48] sm:$0xff]
        %v1172 = vld [vmem:[%s237 + $0x1a50] sm:$0xff]
        %v1173 = vld [vmem:[%s237 + $0x1a58] sm:$0xff]
        %v1174 = vld [vmem:[%s237 + $0x1a60] sm:$0xff]
        %v1175 = vld [vmem:[%s237 + $0x1a68] sm:$0xff]
        %v1176 = vld [vmem:[%s237 + $0x1a70] sm:$0xff]
        %v1177 = vld [vmem:[%s237 + $0x1a78] sm:$0xff]
        %v1178 = vld [vmem:[%s237 + $0x1a80] sm:$0xff]
        %v1179 = vld [vmem:[%s237 + $0x1a88] sm:$0xff]
        %v1180 = vld [vmem:[%s237 + $0x1a90] sm:$0xff]
        %v1181 = vld [vmem:[%s237 + $0x1a98] sm:$0xff]
        %v1182 = vld [vmem:[%s237 + $0x1aa0] sm:$0xff]
        %v1183 = vld [vmem:[%s237 + $0x1aa8] sm:$0xff]
        %v1184 = vld [vmem:[%s237 + $0x1ab0] sm:$0xff]
        %v1185 = vld [vmem:[%s237 + $0x1ab8] sm:$0xff]
        %v1186 = vld [vmem:[%s237 + $0x1ac0] sm:$0xff]
        %v1187 = vld [vmem:[%s237 + $0x1ac8] sm:$0xff]
        %v1188 = vld [vmem:[%s237 + $0x1ad0] sm:$0xff]
        %v1189 = vld [vmem:[%s237 + $0x1ad8] sm:$0xff]
        %v1190 = vld [vmem:[%s237 + $0x1ae0] sm:$0xff]
        %v1191 = vld [vmem:[%s237 + $0x1ae8] sm:$0xff]
        %v1192 = vld [vmem:[%s237 + $0x1af0] sm:$0xff]
        %v1193 = vld [vmem:[%s237 + $0x1af8] sm:$0xff]
        %v1194 = vld [vmem:[%s237 + $0x1b00] sm:$0xff]
        %v1195 = vld [vmem:[%s237 + $0x1b08] sm:$0xff]
        %v1196 = vld [vmem:[%s237 + $0x1b10] sm:$0xff]
        %v1197 = vld [vmem:[%s237 + $0x1b18] sm:$0xff]
        %v1198 = vld [vmem:[%s237 + $0x1b20] sm:$0xff]
        %v1199 = vld [vmem:[%s237 + $0x1b28] sm:$0xff]
        %v1200 = vld [vmem:[%s237 + $0x1b30] sm:$0xff]
        %v1201 = vld [vmem:[%s237 + $0x1b38] sm:$0xff]
        %v1202 = vld [vmem:[%s237 + $0x1b40] sm:$0xff]
        %v1203 = vld [vmem:[%s237 + $0x1b48] sm:$0xff]
        %v1204 = vld [vmem:[%s237 + $0x1b50] sm:$0xff]
        %v1205 = vld [vmem:[%s237 + $0x1b58] sm:$0xff]
        %v1206 = vld [vmem:[%s237 + $0x1b60] sm:$0xff]
        %v1207 = vld [vmem:[%s237 + $0x1b68] sm:$0xff]
        %v1208 = vld [vmem:[%s237 + $0x1b70] sm:$0xff]
        %v1209 = vld [vmem:[%s237 + $0x1b78] sm:$0xff]
        %v1210 = vld [vmem:[%s237 + $0x1b80] sm:$0xff]
        %v1211 = vld [vmem:[%s237 + $0x1b88] sm:$0xff]
        %v1212 = vld [vmem:[%s237 + $0x1b90] sm:$0xff]
        %v1213 = vld [vmem:[%s237 + $0x1b98] sm:$0xff]
        %v1214 = vld [vmem:[%s237 + $0x1ba0] sm:$0xff]
        %v1215 = vld [vmem:[%s237 + $0x1ba8] sm:$0xff]
        %v1216 = vld [vmem:[%s237 + $0x1bb0] sm:$0xff]
        %v1217 = vld [vmem:[%s237 + $0x1bb8] sm:$0xff]
        %v1218 = vld [vmem:[%s237 + $0x1bc0] sm:$0xff]
        %v1219 = vld [vmem:[%s237 + $0x1bc8] sm:$0xff]
        %v1220 = vld [vmem:[%s237 + $0x1bd0] sm:$0xff]
        %v1221 = vld [vmem:[%s237 + $0x1bd8] sm:$0xff]
        %v1222 = vld [vmem:[%s237 + $0x1be0] sm:$0xff]
        %v1223 = vld [vmem:[%s237 + $0x1be8] sm:$0xff]
        %v1224 = vld [vmem:[%s237 + $0x1bf0] sm:$0xff]
        %v1225 = vld [vmem:[%s237 + $0x1bf8] sm:$0xff]
        %v1230 = vcombine.high %v326, %v326
        %v1232 = vunpack.c.l.s4 1966171168
        %v1233 = vunpack.c.0.s8 %v1232
        %v1234 = vlaneseq
        %v1235 = vshrl.u32 %v1234, 7
        %v1236 = vsub.s32 %v1233, %v1235
        %v1237 = vrot.slane %v326, %v1236
        %v1239 = vunpack.c.l.s4 1966171168
        %v1240 = vunpack.c.0.s8 %v1239
        %v1241 = vlaneseq
        %v1242 = vshrl.u32 %v1241, 7
        %v1243 = vsub.s32 %v1240, %v1242
        %v1244 = vrot.slane %v1230, %v1243
        %v1245 = vcombine.high %v1237, %v1237
        %v1246 = vcombine.high %v1244, %v1244
        %v1248 = vunpack.c.l.s4 1966171168
        %v1249 = vunpack.c.0.s8 %v1248
        %v1250 = vlaneseq
        %v1251 = vshrl.u32 %v1250, 7
        %v1252 = vsub.s32 %v1249, %v1251
        %v1253 = vrot.slane %v1237, %v1252
        %v1255 = vunpack.c.l.s4 1966171168
        %v1256 = vunpack.c.0.s8 %v1255
        %v1257 = vlaneseq
        %v1258 = vshrl.u32 %v1257, 7
        %v1259 = vsub.s32 %v1256, %v1258
        %v1260 = vrot.slane %v1244, %v1259
        %v1262 = vunpack.c.l.s4 1966171168
        %v1263 = vunpack.c.0.s8 %v1262
        %v1264 = vlaneseq
        %v1265 = vshrl.u32 %v1264, 7
        %v1266 = vsub.s32 %v1263, %v1265
        %v1267 = vrot.slane %v1245, %v1266
        %v1269 = vunpack.c.l.s4 1966171168
        %v1270 = vunpack.c.0.s8 %v1269
        %v1271 = vlaneseq
        %v1272 = vshrl.u32 %v1271, 7
        %v1273 = vsub.s32 %v1270, %v1272
        %v1274 = vrot.slane %v1246, %v1273
        %v1275 = vcombine.high %v1253, %v1253
        %v1276 = vcombine.high %v1260, %v1260
        %v1277 = vcombine.high %v1267, %v1267
        %v1278 = vcombine.high %v1274, %v1274
        %v1279 = vcombine.high %v327, %v327
        %v1281 = vunpack.c.l.s4 1966171168
        %v1282 = vunpack.c.0.s8 %v1281
        %v1283 = vlaneseq
        %v1284 = vshrl.u32 %v1283, 7
        %v1285 = vsub.s32 %v1282, %v1284
        %v1286 = vrot.slane %v327, %v1285
        %v1288 = vunpack.c.l.s4 1966171168
        %v1289 = vunpack.c.0.s8 %v1288
        %v1290 = vlaneseq
        %v1291 = vshrl.u32 %v1290, 7
        %v1292 = vsub.s32 %v1289, %v1291
        %v1293 = vrot.slane %v1279, %v1292
        %v1294 = vcombine.high %v1286, %v1286
        %v1295 = vcombine.high %v1293, %v1293
        %v1297 = vunpack.c.l.s4 1966171168
        %v1298 = vunpack.c.0.s8 %v1297
        %v1299 = vlaneseq
        %v1300 = vshrl.u32 %v1299, 7
        %v1301 = vsub.s32 %v1298, %v1300
        %v1302 = vrot.slane %v1286, %v1301
        %v1304 = vunpack.c.l.s4 1966171168
        %v1305 = vunpack.c.0.s8 %v1304
        %v1306 = vlaneseq
        %v1307 = vshrl.u32 %v1306, 7
        %v1308 = vsub.s32 %v1305, %v1307
        %v1309 = vrot.slane %v1293, %v1308
        %v1311 = vunpack.c.l.s4 1966171168
        %v1312 = vunpack.c.0.s8 %v1311
        %v1313 = vlaneseq
        %v1314 = vshrl.u32 %v1313, 7
        %v1315 = vsub.s32 %v1312, %v1314
        %v1316 = vrot.slane %v1294, %v1315
        %v1318 = vunpack.c.l.s4 1966171168
        %v1319 = vunpack.c.0.s8 %v1318
        %v1320 = vlaneseq
        %v1321 = vshrl.u32 %v1320, 7
        %v1322 = vsub.s32 %v1319, %v1321
        %v1323 = vrot.slane %v1295, %v1322
        %v1324 = vcombine.high %v1302, %v1302
        %v1325 = vcombine.high %v1309, %v1309
        %v1326 = vcombine.high %v1316, %v1316
        %v1327 = vcombine.high %v1323, %v1323
        %v1328 = vcombine.high %v328, %v328
        %v1330 = vunpack.c.l.s4 1966171168
        %v1331 = vunpack.c.0.s8 %v1330
        %v1332 = vlaneseq
        %v1333 = vshrl.u32 %v1332, 7
        %v1334 = vsub.s32 %v1331, %v1333
        %v1335 = vrot.slane %v328, %v1334
        %v1337 = vunpack.c.l.s4 1966171168
        %v1338 = vunpack.c.0.s8 %v1337
        %v1339 = vlaneseq
        %v1340 = vshrl.u32 %v1339, 7
        %v1341 = vsub.s32 %v1338, %v1340
        %v1342 = vrot.slane %v1328, %v1341
        %v1343 = vcombine.high %v1335, %v1335
        %v1344 = vcombine.high %v1342, %v1342
        %v1346 = vunpack.c.l.s4 1966171168
        %v1347 = vunpack.c.0.s8 %v1346
        %v1348 = vlaneseq
        %v1349 = vshrl.u32 %v1348, 7
        %v1350 = vsub.s32 %v1347, %v1349
        %v1351 = vrot.slane %v1335, %v1350
        %v1353 = vunpack.c.l.s4 1966171168
        %v1354 = vunpack.c.0.s8 %v1353
        %v1355 = vlaneseq
        %v1356 = vshrl.u32 %v1355, 7
        %v1357 = vsub.s32 %v1354, %v1356
        %v1358 = vrot.slane %v1342, %v1357
        %v1360 = vunpack.c.l.s4 1966171168
        %v1361 = vunpack.c.0.s8 %v1360
        %v1362 = vlaneseq
        %v1363 = vshrl.u32 %v1362, 7
        %v1364 = vsub.s32 %v1361, %v1363
        %v1365 = vrot.slane %v1343, %v1364
        %v1367 = vunpack.c.l.s4 1966171168
        %v1368 = vunpack.c.0.s8 %v1367
        %v1369 = vlaneseq
        %v1370 = vshrl.u32 %v1369, 7
        %v1371 = vsub.s32 %v1368, %v1370
        %v1372 = vrot.slane %v1344, %v1371
        %v1373 = vcombine.high %v1351, %v1351
        %v1374 = vcombine.high %v1358, %v1358
        %v1375 = vcombine.high %v1365, %v1365
        %v1376 = vcombine.high %v1372, %v1372
        %v1378 = vunpack.c.l.s4 1966171168
        %v1379 = vunpack.c.0.s8 %v1378
        %v1380 = vlaneseq
        %v1381 = vshrl.u32 %v1380, 7
        %v1382 = vsub.s32 %v1379, %v1381
        %v1383 = vrot.slane %v329, %v1382
        %v1384 = vcombine.high %v1383, %v1383
        %v1386 = vunpack.c.l.s4 1966171168
        %v1387 = vunpack.c.0.s8 %v1386
        %v1388 = vlaneseq
        %v1389 = vshrl.u32 %v1388, 7
        %v1390 = vsub.s32 %v1387, %v1389
        %v1391 = vrot.slane %v1383, %v1390
        %v1393 = vunpack.c.l.s4 1966171168
        %v1394 = vunpack.c.0.s8 %v1393
        %v1395 = vlaneseq
        %v1396 = vshrl.u32 %v1395, 7
        %v1397 = vsub.s32 %v1394, %v1396
        %v1398 = vrot.slane %v1384, %v1397
        %v1399 = vcombine.high %v1391, %v1391
        %v1400 = vcombine.high %v1398, %v1398
        %v2325 = vunpack.c.l.b16 %v330
        %v2326 = vunpack.c.h.b16 %v330
        %v2327 = vunpack.c.l.b16 %v331
        %v2328 = vunpack.c.h.b16 %v331
        %v2329 = vunpack.c.l.b16 %v332
        %v2330 = vunpack.c.h.b16 %v332
        %v2331 = vunpack.c.l.b16 %v333
        %v2332 = vunpack.c.h.b16 %v333
        %v2333 = vunpack.c.l.b16 %v334
        %v2334 = vunpack.c.h.b16 %v334
        %v2335 = vunpack.c.l.b16 %v335
        %v2336 = vunpack.c.h.b16 %v335
        %v2337 = vunpack.c.l.b16 %v336
        %v2338 = vunpack.c.h.b16 %v336
        %v2339 = vunpack.c.l.b16 %v337
        %v2340 = vunpack.c.h.b16 %v337
        %v2341 = vunpack.c.l.b16 %v338
        %v2342 = vunpack.c.h.b16 %v338
        %v2343 = vunpack.c.l.b16 %v339
        %v2344 = vunpack.c.h.b16 %v339
        %v2345 = vunpack.c.l.b16 %v340
        %v2346 = vunpack.c.h.b16 %v340
        %v2347 = vunpack.c.l.b16 %v341
        %v2348 = vunpack.c.h.b16 %v341
        %v2349 = vunpack.c.l.b16 %v342
        %v2350 = vunpack.c.h.b16 %v342
        %v2351 = vunpack.c.l.b16 %v343
        %v2352 = vunpack.c.h.b16 %v343
        %v2353 = vunpack.c.l.b16 %v344
        %v2354 = vunpack.c.h.b16 %v344
        %v2355 = vunpack.c.l.b16 %v345
        %v2356 = vunpack.c.h.b16 %v345
        %v2357 = vunpack.c.l.b16 %v346
        %v2358 = vunpack.c.h.b16 %v346
        %v2359 = vunpack.c.l.b16 %v347
        %v2360 = vunpack.c.h.b16 %v347
        %v2361 = vunpack.c.l.b16 %v348
        %v2362 = vunpack.c.h.b16 %v348
        %v2363 = vunpack.c.l.b16 %v349
        %v2364 = vunpack.c.h.b16 %v349
        %v2365 = vunpack.c.l.b16 %v350
        %v2366 = vunpack.c.h.b16 %v350
        %v2367 = vunpack.c.l.b16 %v351
        %v2368 = vunpack.c.h.b16 %v351
        %v2369 = vunpack.c.l.b16 %v352
        %v2370 = vunpack.c.h.b16 %v352
        %v2371 = vunpack.c.l.b16 %v353
        %v2372 = vunpack.c.h.b16 %v353
        %v2373 = vunpack.c.l.b16 %v354
        %v2374 = vunpack.c.h.b16 %v354
        %v2375 = vunpack.c.l.b16 %v355
        %v2376 = vunpack.c.h.b16 %v355
        %v2377 = vunpack.c.l.b16 %v356
        %v2378 = vunpack.c.h.b16 %v356
        %v2379 = vunpack.c.l.b16 %v357
        %v2380 = vunpack.c.h.b16 %v357
        %v2381 = vunpack.c.l.b16 %v358
        %v2382 = vunpack.c.h.b16 %v358
        %v2383 = vunpack.c.l.b16 %v359
        %v2384 = vunpack.c.h.b16 %v359
        %v2385 = vunpack.c.l.b16 %v360
        %v2386 = vunpack.c.h.b16 %v360
        %v2387 = vunpack.c.l.b16 %v361
        %v2388 = vunpack.c.h.b16 %v361
        %v2389 = vunpack.c.l.b16 %v362
        %v2390 = vunpack.c.h.b16 %v362
        %v2391 = vunpack.c.l.b16 %v363
        %v2392 = vunpack.c.h.b16 %v363
        %v2393 = vunpack.c.l.b16 %v364
        %v2394 = vunpack.c.h.b16 %v364
        %v2395 = vunpack.c.l.b16 %v365
        %v2396 = vunpack.c.h.b16 %v365
        %v2397 = vunpack.c.l.b16 %v366
        %v2398 = vunpack.c.h.b16 %v366
        %v2399 = vunpack.c.l.b16 %v367
        %v2400 = vunpack.c.h.b16 %v367
        %v2401 = vunpack.c.l.b16 %v368
        %v2402 = vunpack.c.h.b16 %v368
        %v2403 = vunpack.c.l.b16 %v369
        %v2404 = vunpack.c.h.b16 %v369
        %v2405 = vunpack.c.l.b16 %v370
        %v2406 = vunpack.c.h.b16 %v370
        %v2407 = vunpack.c.l.b16 %v371
        %v2408 = vunpack.c.h.b16 %v371
        %v2409 = vunpack.c.l.b16 %v372
        %v2410 = vunpack.c.h.b16 %v372
        %v2411 = vunpack.c.l.b16 %v373
        %v2412 = vunpack.c.h.b16 %v373
        %v2413 = vunpack.c.l.b16 %v374
        %v2414 = vunpack.c.h.b16 %v374
        %v2415 = vunpack.c.l.b16 %v375
        %v2416 = vunpack.c.h.b16 %v375
        %v2417 = vunpack.c.l.b16 %v376
        %v2418 = vunpack.c.h.b16 %v376
        %v2419 = vunpack.c.l.b16 %v377
        %v2420 = vunpack.c.h.b16 %v377
        %v2421 = vunpack.c.l.b16 %v378
        %v2422 = vunpack.c.h.b16 %v378
        %v2423 = vunpack.c.l.b16 %v379
        %v2424 = vunpack.c.h.b16 %v379
        %v2425 = vunpack.c.l.b16 %v380
        %v2426 = vunpack.c.h.b16 %v380
        %v2427 = vunpack.c.l.b16 %v381
        %v2428 = vunpack.c.h.b16 %v381
        %v2429 = vunpack.c.l.b16 %v382
        %v2430 = vunpack.c.h.b16 %v382
        %v2431 = vunpack.c.l.b16 %v383
        %v2432 = vunpack.c.h.b16 %v383
        %v2433 = vunpack.c.l.b16 %v384
        %v2434 = vunpack.c.h.b16 %v384
        %v2435 = vunpack.c.l.b16 %v385
        %v2436 = vunpack.c.h.b16 %v385
        %v2437 = vunpack.c.l.b16 %v386
        %v2438 = vunpack.c.h.b16 %v386
        %v2439 = vunpack.c.l.b16 %v387
        %v2440 = vunpack.c.h.b16 %v387
        %v2441 = vunpack.c.l.b16 %v388
        %v2442 = vunpack.c.h.b16 %v388
        %v2443 = vunpack.c.l.b16 %v389
        %v2444 = vunpack.c.h.b16 %v389
        %v2445 = vunpack.c.l.b16 %v390
        %v2446 = vunpack.c.h.b16 %v390
        %v2447 = vunpack.c.l.b16 %v391
        %v2448 = vunpack.c.h.b16 %v391
        %v2449 = vunpack.c.l.b16 %v392
        %v2450 = vunpack.c.h.b16 %v392
        %v2451 = vunpack.c.l.b16 %v393
        %v2452 = vunpack.c.h.b16 %v393
        %v2453 = vunpack.c.l.b16 %v394
        %v2454 = vunpack.c.h.b16 %v394
        %v2455 = vunpack.c.l.b16 %v395
        %v2456 = vunpack.c.h.b16 %v395
        %v2457 = vunpack.c.l.b16 %v396
        %v2458 = vunpack.c.h.b16 %v396
        %v2459 = vunpack.c.l.b16 %v397
        %v2460 = vunpack.c.h.b16 %v397
        %v2461 = vunpack.c.l.b16 %v398
        %v2462 = vunpack.c.h.b16 %v398
        %v2463 = vunpack.c.l.b16 %v399
        %v2464 = vunpack.c.h.b16 %v399
        %v2465 = vunpack.c.l.b16 %v400
        %v2466 = vunpack.c.h.b16 %v400
        %v2467 = vunpack.c.l.b16 %v401
        %v2468 = vunpack.c.h.b16 %v401
        %v2469 = vunpack.c.l.b16 %v402
        %v2470 = vunpack.c.h.b16 %v402
        %v2471 = vunpack.c.l.b16 %v403
        %v2472 = vunpack.c.h.b16 %v403
        %v2473 = vunpack.c.l.b16 %v404
        %v2474 = vunpack.c.h.b16 %v404
        %v2475 = vunpack.c.l.b16 %v405
        %v2476 = vunpack.c.h.b16 %v405
        %v2477 = vunpack.c.l.b16 %v406
        %v2478 = vunpack.c.h.b16 %v406
        %v2479 = vunpack.c.l.b16 %v407
        %v2480 = vunpack.c.h.b16 %v407
        %v2481 = vunpack.c.l.b16 %v408
        %v2482 = vunpack.c.h.b16 %v408
        %v2483 = vunpack.c.l.b16 %v409
        %v2484 = vunpack.c.h.b16 %v409
        %v2485 = vunpack.c.l.b16 %v410
        %v2486 = vunpack.c.h.b16 %v410
        %v2487 = vunpack.c.l.b16 %v411
        %v2488 = vunpack.c.h.b16 %v411
        %v2489 = vunpack.c.l.b16 %v412
        %v2490 = vunpack.c.h.b16 %v412
        %v2491 = vunpack.c.l.b16 %v413
        %v2492 = vunpack.c.h.b16 %v413
        %v2493 = vunpack.c.l.b16 %v414
        %v2494 = vunpack.c.h.b16 %v414
        %v2495 = vunpack.c.l.b16 %v415
        %v2496 = vunpack.c.h.b16 %v415
        %v2497 = vunpack.c.l.b16 %v416
        %v2498 = vunpack.c.h.b16 %v416
        %v2499 = vunpack.c.l.b16 %v417
        %v2500 = vunpack.c.h.b16 %v417
        %v2501 = vunpack.c.l.b16 %v418
        %v2502 = vunpack.c.h.b16 %v418
        %v2503 = vunpack.c.l.b16 %v419
        %v2504 = vunpack.c.h.b16 %v419
        %v2505 = vunpack.c.l.b16 %v420
        %v2506 = vunpack.c.h.b16 %v420
        %v2507 = vunpack.c.l.b16 %v421
        %v2508 = vunpack.c.h.b16 %v421
        %v2509 = vunpack.c.l.b16 %v422
        %v2510 = vunpack.c.h.b16 %v422
        %v2511 = vunpack.c.l.b16 %v423
        %v2512 = vunpack.c.h.b16 %v423
        %v2513 = vunpack.c.l.b16 %v424
        %v2514 = vunpack.c.h.b16 %v424
        %v2515 = vunpack.c.l.b16 %v425
        %v2516 = vunpack.c.h.b16 %v425
        %v2517 = vunpack.c.l.b16 %v426
        %v2518 = vunpack.c.h.b16 %v426
        %v2519 = vunpack.c.l.b16 %v427
        %v2520 = vunpack.c.h.b16 %v427
        %v2521 = vunpack.c.l.b16 %v428
        %v2522 = vunpack.c.h.b16 %v428
        %v2523 = vunpack.c.l.b16 %v429
        %v2524 = vunpack.c.h.b16 %v429
        %v2525 = vunpack.c.l.b16 %v430
        %v2526 = vunpack.c.h.b16 %v430
        %v2527 = vunpack.c.l.b16 %v431
        %v2528 = vunpack.c.h.b16 %v431
        %v2529 = vunpack.c.l.b16 %v432
        %v2530 = vunpack.c.h.b16 %v432
        %v2531 = vunpack.c.l.b16 %v433
        %v2532 = vunpack.c.h.b16 %v433
        %v2533 = vunpack.c.l.b16 %v434
        %v2534 = vunpack.c.h.b16 %v434
        %v2535 = vunpack.c.l.b16 %v435
        %v2536 = vunpack.c.h.b16 %v435
        %v2537 = vunpack.c.l.b16 %v436
        %v2538 = vunpack.c.h.b16 %v436
        %v2539 = vunpack.c.l.b16 %v437
        %v2540 = vunpack.c.h.b16 %v437
        %v2541 = vunpack.c.l.b16 %v438
        %v2542 = vunpack.c.h.b16 %v438
        %v2543 = vunpack.c.l.b16 %v439
        %v2544 = vunpack.c.h.b16 %v439
        %v2545 = vunpack.c.l.b16 %v440
        %v2546 = vunpack.c.h.b16 %v440
        %v2547 = vunpack.c.l.b16 %v441
        %v2548 = vunpack.c.h.b16 %v441
        %v2549 = vunpack.c.l.b16 %v442
        %v2550 = vunpack.c.h.b16 %v442
        %v2551 = vunpack.c.l.b16 %v443
        %v2552 = vunpack.c.h.b16 %v443
        %v2553 = vunpack.c.l.b16 %v444
        %v2554 = vunpack.c.h.b16 %v444
        %v2555 = vunpack.c.l.b16 %v445
        %v2556 = vunpack.c.h.b16 %v445
        %v2557 = vunpack.c.l.b16 %v446
        %v2558 = vunpack.c.h.b16 %v446
        %v2559 = vunpack.c.l.b16 %v447
        %v2560 = vunpack.c.h.b16 %v447
        %v2561 = vunpack.c.l.b16 %v448
        %v2562 = vunpack.c.h.b16 %v448
        %v2563 = vunpack.c.l.b16 %v449
        %v2564 = vunpack.c.h.b16 %v449
        %v2565 = vunpack.c.l.b16 %v450
        %v2566 = vunpack.c.h.b16 %v450
        %v2567 = vunpack.c.l.b16 %v451
        %v2568 = vunpack.c.h.b16 %v451
        %v2569 = vunpack.c.l.b16 %v452
        %v2570 = vunpack.c.h.b16 %v452
        %v2571 = vunpack.c.l.b16 %v453
        %v2572 = vunpack.c.h.b16 %v453
        %v2573 = vunpack.c.l.b16 %v454
        %v2574 = vunpack.c.h.b16 %v454
        %v2575 = vunpack.c.l.b16 %v455
        %v2576 = vunpack.c.h.b16 %v455
        %v2577 = vunpack.c.l.b16 %v456
        %v2578 = vunpack.c.h.b16 %v456
        %v2579 = vunpack.c.l.b16 %v457
        %v2580 = vunpack.c.h.b16 %v457
        %v2581 = vunpack.c.l.b16 %v458
        %v2582 = vunpack.c.h.b16 %v458
        %v2583 = vunpack.c.l.b16 %v459
        %v2584 = vunpack.c.h.b16 %v459
        %v2585 = vunpack.c.l.b16 %v460
        %v2586 = vunpack.c.h.b16 %v460
        %v2587 = vunpack.c.l.b16 %v461
        %v2588 = vunpack.c.h.b16 %v461
        %v2589 = vunpack.c.l.b16 %v462
        %v2590 = vunpack.c.h.b16 %v462
        %v2591 = vunpack.c.l.b16 %v463
        %v2592 = vunpack.c.h.b16 %v463
        %v2593 = vunpack.c.l.b16 %v464
        %v2594 = vunpack.c.h.b16 %v464
        %v2595 = vunpack.c.l.b16 %v465
        %v2596 = vunpack.c.h.b16 %v465
        %v2597 = vunpack.c.l.b16 %v466
        %v2598 = vunpack.c.h.b16 %v466
        %v2599 = vunpack.c.l.b16 %v467
        %v2600 = vunpack.c.h.b16 %v467
        %v2601 = vunpack.c.l.b16 %v468
        %v2602 = vunpack.c.h.b16 %v468
        %v2603 = vunpack.c.l.b16 %v469
        %v2604 = vunpack.c.h.b16 %v469
        %v2605 = vunpack.c.l.b16 %v470
        %v2606 = vunpack.c.h.b16 %v470
        %v2607 = vunpack.c.l.b16 %v471
        %v2608 = vunpack.c.h.b16 %v471
        %v2609 = vunpack.c.l.b16 %v472
        %v2610 = vunpack.c.h.b16 %v472
        %v2611 = vunpack.c.l.b16 %v473
        %v2612 = vunpack.c.h.b16 %v473
        %v2613 = vunpack.c.l.b16 %v474
        %v2614 = vunpack.c.h.b16 %v474
        %v2615 = vunpack.c.l.b16 %v475
        %v2616 = vunpack.c.h.b16 %v475
        %v2617 = vunpack.c.l.b16 %v476
        %v2618 = vunpack.c.h.b16 %v476
        %v2619 = vunpack.c.l.b16 %v477
        %v2620 = vunpack.c.h.b16 %v477
        %v2621 = vunpack.c.l.b16 %v478
        %v2622 = vunpack.c.h.b16 %v478
        %v2623 = vunpack.c.l.b16 %v479
        %v2624 = vunpack.c.h.b16 %v479
        %v2625 = vunpack.c.l.b16 %v480
        %v2626 = vunpack.c.h.b16 %v480
        %v2627 = vunpack.c.l.b16 %v481
        %v2628 = vunpack.c.h.b16 %v481
        %v2629 = vunpack.c.l.b16 %v482
        %v2630 = vunpack.c.h.b16 %v482
        %v2631 = vunpack.c.l.b16 %v483
        %v2632 = vunpack.c.h.b16 %v483
        %v2633 = vunpack.c.l.b16 %v484
        %v2634 = vunpack.c.h.b16 %v484
        %v2635 = vunpack.c.l.b16 %v485
        %v2636 = vunpack.c.h.b16 %v485
        %v2637 = vunpack.c.l.b16 %v486
        %v2638 = vunpack.c.h.b16 %v486
        %v2639 = vunpack.c.l.b16 %v487
        %v2640 = vunpack.c.h.b16 %v487
        %v2641 = vunpack.c.l.b16 %v488
        %v2642 = vunpack.c.h.b16 %v488
        %v2643 = vunpack.c.l.b16 %v489
        %v2644 = vunpack.c.h.b16 %v489
        %v2645 = vunpack.c.l.b16 %v490
        %v2646 = vunpack.c.h.b16 %v490
        %v2647 = vunpack.c.l.b16 %v491
        %v2648 = vunpack.c.h.b16 %v491
        %v2649 = vunpack.c.l.b16 %v492
        %v2650 = vunpack.c.h.b16 %v492
        %v2651 = vunpack.c.l.b16 %v493
        %v2652 = vunpack.c.h.b16 %v493
        %v2653 = vunpack.c.l.b16 %v494
        %v2654 = vunpack.c.h.b16 %v494
        %v2655 = vunpack.c.l.b16 %v495
        %v2656 = vunpack.c.h.b16 %v495
        %v2657 = vunpack.c.l.b16 %v496
        %v2658 = vunpack.c.h.b16 %v496
        %v2659 = vunpack.c.l.b16 %v497
        %v2660 = vunpack.c.h.b16 %v497
        %v2661 = vunpack.c.l.b16 %v498
        %v2662 = vunpack.c.h.b16 %v498
        %v2663 = vunpack.c.l.b16 %v499
        %v2664 = vunpack.c.h.b16 %v499
        %v2665 = vunpack.c.l.b16 %v500
        %v2666 = vunpack.c.h.b16 %v500
        %v2667 = vunpack.c.l.b16 %v501
        %v2668 = vunpack.c.h.b16 %v501
        %v2669 = vunpack.c.l.b16 %v502
        %v2670 = vunpack.c.h.b16 %v502
        %v2671 = vunpack.c.l.b16 %v503
        %v2672 = vunpack.c.h.b16 %v503
        %v2673 = vunpack.c.l.b16 %v504
        %v2674 = vunpack.c.h.b16 %v504
        %v2675 = vunpack.c.l.b16 %v505
        %v2676 = vunpack.c.h.b16 %v505
        %v2677 = vunpack.c.l.b16 %v506
        %v2678 = vunpack.c.h.b16 %v506
        %v2679 = vunpack.c.l.b16 %v507
        %v2680 = vunpack.c.h.b16 %v507
        %v2681 = vunpack.c.l.b16 %v508
        %v2682 = vunpack.c.h.b16 %v508
        %v2683 = vunpack.c.l.b16 %v509
        %v2684 = vunpack.c.h.b16 %v509
        %v2685 = vunpack.c.l.b16 %v510
        %v2686 = vunpack.c.h.b16 %v510
        %v2687 = vunpack.c.l.b16 %v511
        %v2688 = vunpack.c.h.b16 %v511
        %v2689 = vunpack.c.l.b16 %v512
        %v2690 = vunpack.c.h.b16 %v512
        %v2691 = vunpack.c.l.b16 %v513
        %v2692 = vunpack.c.h.b16 %v513
        %v2693 = vunpack.c.l.b16 %v514
        %v2694 = vunpack.c.h.b16 %v514
        %v2695 = vunpack.c.l.b16 %v515
        %v2696 = vunpack.c.h.b16 %v515
        %v2697 = vunpack.c.l.b16 %v516
        %v2698 = vunpack.c.h.b16 %v516
        %v2699 = vunpack.c.l.b16 %v517
        %v2700 = vunpack.c.h.b16 %v517
        %v2701 = vunpack.c.l.b16 %v518
        %v2702 = vunpack.c.h.b16 %v518
        %v2703 = vunpack.c.l.b16 %v519
        %v2704 = vunpack.c.h.b16 %v519
        %v2705 = vunpack.c.l.b16 %v520
        %v2706 = vunpack.c.h.b16 %v520
        %v2707 = vunpack.c.l.b16 %v521
        %v2708 = vunpack.c.h.b16 %v521
        %v2709 = vunpack.c.l.b16 %v522
        %v2710 = vunpack.c.h.b16 %v522
        %v2711 = vunpack.c.l.b16 %v523
        %v2712 = vunpack.c.h.b16 %v523
        %v2713 = vunpack.c.l.b16 %v524
        %v2714 = vunpack.c.h.b16 %v524
        %v2715 = vunpack.c.l.b16 %v525
        %v2716 = vunpack.c.h.b16 %v525
        %v2717 = vunpack.c.l.b16 %v526
        %v2718 = vunpack.c.h.b16 %v526
        %v2719 = vunpack.c.l.b16 %v527
        %v2720 = vunpack.c.h.b16 %v527
        %v2721 = vunpack.c.l.b16 %v528
        %v2722 = vunpack.c.h.b16 %v528
        %v2723 = vunpack.c.l.b16 %v529
        %v2724 = vunpack.c.h.b16 %v529
        %v2725 = vunpack.c.l.b16 %v530
        %v2726 = vunpack.c.h.b16 %v530
        %v2727 = vunpack.c.l.b16 %v531
        %v2728 = vunpack.c.h.b16 %v531
        %v2729 = vunpack.c.l.b16 %v532
        %v2730 = vunpack.c.h.b16 %v532
        %v2731 = vunpack.c.l.b16 %v533
        %v2732 = vunpack.c.h.b16 %v533
        %v2733 = vunpack.c.l.b16 %v534
        %v2734 = vunpack.c.h.b16 %v534
        %v2735 = vunpack.c.l.b16 %v535
        %v2736 = vunpack.c.h.b16 %v535
        %v2737 = vunpack.c.l.b16 %v536
        %v2738 = vunpack.c.h.b16 %v536
        %v2739 = vunpack.c.l.b16 %v537
        %v2740 = vunpack.c.h.b16 %v537
        %v2741 = vunpack.c.l.b16 %v538
        %v2742 = vunpack.c.h.b16 %v538
        %v2743 = vunpack.c.l.b16 %v539
        %v2744 = vunpack.c.h.b16 %v539
        %v2745 = vunpack.c.l.b16 %v540
        %v2746 = vunpack.c.h.b16 %v540
        %v2747 = vunpack.c.l.b16 %v541
        %v2748 = vunpack.c.h.b16 %v541
        %v2749 = vunpack.c.l.b16 %v542
        %v2750 = vunpack.c.h.b16 %v542
        %v2751 = vunpack.c.l.b16 %v543
        %v2752 = vunpack.c.h.b16 %v543
        %v2753 = vunpack.c.l.b16 %v544
        %v2754 = vunpack.c.h.b16 %v544
        %v2755 = vunpack.c.l.b16 %v545
        %v2756 = vunpack.c.h.b16 %v545
        %v2757 = vunpack.c.l.b16 %v546
        %v2758 = vunpack.c.h.b16 %v546
        %v2759 = vunpack.c.l.b16 %v547
        %v2760 = vunpack.c.h.b16 %v547
        %v2761 = vunpack.c.l.b16 %v548
        %v2762 = vunpack.c.h.b16 %v548
        %v2763 = vunpack.c.l.b16 %v549
        %v2764 = vunpack.c.h.b16 %v549
        %v2765 = vunpack.c.l.b16 %v550
        %v2766 = vunpack.c.h.b16 %v550
        %v2767 = vunpack.c.l.b16 %v551
        %v2768 = vunpack.c.h.b16 %v551
        %v2769 = vunpack.c.l.b16 %v552
        %v2770 = vunpack.c.h.b16 %v552
        %v2771 = vunpack.c.l.b16 %v553
        %v2772 = vunpack.c.h.b16 %v553
        %v2773 = vunpack.c.l.b16 %v554
        %v2774 = vunpack.c.h.b16 %v554
        %v2775 = vunpack.c.l.b16 %v555
        %v2776 = vunpack.c.h.b16 %v555
        %v2777 = vunpack.c.l.b16 %v556
        %v2778 = vunpack.c.h.b16 %v556
        %v2779 = vunpack.c.l.b16 %v557
        %v2780 = vunpack.c.h.b16 %v557
        %v2781 = vunpack.c.l.b16 %v558
        %v2782 = vunpack.c.h.b16 %v558
        %v2783 = vunpack.c.l.b16 %v559
        %v2784 = vunpack.c.h.b16 %v559
        %v2785 = vunpack.c.l.b16 %v560
        %v2786 = vunpack.c.h.b16 %v560
        %v2787 = vunpack.c.l.b16 %v561
        %v2788 = vunpack.c.h.b16 %v561
        %v2789 = vunpack.c.l.b16 %v562
        %v2790 = vunpack.c.h.b16 %v562
        %v2791 = vunpack.c.l.b16 %v563
        %v2792 = vunpack.c.h.b16 %v563
        %v2793 = vunpack.c.l.b16 %v564
        %v2794 = vunpack.c.h.b16 %v564
        %v2795 = vunpack.c.l.b16 %v565
        %v2796 = vunpack.c.h.b16 %v565
        %v2797 = vunpack.c.l.b16 %v566
        %v2798 = vunpack.c.h.b16 %v566
        %v2799 = vunpack.c.l.b16 %v567
        %v2800 = vunpack.c.h.b16 %v567
        %v2801 = vunpack.c.l.b16 %v568
        %v2802 = vunpack.c.h.b16 %v568
        %v2803 = vunpack.c.l.b16 %v569
        %v2804 = vunpack.c.h.b16 %v569
        %v2805 = vunpack.c.l.b16 %v570
        %v2806 = vunpack.c.h.b16 %v570
        %v2807 = vunpack.c.l.b16 %v571
        %v2808 = vunpack.c.h.b16 %v571
        %v2809 = vunpack.c.l.b16 %v572
        %v2810 = vunpack.c.h.b16 %v572
        %v2811 = vunpack.c.l.b16 %v573
        %v2812 = vunpack.c.h.b16 %v573
        %v2813 = vunpack.c.l.b16 %v574
        %v2814 = vunpack.c.h.b16 %v574
        %v2815 = vunpack.c.l.b16 %v575
        %v2816 = vunpack.c.h.b16 %v575
        %v2817 = vunpack.c.l.b16 %v576
        %v2818 = vunpack.c.h.b16 %v576
        %v2819 = vunpack.c.l.b16 %v577
        %v2820 = vunpack.c.h.b16 %v577
        %v2821 = vunpack.c.l.b16 %v578
        %v2822 = vunpack.c.h.b16 %v578
        %v2823 = vunpack.c.l.b16 %v579
        %v2824 = vunpack.c.h.b16 %v579
        %v2825 = vunpack.c.l.b16 %v580
        %v2826 = vunpack.c.h.b16 %v580
        %v2827 = vunpack.c.l.b16 %v581
        %v2828 = vunpack.c.h.b16 %v581
        %v2829 = vunpack.c.l.b16 %v582
        %v2830 = vunpack.c.h.b16 %v582
        %v2831 = vunpack.c.l.b16 %v583
        %v2832 = vunpack.c.h.b16 %v583
        %v2833 = vunpack.c.l.b16 %v584
        %v2834 = vunpack.c.h.b16 %v584
        %v2835 = vunpack.c.l.b16 %v585
        %v2836 = vunpack.c.h.b16 %v585
        %v2837 = vunpack.c.l.b16 %v586
        %v2838 = vunpack.c.h.b16 %v586
        %v2839 = vunpack.c.l.b16 %v587
        %v2840 = vunpack.c.h.b16 %v587
        %v2841 = vunpack.c.l.b16 %v588
        %v2842 = vunpack.c.h.b16 %v588
        %v2843 = vunpack.c.l.b16 %v589
        %v2844 = vunpack.c.h.b16 %v589
        %v2845 = vunpack.c.l.b16 %v590
        %v2846 = vunpack.c.h.b16 %v590
        %v2847 = vunpack.c.l.b16 %v591
        %v2848 = vunpack.c.h.b16 %v591
        %v2849 = vunpack.c.l.b16 %v592
        %v2850 = vunpack.c.h.b16 %v592
        %v2851 = vunpack.c.l.b16 %v593
        %v2852 = vunpack.c.h.b16 %v593
        %v2853 = vunpack.c.l.b16 %v594
        %v2854 = vunpack.c.h.b16 %v594
        %v2855 = vunpack.c.l.b16 %v595
        %v2856 = vunpack.c.h.b16 %v595
        %v2857 = vunpack.c.l.b16 %v596
        %v2858 = vunpack.c.h.b16 %v596
        %v2859 = vunpack.c.l.b16 %v597
        %v2860 = vunpack.c.h.b16 %v597
        %v2861 = vunpack.c.l.b16 %v598
        %v2862 = vunpack.c.h.b16 %v598
        %v2863 = vunpack.c.l.b16 %v599
        %v2864 = vunpack.c.h.b16 %v599
        %v2865 = vunpack.c.l.b16 %v600
        %v2866 = vunpack.c.h.b16 %v600
        %v2867 = vunpack.c.l.b16 %v601
        %v2868 = vunpack.c.h.b16 %v601
        %v2869 = vunpack.c.l.b16 %v602
        %v2870 = vunpack.c.h.b16 %v602
        %v2871 = vunpack.c.l.b16 %v603
        %v2872 = vunpack.c.h.b16 %v603
        %v2873 = vunpack.c.l.b16 %v604
        %v2874 = vunpack.c.h.b16 %v604
        %v2875 = vunpack.c.l.b16 %v605
        %v2876 = vunpack.c.h.b16 %v605
        %v2877 = vunpack.c.l.b16 %v606
        %v2878 = vunpack.c.h.b16 %v606
        %v2879 = vunpack.c.l.b16 %v607
        %v2880 = vunpack.c.h.b16 %v607
        %v2881 = vunpack.c.l.b16 %v608
        %v2882 = vunpack.c.h.b16 %v608
        %v2883 = vunpack.c.l.b16 %v609
        %v2884 = vunpack.c.h.b16 %v609
        %v2885 = vunpack.c.l.b16 %v610
        %v2886 = vunpack.c.h.b16 %v610
        %v2887 = vunpack.c.l.b16 %v611
        %v2888 = vunpack.c.h.b16 %v611
        %v2889 = vunpack.c.l.b16 %v612
        %v2890 = vunpack.c.h.b16 %v612
        %v2891 = vunpack.c.l.b16 %v613
        %v2892 = vunpack.c.h.b16 %v613
        %v2893 = vunpack.c.l.b16 %v614
        %v2894 = vunpack.c.h.b16 %v614
        %v2895 = vunpack.c.l.b16 %v615
        %v2896 = vunpack.c.h.b16 %v615
        %v2897 = vunpack.c.l.b16 %v616
        %v2898 = vunpack.c.h.b16 %v616
        %v2899 = vunpack.c.l.b16 %v617
        %v2900 = vunpack.c.h.b16 %v617
        %v2901 = vunpack.c.l.b16 %v618
        %v2902 = vunpack.c.h.b16 %v618
        %v2903 = vunpack.c.l.b16 %v619
        %v2904 = vunpack.c.h.b16 %v619
        %v2905 = vunpack.c.l.b16 %v620
        %v2906 = vunpack.c.h.b16 %v620
        %v2907 = vunpack.c.l.b16 %v621
        %v2908 = vunpack.c.h.b16 %v621
        %v2909 = vunpack.c.l.b16 %v622
        %v2910 = vunpack.c.h.b16 %v622
        %v2911 = vunpack.c.l.b16 %v623
        %v2912 = vunpack.c.h.b16 %v623
        %v2913 = vunpack.c.l.b16 %v624
        %v2914 = vunpack.c.h.b16 %v624
        %v2915 = vunpack.c.l.b16 %v625
        %v2916 = vunpack.c.h.b16 %v625
        %v2917 = vunpack.c.l.b16 %v626
        %v2918 = vunpack.c.h.b16 %v626
        %v2919 = vunpack.c.l.b16 %v627
        %v2920 = vunpack.c.h.b16 %v627
        %v2921 = vunpack.c.l.b16 %v628
        %v2922 = vunpack.c.h.b16 %v628
        %v2923 = vunpack.c.l.b16 %v629
        %v2924 = vunpack.c.h.b16 %v629
        %v2925 = vunpack.c.l.b16 %v630
        %v2926 = vunpack.c.h.b16 %v630
        %v2927 = vunpack.c.l.b16 %v631
        %v2928 = vunpack.c.h.b16 %v631
        %v2929 = vunpack.c.l.b16 %v632
        %v2930 = vunpack.c.h.b16 %v632
        %v2931 = vunpack.c.l.b16 %v633
        %v2932 = vunpack.c.h.b16 %v633
        %v2933 = vunpack.c.l.b16 %v634
        %v2934 = vunpack.c.h.b16 %v634
        %v2935 = vunpack.c.l.b16 %v635
        %v2936 = vunpack.c.h.b16 %v635
        %v2937 = vunpack.c.l.b16 %v636
        %v2938 = vunpack.c.h.b16 %v636
        %v2939 = vunpack.c.l.b16 %v637
        %v2940 = vunpack.c.h.b16 %v637
        %v2941 = vunpack.c.l.b16 %v638
        %v2942 = vunpack.c.h.b16 %v638
        %v2943 = vunpack.c.l.b16 %v639
        %v2944 = vunpack.c.h.b16 %v639
        %v2945 = vunpack.c.l.b16 %v640
        %v2946 = vunpack.c.h.b16 %v640
        %v2947 = vunpack.c.l.b16 %v641
        %v2948 = vunpack.c.h.b16 %v641
        %v2949 = vunpack.c.l.b16 %v642
        %v2950 = vunpack.c.h.b16 %v642
        %v2951 = vunpack.c.l.b16 %v643
        %v2952 = vunpack.c.h.b16 %v643
        %v2953 = vunpack.c.l.b16 %v644
        %v2954 = vunpack.c.h.b16 %v644
        %v2955 = vunpack.c.l.b16 %v645
        %v2956 = vunpack.c.h.b16 %v645
        %v2957 = vunpack.c.l.b16 %v646
        %v2958 = vunpack.c.h.b16 %v646
        %v2959 = vunpack.c.l.b16 %v647
        %v2960 = vunpack.c.h.b16 %v647
        %v2961 = vunpack.c.l.b16 %v648
        %v2962 = vunpack.c.h.b16 %v648
        %v2963 = vunpack.c.l.b16 %v649
        %v2964 = vunpack.c.h.b16 %v649
        %v2965 = vunpack.c.l.b16 %v650
        %v2966 = vunpack.c.h.b16 %v650
        %v2967 = vunpack.c.l.b16 %v651
        %v2968 = vunpack.c.h.b16 %v651
        %v2969 = vunpack.c.l.b16 %v652
        %v2970 = vunpack.c.h.b16 %v652
        %v2971 = vunpack.c.l.b16 %v653
        %v2972 = vunpack.c.h.b16 %v653
        %v2973 = vunpack.c.l.b16 %v654
        %v2974 = vunpack.c.h.b16 %v654
        %v2975 = vunpack.c.l.b16 %v655
        %v2976 = vunpack.c.h.b16 %v655
        %v2977 = vunpack.c.l.b16 %v656
        %v2978 = vunpack.c.h.b16 %v656
        %v2979 = vunpack.c.l.b16 %v657
        %v2980 = vunpack.c.h.b16 %v657
        %v2981 = vunpack.c.l.b16 %v658
        %v2982 = vunpack.c.h.b16 %v658
        %v2983 = vunpack.c.l.b16 %v659
        %v2984 = vunpack.c.h.b16 %v659
        %v2985 = vunpack.c.l.b16 %v660
        %v2986 = vunpack.c.h.b16 %v660
        %v2987 = vunpack.c.l.b16 %v661
        %v2988 = vunpack.c.h.b16 %v661
        %v2989 = vunpack.c.l.b16 %v662
        %v2990 = vunpack.c.h.b16 %v662
        %v2991 = vunpack.c.l.b16 %v663
        %v2992 = vunpack.c.h.b16 %v663
        %v2993 = vunpack.c.l.b16 %v664
        %v2994 = vunpack.c.h.b16 %v664
        %v2995 = vunpack.c.l.b16 %v665
        %v2996 = vunpack.c.h.b16 %v665
        %v2997 = vunpack.c.l.b16 %v666
        %v2998 = vunpack.c.h.b16 %v666
        %v2999 = vunpack.c.l.b16 %v667
        %v3000 = vunpack.c.h.b16 %v667
        %v3001 = vunpack.c.l.b16 %v668
        %v3002 = vunpack.c.h.b16 %v668
        %v3003 = vunpack.c.l.b16 %v669
        %v3004 = vunpack.c.h.b16 %v669
        %v3005 = vunpack.c.l.b16 %v670
        %v3006 = vunpack.c.h.b16 %v670
        %v3007 = vunpack.c.l.b16 %v671
        %v3008 = vunpack.c.h.b16 %v671
        %v3009 = vunpack.c.l.b16 %v672
        %v3010 = vunpack.c.h.b16 %v672
        %v3011 = vunpack.c.l.b16 %v673
        %v3012 = vunpack.c.h.b16 %v673
        %v3013 = vunpack.c.l.b16 %v674
        %v3014 = vunpack.c.h.b16 %v674
        %v3015 = vunpack.c.l.b16 %v675
        %v3016 = vunpack.c.h.b16 %v675
        %v3017 = vunpack.c.l.b16 %v676
        %v3018 = vunpack.c.h.b16 %v676
        %v3019 = vunpack.c.l.b16 %v677
        %v3020 = vunpack.c.h.b16 %v677
        %v3021 = vunpack.c.l.b16 %v678
        %v3022 = vunpack.c.h.b16 %v678
        %v3023 = vunpack.c.l.b16 %v679
        %v3024 = vunpack.c.h.b16 %v679
        %v3025 = vunpack.c.l.b16 %v680
        %v3026 = vunpack.c.h.b16 %v680
        %v3027 = vunpack.c.l.b16 %v681
        %v3028 = vunpack.c.h.b16 %v681
        %v3029 = vunpack.c.l.b16 %v682
        %v3030 = vunpack.c.h.b16 %v682
        %v3031 = vunpack.c.l.b16 %v683
        %v3032 = vunpack.c.h.b16 %v683
        %v3033 = vunpack.c.l.b16 %v684
        %v3034 = vunpack.c.h.b16 %v684
        %v3035 = vunpack.c.l.b16 %v685
        %v3036 = vunpack.c.h.b16 %v685
        %v3037 = vunpack.c.l.b16 %v686
        %v3038 = vunpack.c.h.b16 %v686
        %v3039 = vunpack.c.l.b16 %v687
        %v3040 = vunpack.c.h.b16 %v687
        %v3041 = vunpack.c.l.b16 %v688
        %v3042 = vunpack.c.h.b16 %v688
        %v3043 = vunpack.c.l.b16 %v689
        %v3044 = vunpack.c.h.b16 %v689
        %v3045 = vunpack.c.l.b16 %v690
        %v3046 = vunpack.c.h.b16 %v690
        %v3047 = vunpack.c.l.b16 %v691
        %v3048 = vunpack.c.h.b16 %v691
        %v3049 = vunpack.c.l.b16 %v692
        %v3050 = vunpack.c.h.b16 %v692
        %v3051 = vunpack.c.l.b16 %v693
        %v3052 = vunpack.c.h.b16 %v693
        %v3053 = vunpack.c.l.b16 %v694
        %v3054 = vunpack.c.h.b16 %v694
        %v3055 = vunpack.c.l.b16 %v695
        %v3056 = vunpack.c.h.b16 %v695
        %v3057 = vunpack.c.l.b16 %v696
        %v3058 = vunpack.c.h.b16 %v696
        %v3059 = vunpack.c.l.b16 %v697
        %v3060 = vunpack.c.h.b16 %v697
        %v3061 = vunpack.c.l.b16 %v698
        %v3062 = vunpack.c.h.b16 %v698
        %v3063 = vunpack.c.l.b16 %v699
        %v3064 = vunpack.c.h.b16 %v699
        %v3065 = vunpack.c.l.b16 %v700
        %v3066 = vunpack.c.h.b16 %v700
        %v3067 = vunpack.c.l.b16 %v701
        %v3068 = vunpack.c.h.b16 %v701
        %v3069 = vunpack.c.l.b16 %v702
        %v3070 = vunpack.c.h.b16 %v702
        %v3071 = vunpack.c.l.b16 %v703
        %v3072 = vunpack.c.h.b16 %v703
        %v3073 = vunpack.c.l.b16 %v704
        %v3074 = vunpack.c.h.b16 %v704
        %v3075 = vunpack.c.l.b16 %v705
        %v3076 = vunpack.c.h.b16 %v705
        %v3077 = vunpack.c.l.b16 %v706
        %v3078 = vunpack.c.h.b16 %v706
        %v3079 = vunpack.c.l.b16 %v707
        %v3080 = vunpack.c.h.b16 %v707
        %v3081 = vunpack.c.l.b16 %v708
        %v3082 = vunpack.c.h.b16 %v708
        %v3083 = vunpack.c.l.b16 %v709
        %v3084 = vunpack.c.h.b16 %v709
        %v3085 = vunpack.c.l.b16 %v710
        %v3086 = vunpack.c.h.b16 %v710
        %v3087 = vunpack.c.l.b16 %v711
        %v3088 = vunpack.c.h.b16 %v711
        %v3089 = vunpack.c.l.b16 %v712
        %v3090 = vunpack.c.h.b16 %v712
        %v3091 = vunpack.c.l.b16 %v713
        %v3092 = vunpack.c.h.b16 %v713
        %v3093 = vunpack.c.l.b16 %v714
        %v3094 = vunpack.c.h.b16 %v714
        %v3095 = vunpack.c.l.b16 %v715
        %v3096 = vunpack.c.h.b16 %v715
        %v3097 = vunpack.c.l.b16 %v716
        %v3098 = vunpack.c.h.b16 %v716
        %v3099 = vunpack.c.l.b16 %v717
        %v3100 = vunpack.c.h.b16 %v717
        %v3101 = vunpack.c.l.b16 %v718
        %v3102 = vunpack.c.h.b16 %v718
        %v3103 = vunpack.c.l.b16 %v719
        %v3104 = vunpack.c.h.b16 %v719
        %v3105 = vunpack.c.l.b16 %v720
        %v3106 = vunpack.c.h.b16 %v720
        %v3107 = vunpack.c.l.b16 %v721
        %v3108 = vunpack.c.h.b16 %v721
        %v3109 = vunpack.c.l.b16 %v722
        %v3110 = vunpack.c.h.b16 %v722
        %v3111 = vunpack.c.l.b16 %v723
        %v3112 = vunpack.c.h.b16 %v723
        %v3113 = vunpack.c.l.b16 %v724
        %v3114 = vunpack.c.h.b16 %v724
        %v3115 = vunpack.c.l.b16 %v725
        %v3116 = vunpack.c.h.b16 %v725
        %v3117 = vunpack.c.l.b16 %v726
        %v3118 = vunpack.c.h.b16 %v726
        %v3119 = vunpack.c.l.b16 %v727
        %v3120 = vunpack.c.h.b16 %v727
        %v3121 = vunpack.c.l.b16 %v728
        %v3122 = vunpack.c.h.b16 %v728
        %v3123 = vunpack.c.l.b16 %v729
        %v3124 = vunpack.c.h.b16 %v729
        %v3125 = vunpack.c.l.b16 %v730
        %v3126 = vunpack.c.h.b16 %v730
        %v3127 = vunpack.c.l.b16 %v731
        %v3128 = vunpack.c.h.b16 %v731
        %v3129 = vunpack.c.l.b16 %v732
        %v3130 = vunpack.c.h.b16 %v732
        %v3131 = vunpack.c.l.b16 %v733
        %v3132 = vunpack.c.h.b16 %v733
        %v3133 = vunpack.c.l.b16 %v734
        %v3134 = vunpack.c.h.b16 %v734
        %v3135 = vunpack.c.l.b16 %v735
        %v3136 = vunpack.c.h.b16 %v735
        %v3137 = vunpack.c.l.b16 %v736
        %v3138 = vunpack.c.h.b16 %v736
        %v3139 = vunpack.c.l.b16 %v737
        %v3140 = vunpack.c.h.b16 %v737
        %v3141 = vunpack.c.l.b16 %v738
        %v3142 = vunpack.c.h.b16 %v738
        %v3143 = vunpack.c.l.b16 %v739
        %v3144 = vunpack.c.h.b16 %v739
        %v3145 = vunpack.c.l.b16 %v740
        %v3146 = vunpack.c.h.b16 %v740
        %v3147 = vunpack.c.l.b16 %v741
        %v3148 = vunpack.c.h.b16 %v741
        %v3149 = vunpack.c.l.b16 %v742
        %v3150 = vunpack.c.h.b16 %v742
        %v3151 = vunpack.c.l.b16 %v743
        %v3152 = vunpack.c.h.b16 %v743
        %v3153 = vunpack.c.l.b16 %v744
        %v3154 = vunpack.c.h.b16 %v744
        %v3155 = vunpack.c.l.b16 %v745
        %v3156 = vunpack.c.h.b16 %v745
        %v3157 = vunpack.c.l.b16 %v746
        %v3158 = vunpack.c.h.b16 %v746
        %v3159 = vunpack.c.l.b16 %v747
        %v3160 = vunpack.c.h.b16 %v747
        %v3161 = vunpack.c.l.b16 %v748
        %v3162 = vunpack.c.h.b16 %v748
        %v3163 = vunpack.c.l.b16 %v749
        %v3164 = vunpack.c.h.b16 %v749
        %v3165 = vunpack.c.l.b16 %v750
        %v3166 = vunpack.c.h.b16 %v750
        %v3167 = vunpack.c.l.b16 %v751
        %v3168 = vunpack.c.h.b16 %v751
        %v3169 = vunpack.c.l.b16 %v752
        %v3170 = vunpack.c.h.b16 %v752
        %v3171 = vunpack.c.l.b16 %v753
        %v3172 = vunpack.c.h.b16 %v753
        %v3173 = vunpack.c.l.b16 %v754
        %v3174 = vunpack.c.h.b16 %v754
        %v3175 = vunpack.c.l.b16 %v755
        %v3176 = vunpack.c.h.b16 %v755
        %v3177 = vunpack.c.l.b16 %v756
        %v3178 = vunpack.c.h.b16 %v756
        %v3179 = vunpack.c.l.b16 %v757
        %v3180 = vunpack.c.h.b16 %v757
        %v3181 = vunpack.c.l.b16 %v758
        %v3182 = vunpack.c.h.b16 %v758
        %v3183 = vunpack.c.l.b16 %v759
        %v3184 = vunpack.c.h.b16 %v759
        %v3185 = vunpack.c.l.b16 %v760
        %v3186 = vunpack.c.h.b16 %v760
        %v3187 = vunpack.c.l.b16 %v761
        %v3188 = vunpack.c.h.b16 %v761
        %v3189 = vunpack.c.l.b16 %v762
        %v3190 = vunpack.c.h.b16 %v762
        %v3191 = vunpack.c.l.b16 %v763
        %v3192 = vunpack.c.h.b16 %v763
        %v3193 = vunpack.c.l.b16 %v764
        %v3194 = vunpack.c.h.b16 %v764
        %v3195 = vunpack.c.l.b16 %v765
        %v3196 = vunpack.c.h.b16 %v765
        %v3197 = vunpack.c.l.b16 %v766
        %v3198 = vunpack.c.h.b16 %v766
        %v3199 = vunpack.c.l.b16 %v767
        %v3200 = vunpack.c.h.b16 %v767
        %v3201 = vunpack.c.l.b16 %v768
        %v3202 = vunpack.c.h.b16 %v768
        %v3203 = vunpack.c.l.b16 %v769
        %v3204 = vunpack.c.h.b16 %v769
        %v3205 = vunpack.c.l.b16 %v770
        %v3206 = vunpack.c.h.b16 %v770
        %v3207 = vunpack.c.l.b16 %v771
        %v3208 = vunpack.c.h.b16 %v771
        %v3209 = vunpack.c.l.b16 %v772
        %v3210 = vunpack.c.h.b16 %v772
        %v3211 = vunpack.c.l.b16 %v773
        %v3212 = vunpack.c.h.b16 %v773
        %v3213 = vunpack.c.l.b16 %v774
        %v3214 = vunpack.c.h.b16 %v774
        %v3215 = vunpack.c.l.b16 %v775
        %v3216 = vunpack.c.h.b16 %v775
        %v3217 = vunpack.c.l.b16 %v776
        %v3218 = vunpack.c.h.b16 %v776
        %v3219 = vunpack.c.l.b16 %v777
        %v3220 = vunpack.c.h.b16 %v777
        %v3221 = vunpack.c.l.b16 %v778
        %v3222 = vunpack.c.h.b16 %v778
        %v3223 = vunpack.c.l.b16 %v779
        %v3224 = vunpack.c.h.b16 %v779
        %v3225 = vunpack.c.l.b16 %v780
        %v3226 = vunpack.c.h.b16 %v780
        %v3227 = vunpack.c.l.b16 %v781
        %v3228 = vunpack.c.h.b16 %v781
        %v3229 = vunpack.c.l.b16 %v782
        %v3230 = vunpack.c.h.b16 %v782
        %v3231 = vunpack.c.l.b16 %v783
        %v3232 = vunpack.c.h.b16 %v783
        %v3233 = vunpack.c.l.b16 %v784
        %v3234 = vunpack.c.h.b16 %v784
        %v3235 = vunpack.c.l.b16 %v785
        %v3236 = vunpack.c.h.b16 %v785
        %v3237 = vunpack.c.l.b16 %v786
        %v3238 = vunpack.c.h.b16 %v786
        %v3239 = vunpack.c.l.b16 %v787
        %v3240 = vunpack.c.h.b16 %v787
        %v3241 = vunpack.c.l.b16 %v788
        %v3242 = vunpack.c.h.b16 %v788
        %v3243 = vunpack.c.l.b16 %v789
        %v3244 = vunpack.c.h.b16 %v789
        %v3245 = vunpack.c.l.b16 %v790
        %v3246 = vunpack.c.h.b16 %v790
        %v3247 = vunpack.c.l.b16 %v791
        %v3248 = vunpack.c.h.b16 %v791
        %v3249 = vunpack.c.l.b16 %v792
        %v3250 = vunpack.c.h.b16 %v792
        %v3251 = vunpack.c.l.b16 %v793
        %v3252 = vunpack.c.h.b16 %v793
        %v3253 = vunpack.c.l.b16 %v794
        %v3254 = vunpack.c.h.b16 %v794
        %v3255 = vunpack.c.l.b16 %v795
        %v3256 = vunpack.c.h.b16 %v795
        %v3257 = vunpack.c.l.b16 %v796
        %v3258 = vunpack.c.h.b16 %v796
        %v3259 = vunpack.c.l.b16 %v797
        %v3260 = vunpack.c.h.b16 %v797
        %v3261 = vunpack.c.l.b16 %v798
        %v3262 = vunpack.c.h.b16 %v798
        %v3263 = vunpack.c.l.b16 %v799
        %v3264 = vunpack.c.h.b16 %v799
        %v3265 = vunpack.c.l.b16 %v800
        %v3266 = vunpack.c.h.b16 %v800
        %v3267 = vunpack.c.l.b16 %v801
        %v3268 = vunpack.c.h.b16 %v801
        %v3269 = vunpack.c.l.b16 %v802
        %v3270 = vunpack.c.h.b16 %v802
        %v3271 = vunpack.c.l.b16 %v803
        %v3272 = vunpack.c.h.b16 %v803
        %v3273 = vunpack.c.l.b16 %v804
        %v3274 = vunpack.c.h.b16 %v804
        %v3275 = vunpack.c.l.b16 %v805
        %v3276 = vunpack.c.h.b16 %v805
        %v3277 = vunpack.c.l.b16 %v806
        %v3278 = vunpack.c.h.b16 %v806
        %v3279 = vunpack.c.l.b16 %v807
        %v3280 = vunpack.c.h.b16 %v807
        %v3281 = vunpack.c.l.b16 %v808
        %v3282 = vunpack.c.h.b16 %v808
        %v3283 = vunpack.c.l.b16 %v809
        %v3284 = vunpack.c.h.b16 %v809
        %v3285 = vunpack.c.l.b16 %v810
        %v3286 = vunpack.c.h.b16 %v810
        %v3287 = vunpack.c.l.b16 %v811
        %v3288 = vunpack.c.h.b16 %v811
        %v3289 = vunpack.c.l.b16 %v812
        %v3290 = vunpack.c.h.b16 %v812
        %v3291 = vunpack.c.l.b16 %v813
        %v3292 = vunpack.c.h.b16 %v813
        %v3293 = vunpack.c.l.b16 %v814
        %v3294 = vunpack.c.h.b16 %v814
        %v3295 = vunpack.c.l.b16 %v815
        %v3296 = vunpack.c.h.b16 %v815
        %v3297 = vunpack.c.l.b16 %v816
        %v3298 = vunpack.c.h.b16 %v816
        %v3299 = vunpack.c.l.b16 %v817
        %v3300 = vunpack.c.h.b16 %v817
        %v3301 = vunpack.c.l.b16 %v818
        %v3302 = vunpack.c.h.b16 %v818
        %v3303 = vunpack.c.l.b16 %v819
        %v3304 = vunpack.c.h.b16 %v819
        %v3305 = vunpack.c.l.b16 %v820
        %v3306 = vunpack.c.h.b16 %v820
        %v3307 = vunpack.c.l.b16 %v821
        %v3308 = vunpack.c.h.b16 %v821
        %v3309 = vunpack.c.l.b16 %v822
        %v3310 = vunpack.c.h.b16 %v822
        %v3311 = vunpack.c.l.b16 %v823
        %v3312 = vunpack.c.h.b16 %v823
        %v3313 = vunpack.c.l.b16 %v824
        %v3314 = vunpack.c.h.b16 %v824
        %v3315 = vunpack.c.l.b16 %v825
        %v3316 = vunpack.c.h.b16 %v825
        %v3317 = vunpack.c.l.b16 %v826
        %v3318 = vunpack.c.h.b16 %v826
        %v3319 = vunpack.c.l.b16 %v827
        %v3320 = vunpack.c.h.b16 %v827
        %v3321 = vunpack.c.l.b16 %v828
        %v3322 = vunpack.c.h.b16 %v828
        %v3323 = vunpack.c.l.b16 %v829
        %v3324 = vunpack.c.h.b16 %v829
        %v3325 = vunpack.c.l.b16 %v830
        %v3326 = vunpack.c.h.b16 %v830
        %v3327 = vunpack.c.l.b16 %v831
        %v3328 = vunpack.c.h.b16 %v831
        %v3329 = vunpack.c.l.b16 %v832
        %v3330 = vunpack.c.h.b16 %v832
        %v3331 = vunpack.c.l.b16 %v833
        %v3332 = vunpack.c.h.b16 %v833
        %v3333 = vunpack.c.l.b16 %v834
        %v3334 = vunpack.c.h.b16 %v834
        %v3335 = vunpack.c.l.b16 %v835
        %v3336 = vunpack.c.h.b16 %v835
        %v3337 = vunpack.c.l.b16 %v836
        %v3338 = vunpack.c.h.b16 %v836
        %v3339 = vunpack.c.l.b16 %v837
        %v3340 = vunpack.c.h.b16 %v837
        %v3341 = vunpack.c.l.b16 %v838
        %v3342 = vunpack.c.h.b16 %v838
        %v3343 = vunpack.c.l.b16 %v839
        %v3344 = vunpack.c.h.b16 %v839
        %v3345 = vunpack.c.l.b16 %v840
        %v3346 = vunpack.c.h.b16 %v840
        %v3347 = vunpack.c.l.b16 %v841
        %v3348 = vunpack.c.h.b16 %v841
        %v3349 = vunpack.c.l.b16 %v842
        %v3350 = vunpack.c.h.b16 %v842
        %v3351 = vunpack.c.l.b16 %v843
        %v3352 = vunpack.c.h.b16 %v843
        %v3353 = vunpack.c.l.b16 %v844
        %v3354 = vunpack.c.h.b16 %v844
        %v3355 = vunpack.c.l.b16 %v845
        %v3356 = vunpack.c.h.b16 %v845
        %v3357 = vunpack.c.l.b16 %v846
        %v3358 = vunpack.c.h.b16 %v846
        %v3359 = vunpack.c.l.b16 %v847
        %v3360 = vunpack.c.h.b16 %v847
        %v3361 = vunpack.c.l.b16 %v848
        %v3362 = vunpack.c.h.b16 %v848
        %v3363 = vunpack.c.l.b16 %v849
        %v3364 = vunpack.c.h.b16 %v849
        %v3365 = vunpack.c.l.b16 %v850
        %v3366 = vunpack.c.h.b16 %v850
        %v3367 = vunpack.c.l.b16 %v851
        %v3368 = vunpack.c.h.b16 %v851
        %v3369 = vunpack.c.l.b16 %v852
        %v3370 = vunpack.c.h.b16 %v852
        %v3371 = vunpack.c.l.b16 %v853
        %v3372 = vunpack.c.h.b16 %v853
        %v3373 = vunpack.c.l.b16 %v854
        %v3374 = vunpack.c.h.b16 %v854
        %v3375 = vunpack.c.l.b16 %v855
        %v3376 = vunpack.c.h.b16 %v855
        %v3377 = vunpack.c.l.b16 %v856
        %v3378 = vunpack.c.h.b16 %v856
        %v3379 = vunpack.c.l.b16 %v857
        %v3380 = vunpack.c.h.b16 %v857
        %v3381 = vunpack.c.l.b16 %v858
        %v3382 = vunpack.c.h.b16 %v858
        %v3383 = vunpack.c.l.b16 %v859
        %v3384 = vunpack.c.h.b16 %v859
        %v3385 = vunpack.c.l.b16 %v860
        %v3386 = vunpack.c.h.b16 %v860
        %v3387 = vunpack.c.l.b16 %v861
        %v3388 = vunpack.c.h.b16 %v861
        %v3389 = vunpack.c.l.b16 %v862
        %v3390 = vunpack.c.h.b16 %v862
        %v3391 = vunpack.c.l.b16 %v863
        %v3392 = vunpack.c.h.b16 %v863
        %v3393 = vunpack.c.l.b16 %v864
        %v3394 = vunpack.c.h.b16 %v864
        %v3395 = vunpack.c.l.b16 %v865
        %v3396 = vunpack.c.h.b16 %v865
        %v3397 = vunpack.c.l.b16 %v866
        %v3398 = vunpack.c.h.b16 %v866
        %v3399 = vunpack.c.l.b16 %v867
        %v3400 = vunpack.c.h.b16 %v867
        %v3401 = vunpack.c.l.b16 %v868
        %v3402 = vunpack.c.h.b16 %v868
        %v3403 = vunpack.c.l.b16 %v869
        %v3404 = vunpack.c.h.b16 %v869
        %v3405 = vunpack.c.l.b16 %v870
        %v3406 = vunpack.c.h.b16 %v870
        %v3407 = vunpack.c.l.b16 %v871
        %v3408 = vunpack.c.h.b16 %v871
        %v3409 = vunpack.c.l.b16 %v872
        %v3410 = vunpack.c.h.b16 %v872
        %v3411 = vunpack.c.l.b16 %v873
        %v3412 = vunpack.c.h.b16 %v873
        %v3413 = vunpack.c.l.b16 %v874
        %v3414 = vunpack.c.h.b16 %v874
        %v3415 = vunpack.c.l.b16 %v875
        %v3416 = vunpack.c.h.b16 %v875
        %v3417 = vunpack.c.l.b16 %v876
        %v3418 = vunpack.c.h.b16 %v876
        %v3419 = vunpack.c.l.b16 %v877
        %v3420 = vunpack.c.h.b16 %v877
        %v3421 = vunpack.c.l.b16 %v878
        %v3422 = vunpack.c.h.b16 %v878
        %v3423 = vunpack.c.l.b16 %v879
        %v3424 = vunpack.c.h.b16 %v879
        %v3425 = vunpack.c.l.b16 %v880
        %v3426 = vunpack.c.h.b16 %v880
        %v3427 = vunpack.c.l.b16 %v881
        %v3428 = vunpack.c.h.b16 %v881
        %v3429 = vunpack.c.l.b16 %v882
        %v3430 = vunpack.c.h.b16 %v882
        %v3431 = vunpack.c.l.b16 %v883
        %v3432 = vunpack.c.h.b16 %v883
        %v3433 = vunpack.c.l.b16 %v884
        %v3434 = vunpack.c.h.b16 %v884
        %v3435 = vunpack.c.l.b16 %v885
        %v3436 = vunpack.c.h.b16 %v885
        %v3437 = vunpack.c.l.b16 %v886
        %v3438 = vunpack.c.h.b16 %v886
        %v3439 = vunpack.c.l.b16 %v887
        %v3440 = vunpack.c.h.b16 %v887
        %v3441 = vunpack.c.l.b16 %v888
        %v3442 = vunpack.c.h.b16 %v888
        %v3443 = vunpack.c.l.b16 %v889
        %v3444 = vunpack.c.h.b16 %v889
        %v3445 = vunpack.c.l.b16 %v890
        %v3446 = vunpack.c.h.b16 %v890
        %v3447 = vunpack.c.l.b16 %v891
        %v3448 = vunpack.c.h.b16 %v891
        %v3449 = vunpack.c.l.b16 %v892
        %v3450 = vunpack.c.h.b16 %v892
        %v3451 = vunpack.c.l.b16 %v893
        %v3452 = vunpack.c.h.b16 %v893
        %v3453 = vunpack.c.l.b16 %v894
        %v3454 = vunpack.c.h.b16 %v894
        %v3455 = vunpack.c.l.b16 %v895
        %v3456 = vunpack.c.h.b16 %v895
        %v3457 = vunpack.c.l.b16 %v896
        %v3458 = vunpack.c.h.b16 %v896
        %v3459 = vunpack.c.l.b16 %v897
        %v3460 = vunpack.c.h.b16 %v897
        %v3461 = vunpack.c.l.b16 %v898
        %v3462 = vunpack.c.h.b16 %v898
        %v3463 = vunpack.c.l.b16 %v899
        %v3464 = vunpack.c.h.b16 %v899
        %v3465 = vunpack.c.l.b16 %v900
        %v3466 = vunpack.c.h.b16 %v900
        %v3467 = vunpack.c.l.b16 %v901
        %v3468 = vunpack.c.h.b16 %v901
        %v3469 = vunpack.c.l.b16 %v902
        %v3470 = vunpack.c.h.b16 %v902
        %v3471 = vunpack.c.l.b16 %v903
        %v3472 = vunpack.c.h.b16 %v903
        %v3473 = vunpack.c.l.b16 %v904
        %v3474 = vunpack.c.h.b16 %v904
        %v3475 = vunpack.c.l.b16 %v905
        %v3476 = vunpack.c.h.b16 %v905
        %v3477 = vunpack.c.l.b16 %v906
        %v3478 = vunpack.c.h.b16 %v906
        %v3479 = vunpack.c.l.b16 %v907
        %v3480 = vunpack.c.h.b16 %v907
        %v3481 = vunpack.c.l.b16 %v908
        %v3482 = vunpack.c.h.b16 %v908
        %v3483 = vunpack.c.l.b16 %v909
        %v3484 = vunpack.c.h.b16 %v909
        %v3485 = vunpack.c.l.b16 %v910
        %v3486 = vunpack.c.h.b16 %v910
        %v3487 = vunpack.c.l.b16 %v911
        %v3488 = vunpack.c.h.b16 %v911
        %v3489 = vunpack.c.l.b16 %v912
        %v3490 = vunpack.c.h.b16 %v912
        %v3491 = vunpack.c.l.b16 %v913
        %v3492 = vunpack.c.h.b16 %v913
        %v3493 = vunpack.c.l.b16 %v914
        %v3494 = vunpack.c.h.b16 %v914
        %v3495 = vunpack.c.l.b16 %v915
        %v3496 = vunpack.c.h.b16 %v915
        %v3497 = vunpack.c.l.b16 %v916
        %v3498 = vunpack.c.h.b16 %v916
        %v3499 = vunpack.c.l.b16 %v917
        %v3500 = vunpack.c.h.b16 %v917
        %v3501 = vunpack.c.l.b16 %v918
        %v3502 = vunpack.c.h.b16 %v918
        %v3503 = vunpack.c.l.b16 %v919
        %v3504 = vunpack.c.h.b16 %v919
        %v3505 = vunpack.c.l.b16 %v920
        %v3506 = vunpack.c.h.b16 %v920
        %v3507 = vunpack.c.l.b16 %v921
        %v3508 = vunpack.c.h.b16 %v921
        %v3509 = vunpack.c.l.b16 %v922
        %v3510 = vunpack.c.h.b16 %v922
        %v3511 = vunpack.c.l.b16 %v923
        %v3512 = vunpack.c.h.b16 %v923
        %v3513 = vunpack.c.l.b16 %v924
        %v3514 = vunpack.c.h.b16 %v924
        %v3515 = vunpack.c.l.b16 %v925
        %v3516 = vunpack.c.h.b16 %v925
        %v3517 = vunpack.c.l.b16 %v926
        %v3518 = vunpack.c.h.b16 %v926
        %v3519 = vunpack.c.l.b16 %v927
        %v3520 = vunpack.c.h.b16 %v927
        %v3521 = vunpack.c.l.b16 %v928
        %v3522 = vunpack.c.h.b16 %v928
        %v3523 = vunpack.c.l.b16 %v929
        %v3524 = vunpack.c.h.b16 %v929
        %v3525 = vunpack.c.l.b16 %v930
        %v3526 = vunpack.c.h.b16 %v930
        %v3527 = vunpack.c.l.b16 %v931
        %v3528 = vunpack.c.h.b16 %v931
        %v3529 = vunpack.c.l.b16 %v932
        %v3530 = vunpack.c.h.b16 %v932
        %v3531 = vunpack.c.l.b16 %v933
        %v3532 = vunpack.c.h.b16 %v933
        %v3533 = vunpack.c.l.b16 %v934
        %v3534 = vunpack.c.h.b16 %v934
        %v3535 = vunpack.c.l.b16 %v935
        %v3536 = vunpack.c.h.b16 %v935
        %v3537 = vunpack.c.l.b16 %v936
        %v3538 = vunpack.c.h.b16 %v936
        %v3539 = vunpack.c.l.b16 %v937
        %v3540 = vunpack.c.h.b16 %v937
        %v3541 = vunpack.c.l.b16 %v938
        %v3542 = vunpack.c.h.b16 %v938
        %v3543 = vunpack.c.l.b16 %v939
        %v3544 = vunpack.c.h.b16 %v939
        %v3545 = vunpack.c.l.b16 %v940
        %v3546 = vunpack.c.h.b16 %v940
        %v3547 = vunpack.c.l.b16 %v941
        %v3548 = vunpack.c.h.b16 %v941
        %v3549 = vunpack.c.l.b16 %v942
        %v3550 = vunpack.c.h.b16 %v942
        %v3551 = vunpack.c.l.b16 %v943
        %v3552 = vunpack.c.h.b16 %v943
        %v3553 = vunpack.c.l.b16 %v944
        %v3554 = vunpack.c.h.b16 %v944
        %v3555 = vunpack.c.l.b16 %v945
        %v3556 = vunpack.c.h.b16 %v945
        %v3557 = vunpack.c.l.b16 %v946
        %v3558 = vunpack.c.h.b16 %v946
        %v3559 = vunpack.c.l.b16 %v947
        %v3560 = vunpack.c.h.b16 %v947
        %v3561 = vunpack.c.l.b16 %v948
        %v3562 = vunpack.c.h.b16 %v948
        %v3563 = vunpack.c.l.b16 %v949
        %v3564 = vunpack.c.h.b16 %v949
        %v3565 = vunpack.c.l.b16 %v950
        %v3566 = vunpack.c.h.b16 %v950
        %v3567 = vunpack.c.l.b16 %v951
        %v3568 = vunpack.c.h.b16 %v951
        %v3569 = vunpack.c.l.b16 %v952
        %v3570 = vunpack.c.h.b16 %v952
        %v3571 = vunpack.c.l.b16 %v953
        %v3572 = vunpack.c.h.b16 %v953
        %v3573 = vunpack.c.l.b16 %v954
        %v3574 = vunpack.c.h.b16 %v954
        %v3575 = vunpack.c.l.b16 %v955
        %v3576 = vunpack.c.h.b16 %v955
        %v3577 = vunpack.c.l.b16 %v956
        %v3578 = vunpack.c.h.b16 %v956
        %v3579 = vunpack.c.l.b16 %v957
        %v3580 = vunpack.c.h.b16 %v957
        %v3581 = vunpack.c.l.b16 %v958
        %v3582 = vunpack.c.h.b16 %v958
        %v3583 = vunpack.c.l.b16 %v959
        %v3584 = vunpack.c.h.b16 %v959
        %v3585 = vunpack.c.l.b16 %v960
        %v3586 = vunpack.c.h.b16 %v960
        %v3587 = vunpack.c.l.b16 %v961
        %v3588 = vunpack.c.h.b16 %v961
        %v3589 = vunpack.c.l.b16 %v962
        %v3590 = vunpack.c.h.b16 %v962
        %v3591 = vunpack.c.l.b16 %v963
        %v3592 = vunpack.c.h.b16 %v963
        %v3593 = vunpack.c.l.b16 %v964
        %v3594 = vunpack.c.h.b16 %v964
        %v3595 = vunpack.c.l.b16 %v965
        %v3596 = vunpack.c.h.b16 %v965
        %v3597 = vunpack.c.l.b16 %v966
        %v3598 = vunpack.c.h.b16 %v966
        %v3599 = vunpack.c.l.b16 %v967
        %v3600 = vunpack.c.h.b16 %v967
        %v3601 = vunpack.c.l.b16 %v968
        %v3602 = vunpack.c.h.b16 %v968
        %v3603 = vunpack.c.l.b16 %v969
        %v3604 = vunpack.c.h.b16 %v969
        %v3605 = vunpack.c.l.b16 %v970
        %v3606 = vunpack.c.h.b16 %v970
        %v3607 = vunpack.c.l.b16 %v971
        %v3608 = vunpack.c.h.b16 %v971
        %v3609 = vunpack.c.l.b16 %v972
        %v3610 = vunpack.c.h.b16 %v972
        %v3611 = vunpack.c.l.b16 %v973
        %v3612 = vunpack.c.h.b16 %v973
        %v3613 = vunpack.c.l.b16 %v974
        %v3614 = vunpack.c.h.b16 %v974
        %v3615 = vunpack.c.l.b16 %v975
        %v3616 = vunpack.c.h.b16 %v975
        %v3617 = vunpack.c.l.b16 %v976
        %v3618 = vunpack.c.h.b16 %v976
        %v3619 = vunpack.c.l.b16 %v977
        %v3620 = vunpack.c.h.b16 %v977
        %v3621 = vunpack.c.l.b16 %v978
        %v3622 = vunpack.c.h.b16 %v978
        %v3623 = vunpack.c.l.b16 %v979
        %v3624 = vunpack.c.h.b16 %v979
        %v3625 = vunpack.c.l.b16 %v980
        %v3626 = vunpack.c.h.b16 %v980
        %v3627 = vunpack.c.l.b16 %v981
        %v3628 = vunpack.c.h.b16 %v981
        %v3629 = vunpack.c.l.b16 %v982
        %v3630 = vunpack.c.h.b16 %v982
        %v3631 = vunpack.c.l.b16 %v983
        %v3632 = vunpack.c.h.b16 %v983
        %v3633 = vunpack.c.l.b16 %v984
        %v3634 = vunpack.c.h.b16 %v984
        %v3635 = vunpack.c.l.b16 %v985
        %v3636 = vunpack.c.h.b16 %v985
        %v3637 = vunpack.c.l.b16 %v986
        %v3638 = vunpack.c.h.b16 %v986
        %v3639 = vunpack.c.l.b16 %v987
        %v3640 = vunpack.c.h.b16 %v987
        %v3641 = vunpack.c.l.b16 %v988
        %v3642 = vunpack.c.h.b16 %v988
        %v3643 = vunpack.c.l.b16 %v989
        %v3644 = vunpack.c.h.b16 %v989
        %v3645 = vunpack.c.l.b16 %v990
        %v3646 = vunpack.c.h.b16 %v990
        %v3647 = vunpack.c.l.b16 %v991
        %v3648 = vunpack.c.h.b16 %v991
        %v3649 = vunpack.c.l.b16 %v992
        %v3650 = vunpack.c.h.b16 %v992
        %v3651 = vunpack.c.l.b16 %v993
        %v3652 = vunpack.c.h.b16 %v993
        %v3653 = vunpack.c.l.b16 %v994
        %v3654 = vunpack.c.h.b16 %v994
        %v3655 = vunpack.c.l.b16 %v995
        %v3656 = vunpack.c.h.b16 %v995
        %v3657 = vunpack.c.l.b16 %v996
        %v3658 = vunpack.c.h.b16 %v996
        %v3659 = vunpack.c.l.b16 %v997
        %v3660 = vunpack.c.h.b16 %v997
        %v3661 = vunpack.c.l.b16 %v998
        %v3662 = vunpack.c.h.b16 %v998
        %v3663 = vunpack.c.l.b16 %v999
        %v3664 = vunpack.c.h.b16 %v999
        %v3665 = vunpack.c.l.b16 %v1000
        %v3666 = vunpack.c.h.b16 %v1000
        %v3667 = vunpack.c.l.b16 %v1001
        %v3668 = vunpack.c.h.b16 %v1001
        %v3669 = vunpack.c.l.b16 %v1002
        %v3670 = vunpack.c.h.b16 %v1002
        %v3671 = vunpack.c.l.b16 %v1003
        %v3672 = vunpack.c.h.b16 %v1003
        %v3673 = vunpack.c.l.b16 %v1004
        %v3674 = vunpack.c.h.b16 %v1004
        %v3675 = vunpack.c.l.b16 %v1005
        %v3676 = vunpack.c.h.b16 %v1005
        %v3677 = vunpack.c.l.b16 %v1006
        %v3678 = vunpack.c.h.b16 %v1006
        %v3679 = vunpack.c.l.b16 %v1007
        %v3680 = vunpack.c.h.b16 %v1007
        %v3681 = vunpack.c.l.b16 %v1008
        %v3682 = vunpack.c.h.b16 %v1008
        %v3683 = vunpack.c.l.b16 %v1009
        %v3684 = vunpack.c.h.b16 %v1009
        %v3685 = vunpack.c.l.b16 %v1010
        %v3686 = vunpack.c.h.b16 %v1010
        %v3687 = vunpack.c.l.b16 %v1011
        %v3688 = vunpack.c.h.b16 %v1011
        %v3689 = vunpack.c.l.b16 %v1012
        %v3690 = vunpack.c.h.b16 %v1012
        %v3691 = vunpack.c.l.b16 %v1013
        %v3692 = vunpack.c.h.b16 %v1013
        %v3693 = vunpack.c.l.b16 %v1014
        %v3694 = vunpack.c.h.b16 %v1014
        %v3695 = vunpack.c.l.b16 %v1015
        %v3696 = vunpack.c.h.b16 %v1015
        %v3697 = vunpack.c.l.b16 %v1016
        %v3698 = vunpack.c.h.b16 %v1016
        %v3699 = vunpack.c.l.b16 %v1017
        %v3700 = vunpack.c.h.b16 %v1017
        %v3701 = vunpack.c.l.b16 %v1018
        %v3702 = vunpack.c.h.b16 %v1018
        %v3703 = vunpack.c.l.b16 %v1019
        %v3704 = vunpack.c.h.b16 %v1019
        %v3705 = vunpack.c.l.b16 %v1020
        %v3706 = vunpack.c.h.b16 %v1020
        %v3707 = vunpack.c.l.b16 %v1021
        %v3708 = vunpack.c.h.b16 %v1021
        %v3709 = vunpack.c.l.b16 %v1022
        %v3710 = vunpack.c.h.b16 %v1022
        %v3711 = vunpack.c.l.b16 %v1023
        %v3712 = vunpack.c.h.b16 %v1023
        %v3713 = vunpack.c.l.b16 %v1024
        %v3714 = vunpack.c.h.b16 %v1024
        %v3715 = vunpack.c.l.b16 %v1025
        %v3716 = vunpack.c.h.b16 %v1025
        %v3717 = vunpack.c.l.b16 %v1026
        %v3718 = vunpack.c.h.b16 %v1026
        %v3719 = vunpack.c.l.b16 %v1027
        %v3720 = vunpack.c.h.b16 %v1027
        %v3721 = vunpack.c.l.b16 %v1028
        %v3722 = vunpack.c.h.b16 %v1028
        %v3723 = vunpack.c.l.b16 %v1029
        %v3724 = vunpack.c.h.b16 %v1029
        %v3725 = vunpack.c.l.b16 %v1030
        %v3726 = vunpack.c.h.b16 %v1030
        %v3727 = vunpack.c.l.b16 %v1031
        %v3728 = vunpack.c.h.b16 %v1031
        %v3729 = vunpack.c.l.b16 %v1032
        %v3730 = vunpack.c.h.b16 %v1032
        %v3731 = vunpack.c.l.b16 %v1033
        %v3732 = vunpack.c.h.b16 %v1033
        %v3733 = vunpack.c.l.b16 %v1034
        %v3734 = vunpack.c.h.b16 %v1034
        %v3735 = vunpack.c.l.b16 %v1035
        %v3736 = vunpack.c.h.b16 %v1035
        %v3737 = vunpack.c.l.b16 %v1036
        %v3738 = vunpack.c.h.b16 %v1036
        %v3739 = vunpack.c.l.b16 %v1037
        %v3740 = vunpack.c.h.b16 %v1037
        %v3741 = vunpack.c.l.b16 %v1038
        %v3742 = vunpack.c.h.b16 %v1038
        %v3743 = vunpack.c.l.b16 %v1039
        %v3744 = vunpack.c.h.b16 %v1039
        %v3745 = vunpack.c.l.b16 %v1040
        %v3746 = vunpack.c.h.b16 %v1040
        %v3747 = vunpack.c.l.b16 %v1041
        %v3748 = vunpack.c.h.b16 %v1041
        %v3749 = vunpack.c.l.b16 %v1042
        %v3750 = vunpack.c.h.b16 %v1042
        %v3751 = vunpack.c.l.b16 %v1043
        %v3752 = vunpack.c.h.b16 %v1043
        %v3753 = vunpack.c.l.b16 %v1044
        %v3754 = vunpack.c.h.b16 %v1044
        %v3755 = vunpack.c.l.b16 %v1045
        %v3756 = vunpack.c.h.b16 %v1045
        %v3757 = vunpack.c.l.b16 %v1046
        %v3758 = vunpack.c.h.b16 %v1046
        %v3759 = vunpack.c.l.b16 %v1047
        %v3760 = vunpack.c.h.b16 %v1047
        %v3761 = vunpack.c.l.b16 %v1048
        %v3762 = vunpack.c.h.b16 %v1048
        %v3763 = vunpack.c.l.b16 %v1049
        %v3764 = vunpack.c.h.b16 %v1049
        %v3765 = vunpack.c.l.b16 %v1050
        %v3766 = vunpack.c.h.b16 %v1050
        %v3767 = vunpack.c.l.b16 %v1051
        %v3768 = vunpack.c.h.b16 %v1051
        %v3769 = vunpack.c.l.b16 %v1052
        %v3770 = vunpack.c.h.b16 %v1052
        %v3771 = vunpack.c.l.b16 %v1053
        %v3772 = vunpack.c.h.b16 %v1053
        %v3773 = vunpack.c.l.b16 %v1054
        %v3774 = vunpack.c.h.b16 %v1054
        %v3775 = vunpack.c.l.b16 %v1055
        %v3776 = vunpack.c.h.b16 %v1055
        %v3777 = vunpack.c.l.b16 %v1056
        %v3778 = vunpack.c.h.b16 %v1056
        %v3779 = vunpack.c.l.b16 %v1057
        %v3780 = vunpack.c.h.b16 %v1057
        %v3781 = vunpack.c.l.b16 %v1058
        %v3782 = vunpack.c.h.b16 %v1058
        %v3783 = vunpack.c.l.b16 %v1059
        %v3784 = vunpack.c.h.b16 %v1059
        %v3785 = vunpack.c.l.b16 %v1060
        %v3786 = vunpack.c.h.b16 %v1060
        %v3787 = vunpack.c.l.b16 %v1061
        %v3788 = vunpack.c.h.b16 %v1061
        %v3789 = vunpack.c.l.b16 %v1062
        %v3790 = vunpack.c.h.b16 %v1062
        %v3791 = vunpack.c.l.b16 %v1063
        %v3792 = vunpack.c.h.b16 %v1063
        %v3793 = vunpack.c.l.b16 %v1064
        %v3794 = vunpack.c.h.b16 %v1064
        %v3795 = vunpack.c.l.b16 %v1065
        %v3796 = vunpack.c.h.b16 %v1065
        %v3797 = vunpack.c.l.b16 %v1066
        %v3798 = vunpack.c.h.b16 %v1066
        %v3799 = vunpack.c.l.b16 %v1067
        %v3800 = vunpack.c.h.b16 %v1067
        %v3801 = vunpack.c.l.b16 %v1068
        %v3802 = vunpack.c.h.b16 %v1068
        %v3803 = vunpack.c.l.b16 %v1069
        %v3804 = vunpack.c.h.b16 %v1069
        %v3805 = vunpack.c.l.b16 %v1070
        %v3806 = vunpack.c.h.b16 %v1070
        %v3807 = vunpack.c.l.b16 %v1071
        %v3808 = vunpack.c.h.b16 %v1071
        %v3809 = vunpack.c.l.b16 %v1072
        %v3810 = vunpack.c.h.b16 %v1072
        %v3811 = vunpack.c.l.b16 %v1073
        %v3812 = vunpack.c.h.b16 %v1073
        %v3813 = vunpack.c.l.b16 %v1074
        %v3814 = vunpack.c.h.b16 %v1074
        %v3815 = vunpack.c.l.b16 %v1075
        %v3816 = vunpack.c.h.b16 %v1075
        %v3817 = vunpack.c.l.b16 %v1076
        %v3818 = vunpack.c.h.b16 %v1076
        %v3819 = vunpack.c.l.b16 %v1077
        %v3820 = vunpack.c.h.b16 %v1077
        %v3821 = vunpack.c.l.b16 %v1078
        %v3822 = vunpack.c.h.b16 %v1078
        %v3823 = vunpack.c.l.b16 %v1079
        %v3824 = vunpack.c.h.b16 %v1079
        %v3825 = vunpack.c.l.b16 %v1080
        %v3826 = vunpack.c.h.b16 %v1080
        %v3827 = vunpack.c.l.b16 %v1081
        %v3828 = vunpack.c.h.b16 %v1081
        %v3829 = vunpack.c.l.b16 %v1082
        %v3830 = vunpack.c.h.b16 %v1082
        %v3831 = vunpack.c.l.b16 %v1083
        %v3832 = vunpack.c.h.b16 %v1083
        %v3833 = vunpack.c.l.b16 %v1084
        %v3834 = vunpack.c.h.b16 %v1084
        %v3835 = vunpack.c.l.b16 %v1085
        %v3836 = vunpack.c.h.b16 %v1085
        %v3837 = vunpack.c.l.b16 %v1086
        %v3838 = vunpack.c.h.b16 %v1086
        %v3839 = vunpack.c.l.b16 %v1087
        %v3840 = vunpack.c.h.b16 %v1087
        %v3841 = vunpack.c.l.b16 %v1088
        %v3842 = vunpack.c.h.b16 %v1088
        %v3843 = vunpack.c.l.b16 %v1089
        %v3844 = vunpack.c.h.b16 %v1089
        %v3845 = vunpack.c.l.b16 %v1090
        %v3846 = vunpack.c.h.b16 %v1090
        %v3847 = vunpack.c.l.b16 %v1091
        %v3848 = vunpack.c.h.b16 %v1091
        %v3849 = vunpack.c.l.b16 %v1092
        %v3850 = vunpack.c.h.b16 %v1092
        %v3851 = vunpack.c.l.b16 %v1093
        %v3852 = vunpack.c.h.b16 %v1093
        %v3853 = vunpack.c.l.b16 %v1094
        %v3854 = vunpack.c.h.b16 %v1094
        %v3855 = vunpack.c.l.b16 %v1095
        %v3856 = vunpack.c.h.b16 %v1095
        %v3857 = vunpack.c.l.b16 %v1096
        %v3858 = vunpack.c.h.b16 %v1096
        %v3859 = vunpack.c.l.b16 %v1097
        %v3860 = vunpack.c.h.b16 %v1097
        %v3861 = vunpack.c.l.b16 %v1098
        %v3862 = vunpack.c.h.b16 %v1098
        %v3863 = vunpack.c.l.b16 %v1099
        %v3864 = vunpack.c.h.b16 %v1099
        %v3865 = vunpack.c.l.b16 %v1100
        %v3866 = vunpack.c.h.b16 %v1100
        %v3867 = vunpack.c.l.b16 %v1101
        %v3868 = vunpack.c.h.b16 %v1101
        %v3869 = vunpack.c.l.b16 %v1102
        %v3870 = vunpack.c.h.b16 %v1102
        %v3871 = vunpack.c.l.b16 %v1103
        %v3872 = vunpack.c.h.b16 %v1103
        %v3873 = vunpack.c.l.b16 %v1104
        %v3874 = vunpack.c.h.b16 %v1104
        %v3875 = vunpack.c.l.b16 %v1105
        %v3876 = vunpack.c.h.b16 %v1105
        %v3877 = vunpack.c.l.b16 %v1106
        %v3878 = vunpack.c.h.b16 %v1106
        %v3879 = vunpack.c.l.b16 %v1107
        %v3880 = vunpack.c.h.b16 %v1107
        %v3881 = vunpack.c.l.b16 %v1108
        %v3882 = vunpack.c.h.b16 %v1108
        %v3883 = vunpack.c.l.b16 %v1109
        %v3884 = vunpack.c.h.b16 %v1109
        %v3885 = vunpack.c.l.b16 %v1110
        %v3886 = vunpack.c.h.b16 %v1110
        %v3887 = vunpack.c.l.b16 %v1111
        %v3888 = vunpack.c.h.b16 %v1111
        %v3889 = vunpack.c.l.b16 %v1112
        %v3890 = vunpack.c.h.b16 %v1112
        %v3891 = vunpack.c.l.b16 %v1113
        %v3892 = vunpack.c.h.b16 %v1113
        %v3893 = vunpack.c.l.b16 %v1114
        %v3894 = vunpack.c.h.b16 %v1114
        %v3895 = vunpack.c.l.b16 %v1115
        %v3896 = vunpack.c.h.b16 %v1115
        %v3897 = vunpack.c.l.b16 %v1116
        %v3898 = vunpack.c.h.b16 %v1116
        %v3899 = vunpack.c.l.b16 %v1117
        %v3900 = vunpack.c.h.b16 %v1117
        %v3901 = vunpack.c.l.b16 %v1118
        %v3902 = vunpack.c.h.b16 %v1118
        %v3903 = vunpack.c.l.b16 %v1119
        %v3904 = vunpack.c.h.b16 %v1119
        %v3905 = vunpack.c.l.b16 %v1120
        %v3906 = vunpack.c.h.b16 %v1120
        %v3907 = vunpack.c.l.b16 %v1121
        %v3908 = vunpack.c.h.b16 %v1121
        %v3909 = vunpack.c.l.b16 %v1122
        %v3910 = vunpack.c.h.b16 %v1122
        %v3911 = vunpack.c.l.b16 %v1123
        %v3912 = vunpack.c.h.b16 %v1123
        %v3913 = vunpack.c.l.b16 %v1124
        %v3914 = vunpack.c.h.b16 %v1124
        %v3915 = vunpack.c.l.b16 %v1125
        %v3916 = vunpack.c.h.b16 %v1125
        %v3917 = vunpack.c.l.b16 %v1126
        %v3918 = vunpack.c.h.b16 %v1126
        %v3919 = vunpack.c.l.b16 %v1127
        %v3920 = vunpack.c.h.b16 %v1127
        %v3921 = vunpack.c.l.b16 %v1128
        %v3922 = vunpack.c.h.b16 %v1128
        %v3923 = vunpack.c.l.b16 %v1129
        %v3924 = vunpack.c.h.b16 %v1129
        %v3925 = vunpack.c.l.b16 %v1130
        %v3926 = vunpack.c.h.b16 %v1130
        %v3927 = vunpack.c.l.b16 %v1131
        %v3928 = vunpack.c.h.b16 %v1131
        %v3929 = vunpack.c.l.b16 %v1132
        %v3930 = vunpack.c.h.b16 %v1132
        %v3931 = vunpack.c.l.b16 %v1133
        %v3932 = vunpack.c.h.b16 %v1133
        %v3933 = vunpack.c.l.b16 %v1134
        %v3934 = vunpack.c.h.b16 %v1134
        %v3935 = vunpack.c.l.b16 %v1135
        %v3936 = vunpack.c.h.b16 %v1135
        %v3937 = vunpack.c.l.b16 %v1136
        %v3938 = vunpack.c.h.b16 %v1136
        %v3939 = vunpack.c.l.b16 %v1137
        %v3940 = vunpack.c.h.b16 %v1137
        %v3941 = vunpack.c.l.b16 %v1138
        %v3942 = vunpack.c.h.b16 %v1138
        %v3943 = vunpack.c.l.b16 %v1139
        %v3944 = vunpack.c.h.b16 %v1139
        %v3945 = vunpack.c.l.b16 %v1140
        %v3946 = vunpack.c.h.b16 %v1140
        %v3947 = vunpack.c.l.b16 %v1141
        %v3948 = vunpack.c.h.b16 %v1141
        %v3949 = vunpack.c.l.b16 %v1142
        %v3950 = vunpack.c.h.b16 %v1142
        %v3951 = vunpack.c.l.b16 %v1143
        %v3952 = vunpack.c.h.b16 %v1143
        %v3953 = vunpack.c.l.b16 %v1144
        %v3954 = vunpack.c.h.b16 %v1144
        %v3955 = vunpack.c.l.b16 %v1145
        %v3956 = vunpack.c.h.b16 %v1145
        %v3957 = vunpack.c.l.b16 %v1146
        %v3958 = vunpack.c.h.b16 %v1146
        %v3959 = vunpack.c.l.b16 %v1147
        %v3960 = vunpack.c.h.b16 %v1147
        %v3961 = vunpack.c.l.b16 %v1148
        %v3962 = vunpack.c.h.b16 %v1148
        %v3963 = vunpack.c.l.b16 %v1149
        %v3964 = vunpack.c.h.b16 %v1149
        %v3965 = vunpack.c.l.b16 %v1150
        %v3966 = vunpack.c.h.b16 %v1150
        %v3967 = vunpack.c.l.b16 %v1151
        %v3968 = vunpack.c.h.b16 %v1151
        %v3969 = vunpack.c.l.b16 %v1152
        %v3970 = vunpack.c.h.b16 %v1152
        %v3971 = vunpack.c.l.b16 %v1153
        %v3972 = vunpack.c.h.b16 %v1153
        %v3973 = vunpack.c.l.b16 %v1154
        %v3974 = vunpack.c.h.b16 %v1154
        %v3975 = vunpack.c.l.b16 %v1155
        %v3976 = vunpack.c.h.b16 %v1155
        %v3977 = vunpack.c.l.b16 %v1156
        %v3978 = vunpack.c.h.b16 %v1156
        %v3979 = vunpack.c.l.b16 %v1157
        %v3980 = vunpack.c.h.b16 %v1157
        %v3981 = vunpack.c.l.b16 %v1158
        %v3982 = vunpack.c.h.b16 %v1158
        %v3983 = vunpack.c.l.b16 %v1159
        %v3984 = vunpack.c.h.b16 %v1159
        %v3985 = vunpack.c.l.b16 %v1160
        %v3986 = vunpack.c.h.b16 %v1160
        %v3987 = vunpack.c.l.b16 %v1161
        %v3988 = vunpack.c.h.b16 %v1161
        %v3989 = vunpack.c.l.b16 %v1162
        %v3990 = vunpack.c.h.b16 %v1162
        %v3991 = vunpack.c.l.b16 %v1163
        %v3992 = vunpack.c.h.b16 %v1163
        %v3993 = vunpack.c.l.b16 %v1164
        %v3994 = vunpack.c.h.b16 %v1164
        %v3995 = vunpack.c.l.b16 %v1165
        %v3996 = vunpack.c.h.b16 %v1165
        %v3997 = vunpack.c.l.b16 %v1166
        %v3998 = vunpack.c.h.b16 %v1166
        %v3999 = vunpack.c.l.b16 %v1167
        %v4000 = vunpack.c.h.b16 %v1167
        %v4001 = vunpack.c.l.b16 %v1168
        %v4002 = vunpack.c.h.b16 %v1168
        %v4003 = vunpack.c.l.b16 %v1169
        %v4004 = vunpack.c.h.b16 %v1169
        %v4005 = vunpack.c.l.b16 %v1170
        %v4006 = vunpack.c.h.b16 %v1170
        %v4007 = vunpack.c.l.b16 %v1171
        %v4008 = vunpack.c.h.b16 %v1171
        %v4009 = vunpack.c.l.b16 %v1172
        %v4010 = vunpack.c.h.b16 %v1172
        %v4011 = vunpack.c.l.b16 %v1173
        %v4012 = vunpack.c.h.b16 %v1173
        %v4013 = vunpack.c.l.b16 %v1174
        %v4014 = vunpack.c.h.b16 %v1174
        %v4015 = vunpack.c.l.b16 %v1175
        %v4016 = vunpack.c.h.b16 %v1175
        %v4017 = vunpack.c.l.b16 %v1176
        %v4018 = vunpack.c.h.b16 %v1176
        %v4019 = vunpack.c.l.b16 %v1177
        %v4020 = vunpack.c.h.b16 %v1177
        %v4021 = vunpack.c.l.b16 %v1178
        %v4022 = vunpack.c.h.b16 %v1178
        %v4023 = vunpack.c.l.b16 %v1179
        %v4024 = vunpack.c.h.b16 %v1179
        %v4025 = vunpack.c.l.b16 %v1180
        %v4026 = vunpack.c.h.b16 %v1180
        %v4027 = vunpack.c.l.b16 %v1181
        %v4028 = vunpack.c.h.b16 %v1181
        %v4029 = vunpack.c.l.b16 %v1182
        %v4030 = vunpack.c.h.b16 %v1182
        %v4031 = vunpack.c.l.b16 %v1183
        %v4032 = vunpack.c.h.b16 %v1183
        %v4033 = vunpack.c.l.b16 %v1184
        %v4034 = vunpack.c.h.b16 %v1184
        %v4035 = vunpack.c.l.b16 %v1185
        %v4036 = vunpack.c.h.b16 %v1185
        %v4037 = vunpack.c.l.b16 %v1186
        %v4038 = vunpack.c.h.b16 %v1186
        %v4039 = vunpack.c.l.b16 %v1187
        %v4040 = vunpack.c.h.b16 %v1187
        %v4041 = vunpack.c.l.b16 %v1188
        %v4042 = vunpack.c.h.b16 %v1188
        %v4043 = vunpack.c.l.b16 %v1189
        %v4044 = vunpack.c.h.b16 %v1189
        %v4045 = vunpack.c.l.b16 %v1190
        %v4046 = vunpack.c.h.b16 %v1190
        %v4047 = vunpack.c.l.b16 %v1191
        %v4048 = vunpack.c.h.b16 %v1191
        %v4049 = vunpack.c.l.b16 %v1192
        %v4050 = vunpack.c.h.b16 %v1192
        %v4051 = vunpack.c.l.b16 %v1193
        %v4052 = vunpack.c.h.b16 %v1193
        %v4053 = vunpack.c.l.b16 %v1194
        %v4054 = vunpack.c.h.b16 %v1194
        %v4055 = vunpack.c.l.b16 %v1195
        %v4056 = vunpack.c.h.b16 %v1195
        %v4057 = vunpack.c.l.b16 %v1196
        %v4058 = vunpack.c.h.b16 %v1196
        %v4059 = vunpack.c.l.b16 %v1197
        %v4060 = vunpack.c.h.b16 %v1197
        %v4061 = vunpack.c.l.b16 %v1198
        %v4062 = vunpack.c.h.b16 %v1198
        %v4063 = vunpack.c.l.b16 %v1199
        %v4064 = vunpack.c.h.b16 %v1199
        %v4065 = vunpack.c.l.b16 %v1200
        %v4066 = vunpack.c.h.b16 %v1200
        %v4067 = vunpack.c.l.b16 %v1201
        %v4068 = vunpack.c.h.b16 %v1201
        %v4069 = vunpack.c.l.b16 %v1202
        %v4070 = vunpack.c.h.b16 %v1202
        %v4071 = vunpack.c.l.b16 %v1203
        %v4072 = vunpack.c.h.b16 %v1203
        %v4073 = vunpack.c.l.b16 %v1204
        %v4074 = vunpack.c.h.b16 %v1204
        %v4075 = vunpack.c.l.b16 %v1205
        %v4076 = vunpack.c.h.b16 %v1205
        %v4077 = vunpack.c.l.b16 %v1206
        %v4078 = vunpack.c.h.b16 %v1206
        %v4079 = vunpack.c.l.b16 %v1207
        %v4080 = vunpack.c.h.b16 %v1207
        %v4081 = vunpack.c.l.b16 %v1208
        %v4082 = vunpack.c.h.b16 %v1208
        %v4083 = vunpack.c.l.b16 %v1209
        %v4084 = vunpack.c.h.b16 %v1209
        %v4085 = vunpack.c.l.b16 %v1210
        %v4086 = vunpack.c.h.b16 %v1210
        %v4087 = vunpack.c.l.b16 %v1211
        %v4088 = vunpack.c.h.b16 %v1211
        %v4089 = vunpack.c.l.b16 %v1212
        %v4090 = vunpack.c.h.b16 %v1212
        %v4091 = vunpack.c.l.b16 %v1213
        %v4092 = vunpack.c.h.b16 %v1213
        %v4093 = vunpack.c.l.b16 %v1214
        %v4094 = vunpack.c.h.b16 %v1214
        %v4095 = vunpack.c.l.b16 %v1215
        %v4096 = vunpack.c.h.b16 %v1215
        %v4097 = vunpack.c.l.b16 %v1216
        %v4098 = vunpack.c.h.b16 %v1216
        %v4099 = vunpack.c.l.b16 %v1217
        %v4100 = vunpack.c.h.b16 %v1217
        %v4101 = vunpack.c.l.b16 %v1218
        %v4102 = vunpack.c.h.b16 %v1218
        %v4103 = vunpack.c.l.b16 %v1219
        %v4104 = vunpack.c.h.b16 %v1219
        %v4105 = vunpack.c.l.b16 %v1220
        %v4106 = vunpack.c.h.b16 %v1220
        %v4107 = vunpack.c.l.b16 %v1221
        %v4108 = vunpack.c.h.b16 %v1221
        %v4109 = vunpack.c.l.b16 %v1222
        %v4110 = vunpack.c.h.b16 %v1222
        %v4111 = vunpack.c.l.b16 %v1223
        %v4112 = vunpack.c.h.b16 %v1223
        %v4113 = vunpack.c.l.b16 %v1224
        %v4114 = vunpack.c.h.b16 %v1224
        %v4115 = vunpack.c.l.b16 %v1225
        %v4116 = vunpack.c.h.b16 %v1225
        %v4117 = vpack.c.b16 %v2329, %v2325
        %v4118 = vpack.c.b16 %v2330, %v2326
        %v4119 = vpack.c.b16 %v2331, %v2327
        %v4120 = vpack.c.b16 %v2332, %v2328
        %v4121 = vpack.c.b16 %v2337, %v2333
        %v4122 = vpack.c.b16 %v2338, %v2334
        %v4123 = vpack.c.b16 %v2339, %v2335
        %v4124 = vpack.c.b16 %v2340, %v2336
        %v4125 = vpack.c.b16 %v2345, %v2341
        %v4126 = vpack.c.b16 %v2346, %v2342
        %v4127 = vpack.c.b16 %v2347, %v2343
        %v4128 = vpack.c.b16 %v2348, %v2344
        %v4129 = vpack.c.b16 %v2353, %v2349
        %v4130 = vpack.c.b16 %v2354, %v2350
        %v4131 = vpack.c.b16 %v2355, %v2351
        %v4132 = vpack.c.b16 %v2356, %v2352
        %v4133 = vpack.c.b16 %v2361, %v2357
        %v4134 = vpack.c.b16 %v2362, %v2358
        %v4135 = vpack.c.b16 %v2363, %v2359
        %v4136 = vpack.c.b16 %v2364, %v2360
        %v4137 = vpack.c.b16 %v2369, %v2365
        %v4138 = vpack.c.b16 %v2370, %v2366
        %v4139 = vpack.c.b16 %v2371, %v2367
        %v4140 = vpack.c.b16 %v2372, %v2368
        %v4141 = vpack.c.b16 %v2377, %v2373
        %v4142 = vpack.c.b16 %v2378, %v2374
        %v4143 = vpack.c.b16 %v2379, %v2375
        %v4144 = vpack.c.b16 %v2380, %v2376
        %v4145 = vpack.c.b16 %v2385, %v2381
        %v4146 = vpack.c.b16 %v2386, %v2382
        %v4147 = vpack.c.b16 %v2387, %v2383
        %v4148 = vpack.c.b16 %v2388, %v2384
        %v4149 = vpack.c.b16 %v2393, %v2389
        %v4150 = vpack.c.b16 %v2394, %v2390
        %v4151 = vpack.c.b16 %v2395, %v2391
        %v4152 = vpack.c.b16 %v2396, %v2392
        %v4153 = vpack.c.b16 %v2401, %v2397
        %v4154 = vpack.c.b16 %v2402, %v2398
        %v4155 = vpack.c.b16 %v2403, %v2399
        %v4156 = vpack.c.b16 %v2404, %v2400
        %v4157 = vpack.c.b16 %v2409, %v2405
        %v4158 = vpack.c.b16 %v2410, %v2406
        %v4159 = vpack.c.b16 %v2411, %v2407
        %v4160 = vpack.c.b16 %v2412, %v2408
        %v4161 = vpack.c.b16 %v2417, %v2413
        %v4162 = vpack.c.b16 %v2418, %v2414
        %v4163 = vpack.c.b16 %v2419, %v2415
        %v4164 = vpack.c.b16 %v2420, %v2416
        %v4165 = vpack.c.b16 %v2425, %v2421
        %v4166 = vpack.c.b16 %v2426, %v2422
        %v4167 = vpack.c.b16 %v2427, %v2423
        %v4168 = vpack.c.b16 %v2428, %v2424
        %v4169 = vpack.c.b16 %v2433, %v2429
        %v4170 = vpack.c.b16 %v2434, %v2430
        %v4171 = vpack.c.b16 %v2435, %v2431
        %v4172 = vpack.c.b16 %v2436, %v2432
        %v4173 = vpack.c.b16 %v2441, %v2437
        %v4174 = vpack.c.b16 %v2442, %v2438
        %v4175 = vpack.c.b16 %v2443, %v2439
        %v4176 = vpack.c.b16 %v2444, %v2440
        %v4177 = vpack.c.b16 %v2449, %v2445
        %v4178 = vpack.c.b16 %v2450, %v2446
        %v4179 = vpack.c.b16 %v2451, %v2447
        %v4180 = vpack.c.b16 %v2452, %v2448
        %v4181 = vpack.c.b16 %v2457, %v2453
        %v4182 = vpack.c.b16 %v2458, %v2454
        %v4183 = vpack.c.b16 %v2459, %v2455
        %v4184 = vpack.c.b16 %v2460, %v2456
        %v4185 = vpack.c.b16 %v2465, %v2461
        %v4186 = vpack.c.b16 %v2466, %v2462
        %v4187 = vpack.c.b16 %v2467, %v2463
        %v4188 = vpack.c.b16 %v2468, %v2464
        %v4189 = vpack.c.b16 %v2473, %v2469
        %v4190 = vpack.c.b16 %v2474, %v2470
        %v4191 = vpack.c.b16 %v2475, %v2471
        %v4192 = vpack.c.b16 %v2476, %v2472
        %v4193 = vpack.c.b16 %v2481, %v2477
        %v4194 = vpack.c.b16 %v2482, %v2478
        %v4195 = vpack.c.b16 %v2483, %v2479
        %v4196 = vpack.c.b16 %v2484, %v2480
        %v4197 = vpack.c.b16 %v2489, %v2485
        %v4198 = vpack.c.b16 %v2490, %v2486
        %v4199 = vpack.c.b16 %v2491, %v2487
        %v4200 = vpack.c.b16 %v2492, %v2488
        %v4201 = vpack.c.b16 %v2497, %v2493
        %v4202 = vpack.c.b16 %v2498, %v2494
        %v4203 = vpack.c.b16 %v2499, %v2495
        %v4204 = vpack.c.b16 %v2500, %v2496
        %v4205 = vpack.c.b16 %v2505, %v2501
        %v4206 = vpack.c.b16 %v2506, %v2502
        %v4207 = vpack.c.b16 %v2507, %v2503
        %v4208 = vpack.c.b16 %v2508, %v2504
        %v4209 = vpack.c.b16 %v2513, %v2509
        %v4210 = vpack.c.b16 %v2514, %v2510
        %v4211 = vpack.c.b16 %v2515, %v2511
        %v4212 = vpack.c.b16 %v2516, %v2512
        %v4213 = vpack.c.b16 %v2521, %v2517
        %v4214 = vpack.c.b16 %v2522, %v2518
        %v4215 = vpack.c.b16 %v2523, %v2519
        %v4216 = vpack.c.b16 %v2524, %v2520
        %v4217 = vpack.c.b16 %v2529, %v2525
        %v4218 = vpack.c.b16 %v2530, %v2526
        %v4219 = vpack.c.b16 %v2531, %v2527
        %v4220 = vpack.c.b16 %v2532, %v2528
        %v4221 = vpack.c.b16 %v2537, %v2533
        %v4222 = vpack.c.b16 %v2538, %v2534
        %v4223 = vpack.c.b16 %v2539, %v2535
        %v4224 = vpack.c.b16 %v2540, %v2536
        %v4225 = vpack.c.b16 %v2545, %v2541
        %v4226 = vpack.c.b16 %v2546, %v2542
        %v4227 = vpack.c.b16 %v2547, %v2543
        %v4228 = vpack.c.b16 %v2548, %v2544
        %v4229 = vpack.c.b16 %v2553, %v2549
        %v4230 = vpack.c.b16 %v2554, %v2550
        %v4231 = vpack.c.b16 %v2555, %v2551
        %v4232 = vpack.c.b16 %v2556, %v2552
        %v4233 = vpack.c.b16 %v2561, %v2557
        %v4234 = vpack.c.b16 %v2562, %v2558
        %v4235 = vpack.c.b16 %v2563, %v2559
        %v4236 = vpack.c.b16 %v2564, %v2560
        %v4237 = vpack.c.b16 %v2569, %v2565
        %v4238 = vpack.c.b16 %v2570, %v2566
        %v4239 = vpack.c.b16 %v2571, %v2567
        %v4240 = vpack.c.b16 %v2572, %v2568
        %v4241 = vpack.c.b16 %v2577, %v2573
        %v4242 = vpack.c.b16 %v2578, %v2574
        %v4243 = vpack.c.b16 %v2579, %v2575
        %v4244 = vpack.c.b16 %v2580, %v2576
        %v4245 = vpack.c.b16 %v2585, %v2581
        %v4246 = vpack.c.b16 %v2586, %v2582
        %v4247 = vpack.c.b16 %v2587, %v2583
        %v4248 = vpack.c.b16 %v2588, %v2584
        %v4249 = vpack.c.b16 %v2593, %v2589
        %v4250 = vpack.c.b16 %v2594, %v2590
        %v4251 = vpack.c.b16 %v2595, %v2591
        %v4252 = vpack.c.b16 %v2596, %v2592
        %v4253 = vpack.c.b16 %v2601, %v2597
        %v4254 = vpack.c.b16 %v2602, %v2598
        %v4255 = vpack.c.b16 %v2603, %v2599
        %v4256 = vpack.c.b16 %v2604, %v2600
        %v4257 = vpack.c.b16 %v2609, %v2605
        %v4258 = vpack.c.b16 %v2610, %v2606
        %v4259 = vpack.c.b16 %v2611, %v2607
        %v4260 = vpack.c.b16 %v2612, %v2608
        %v4261 = vpack.c.b16 %v2617, %v2613
        %v4262 = vpack.c.b16 %v2618, %v2614
        %v4263 = vpack.c.b16 %v2619, %v2615
        %v4264 = vpack.c.b16 %v2620, %v2616
        %v4265 = vpack.c.b16 %v2625, %v2621
        %v4266 = vpack.c.b16 %v2626, %v2622
        %v4267 = vpack.c.b16 %v2627, %v2623
        %v4268 = vpack.c.b16 %v2628, %v2624
        %v4269 = vpack.c.b16 %v2633, %v2629
        %v4270 = vpack.c.b16 %v2634, %v2630
        %v4271 = vpack.c.b16 %v2635, %v2631
        %v4272 = vpack.c.b16 %v2636, %v2632
        %v4273 = vpack.c.b16 %v2641, %v2637
        %v4274 = vpack.c.b16 %v2642, %v2638
        %v4275 = vpack.c.b16 %v2643, %v2639
        %v4276 = vpack.c.b16 %v2644, %v2640
        %v4277 = vpack.c.b16 %v2649, %v2645
        %v4278 = vpack.c.b16 %v2650, %v2646
        %v4279 = vpack.c.b16 %v2651, %v2647
        %v4280 = vpack.c.b16 %v2652, %v2648
        %v4281 = vpack.c.b16 %v2657, %v2653
        %v4282 = vpack.c.b16 %v2658, %v2654
        %v4283 = vpack.c.b16 %v2659, %v2655
        %v4284 = vpack.c.b16 %v2660, %v2656
        %v4285 = vpack.c.b16 %v2665, %v2661
        %v4286 = vpack.c.b16 %v2666, %v2662
        %v4287 = vpack.c.b16 %v2667, %v2663
        %v4288 = vpack.c.b16 %v2668, %v2664
        %v4289 = vpack.c.b16 %v2673, %v2669
        %v4290 = vpack.c.b16 %v2674, %v2670
        %v4291 = vpack.c.b16 %v2675, %v2671
        %v4292 = vpack.c.b16 %v2676, %v2672
        %v4293 = vpack.c.b16 %v2681, %v2677
        %v4294 = vpack.c.b16 %v2682, %v2678
        %v4295 = vpack.c.b16 %v2683, %v2679
        %v4296 = vpack.c.b16 %v2684, %v2680
        %v4297 = vpack.c.b16 %v2689, %v2685
        %v4298 = vpack.c.b16 %v2690, %v2686
        %v4299 = vpack.c.b16 %v2691, %v2687
        %v4300 = vpack.c.b16 %v2692, %v2688
        %v4301 = vpack.c.b16 %v2697, %v2693
        %v4302 = vpack.c.b16 %v2698, %v2694
        %v4303 = vpack.c.b16 %v2699, %v2695
        %v4304 = vpack.c.b16 %v2700, %v2696
        %v4305 = vpack.c.b16 %v2705, %v2701
        %v4306 = vpack.c.b16 %v2706, %v2702
        %v4307 = vpack.c.b16 %v2707, %v2703
        %v4308 = vpack.c.b16 %v2708, %v2704
        %v4309 = vpack.c.b16 %v2713, %v2709
        %v4310 = vpack.c.b16 %v2714, %v2710
        %v4311 = vpack.c.b16 %v2715, %v2711
        %v4312 = vpack.c.b16 %v2716, %v2712
        %v4313 = vpack.c.b16 %v2721, %v2717
        %v4314 = vpack.c.b16 %v2722, %v2718
        %v4315 = vpack.c.b16 %v2723, %v2719
        %v4316 = vpack.c.b16 %v2724, %v2720
        %v4317 = vpack.c.b16 %v2729, %v2725
        %v4318 = vpack.c.b16 %v2730, %v2726
        %v4319 = vpack.c.b16 %v2731, %v2727
        %v4320 = vpack.c.b16 %v2732, %v2728
        %v4321 = vpack.c.b16 %v2737, %v2733
        %v4322 = vpack.c.b16 %v2738, %v2734
        %v4323 = vpack.c.b16 %v2739, %v2735
        %v4324 = vpack.c.b16 %v2740, %v2736
        %v4325 = vpack.c.b16 %v2745, %v2741
        %v4326 = vpack.c.b16 %v2746, %v2742
        %v4327 = vpack.c.b16 %v2747, %v2743
        %v4328 = vpack.c.b16 %v2748, %v2744
        %v4329 = vpack.c.b16 %v2753, %v2749
        %v4330 = vpack.c.b16 %v2754, %v2750
        %v4331 = vpack.c.b16 %v2755, %v2751
        %v4332 = vpack.c.b16 %v2756, %v2752
        %v4333 = vpack.c.b16 %v2761, %v2757
        %v4334 = vpack.c.b16 %v2762, %v2758
        %v4335 = vpack.c.b16 %v2763, %v2759
        %v4336 = vpack.c.b16 %v2764, %v2760
        %v4337 = vpack.c.b16 %v2769, %v2765
        %v4338 = vpack.c.b16 %v2770, %v2766
        %v4339 = vpack.c.b16 %v2771, %v2767
        %v4340 = vpack.c.b16 %v2772, %v2768
        %v4341 = vpack.c.b16 %v2777, %v2773
        %v4342 = vpack.c.b16 %v2778, %v2774
        %v4343 = vpack.c.b16 %v2779, %v2775
        %v4344 = vpack.c.b16 %v2780, %v2776
        %v4345 = vpack.c.b16 %v2785, %v2781
        %v4346 = vpack.c.b16 %v2786, %v2782
        %v4347 = vpack.c.b16 %v2787, %v2783
        %v4348 = vpack.c.b16 %v2788, %v2784
        %v4349 = vpack.c.b16 %v2793, %v2789
        %v4350 = vpack.c.b16 %v2794, %v2790
        %v4351 = vpack.c.b16 %v2795, %v2791
        %v4352 = vpack.c.b16 %v2796, %v2792
        %v4353 = vpack.c.b16 %v2801, %v2797
        %v4354 = vpack.c.b16 %v2802, %v2798
        %v4355 = vpack.c.b16 %v2803, %v2799
        %v4356 = vpack.c.b16 %v2804, %v2800
        %v4357 = vpack.c.b16 %v2809, %v2805
        %v4358 = vpack.c.b16 %v2810, %v2806
        %v4359 = vpack.c.b16 %v2811, %v2807
        %v4360 = vpack.c.b16 %v2812, %v2808
        %v4361 = vpack.c.b16 %v2817, %v2813
        %v4362 = vpack.c.b16 %v2818, %v2814
        %v4363 = vpack.c.b16 %v2819, %v2815
        %v4364 = vpack.c.b16 %v2820, %v2816
        %v4365 = vpack.c.b16 %v2825, %v2821
        %v4366 = vpack.c.b16 %v2826, %v2822
        %v4367 = vpack.c.b16 %v2827, %v2823
        %v4368 = vpack.c.b16 %v2828, %v2824
        %v4369 = vpack.c.b16 %v2833, %v2829
        %v4370 = vpack.c.b16 %v2834, %v2830
        %v4371 = vpack.c.b16 %v2835, %v2831
        %v4372 = vpack.c.b16 %v2836, %v2832
        %v4373 = vpack.c.b16 %v2841, %v2837
        %v4374 = vpack.c.b16 %v2842, %v2838
        %v4375 = vpack.c.b16 %v2843, %v2839
        %v4376 = vpack.c.b16 %v2844, %v2840
        %v4377 = vpack.c.b16 %v2849, %v2845
        %v4378 = vpack.c.b16 %v2850, %v2846
        %v4379 = vpack.c.b16 %v2851, %v2847
        %v4380 = vpack.c.b16 %v2852, %v2848
        %v4381 = vpack.c.b16 %v2857, %v2853
        %v4382 = vpack.c.b16 %v2858, %v2854
        %v4383 = vpack.c.b16 %v2859, %v2855
        %v4384 = vpack.c.b16 %v2860, %v2856
        %v4385 = vpack.c.b16 %v2865, %v2861
        %v4386 = vpack.c.b16 %v2866, %v2862
        %v4387 = vpack.c.b16 %v2867, %v2863
        %v4388 = vpack.c.b16 %v2868, %v2864
        %v4389 = vpack.c.b16 %v2873, %v2869
        %v4390 = vpack.c.b16 %v2874, %v2870
        %v4391 = vpack.c.b16 %v2875, %v2871
        %v4392 = vpack.c.b16 %v2876, %v2872
        %v4393 = vpack.c.b16 %v2881, %v2877
        %v4394 = vpack.c.b16 %v2882, %v2878
        %v4395 = vpack.c.b16 %v2883, %v2879
        %v4396 = vpack.c.b16 %v2884, %v2880
        %v4397 = vpack.c.b16 %v2889, %v2885
        %v4398 = vpack.c.b16 %v2890, %v2886
        %v4399 = vpack.c.b16 %v2891, %v2887
        %v4400 = vpack.c.b16 %v2892, %v2888
        %v4401 = vpack.c.b16 %v2897, %v2893
        %v4402 = vpack.c.b16 %v2898, %v2894
        %v4403 = vpack.c.b16 %v2899, %v2895
        %v4404 = vpack.c.b16 %v2900, %v2896
        %v4405 = vpack.c.b16 %v2905, %v2901
        %v4406 = vpack.c.b16 %v2906, %v2902
        %v4407 = vpack.c.b16 %v2907, %v2903
        %v4408 = vpack.c.b16 %v2908, %v2904
        %v4409 = vpack.c.b16 %v2913, %v2909
        %v4410 = vpack.c.b16 %v2914, %v2910
        %v4411 = vpack.c.b16 %v2915, %v2911
        %v4412 = vpack.c.b16 %v2916, %v2912
        %v4413 = vpack.c.b16 %v2921, %v2917
        %v4414 = vpack.c.b16 %v2922, %v2918
        %v4415 = vpack.c.b16 %v2923, %v2919
        %v4416 = vpack.c.b16 %v2924, %v2920
        %v4417 = vpack.c.b16 %v2929, %v2925
        %v4418 = vpack.c.b16 %v2930, %v2926
        %v4419 = vpack.c.b16 %v2931, %v2927
        %v4420 = vpack.c.b16 %v2932, %v2928
        %v4421 = vpack.c.b16 %v2937, %v2933
        %v4422 = vpack.c.b16 %v2938, %v2934
        %v4423 = vpack.c.b16 %v2939, %v2935
        %v4424 = vpack.c.b16 %v2940, %v2936
        %v4425 = vpack.c.b16 %v2945, %v2941
        %v4426 = vpack.c.b16 %v2946, %v2942
        %v4427 = vpack.c.b16 %v2947, %v2943
        %v4428 = vpack.c.b16 %v2948, %v2944
        %v4429 = vpack.c.b16 %v2953, %v2949
        %v4430 = vpack.c.b16 %v2954, %v2950
        %v4431 = vpack.c.b16 %v2955, %v2951
        %v4432 = vpack.c.b16 %v2956, %v2952
        %v4433 = vpack.c.b16 %v2961, %v2957
        %v4434 = vpack.c.b16 %v2962, %v2958
        %v4435 = vpack.c.b16 %v2963, %v2959
        %v4436 = vpack.c.b16 %v2964, %v2960
        %v4437 = vpack.c.b16 %v2969, %v2965
        %v4438 = vpack.c.b16 %v2970, %v2966
        %v4439 = vpack.c.b16 %v2971, %v2967
        %v4440 = vpack.c.b16 %v2972, %v2968
        %v4441 = vpack.c.b16 %v2977, %v2973
        %v4442 = vpack.c.b16 %v2978, %v2974
        %v4443 = vpack.c.b16 %v2979, %v2975
        %v4444 = vpack.c.b16 %v2980, %v2976
        %v4445 = vpack.c.b16 %v2985, %v2981
        %v4446 = vpack.c.b16 %v2986, %v2982
        %v4447 = vpack.c.b16 %v2987, %v2983
        %v4448 = vpack.c.b16 %v2988, %v2984
        %v4449 = vpack.c.b16 %v2993, %v2989
        %v4450 = vpack.c.b16 %v2994, %v2990
        %v4451 = vpack.c.b16 %v2995, %v2991
        %v4452 = vpack.c.b16 %v2996, %v2992
        %v4453 = vpack.c.b16 %v3001, %v2997
        %v4454 = vpack.c.b16 %v3002, %v2998
        %v4455 = vpack.c.b16 %v3003, %v2999
        %v4456 = vpack.c.b16 %v3004, %v3000
        %v4457 = vpack.c.b16 %v3009, %v3005
        %v4458 = vpack.c.b16 %v3010, %v3006
        %v4459 = vpack.c.b16 %v3011, %v3007
        %v4460 = vpack.c.b16 %v3012, %v3008
        %v4461 = vpack.c.b16 %v3017, %v3013
        %v4462 = vpack.c.b16 %v3018, %v3014
        %v4463 = vpack.c.b16 %v3019, %v3015
        %v4464 = vpack.c.b16 %v3020, %v3016
        %v4465 = vpack.c.b16 %v3025, %v3021
        %v4466 = vpack.c.b16 %v3026, %v3022
        %v4467 = vpack.c.b16 %v3027, %v3023
        %v4468 = vpack.c.b16 %v3028, %v3024
        %v4469 = vpack.c.b16 %v3033, %v3029
        %v4470 = vpack.c.b16 %v3034, %v3030
        %v4471 = vpack.c.b16 %v3035, %v3031
        %v4472 = vpack.c.b16 %v3036, %v3032
        %v4473 = vpack.c.b16 %v3041, %v3037
        %v4474 = vpack.c.b16 %v3042, %v3038
        %v4475 = vpack.c.b16 %v3043, %v3039
        %v4476 = vpack.c.b16 %v3044, %v3040
        %v4477 = vpack.c.b16 %v3049, %v3045
        %v4478 = vpack.c.b16 %v3050, %v3046
        %v4479 = vpack.c.b16 %v3051, %v3047
        %v4480 = vpack.c.b16 %v3052, %v3048
        %v4481 = vpack.c.b16 %v3057, %v3053
        %v4482 = vpack.c.b16 %v3058, %v3054
        %v4483 = vpack.c.b16 %v3059, %v3055
        %v4484 = vpack.c.b16 %v3060, %v3056
        %v4485 = vpack.c.b16 %v3065, %v3061
        %v4486 = vpack.c.b16 %v3066, %v3062
        %v4487 = vpack.c.b16 %v3067, %v3063
        %v4488 = vpack.c.b16 %v3068, %v3064
        %v4489 = vpack.c.b16 %v3073, %v3069
        %v4490 = vpack.c.b16 %v3074, %v3070
        %v4491 = vpack.c.b16 %v3075, %v3071
        %v4492 = vpack.c.b16 %v3076, %v3072
        %v4493 = vpack.c.b16 %v3081, %v3077
        %v4494 = vpack.c.b16 %v3082, %v3078
        %v4495 = vpack.c.b16 %v3083, %v3079
        %v4496 = vpack.c.b16 %v3084, %v3080
        %v4497 = vpack.c.b16 %v3089, %v3085
        %v4498 = vpack.c.b16 %v3090, %v3086
        %v4499 = vpack.c.b16 %v3091, %v3087
        %v4500 = vpack.c.b16 %v3092, %v3088
        %v4501 = vpack.c.b16 %v3097, %v3093
        %v4502 = vpack.c.b16 %v3098, %v3094
        %v4503 = vpack.c.b16 %v3099, %v3095
        %v4504 = vpack.c.b16 %v3100, %v3096
        %v4505 = vpack.c.b16 %v3105, %v3101
        %v4506 = vpack.c.b16 %v3106, %v3102
        %v4507 = vpack.c.b16 %v3107, %v3103
        %v4508 = vpack.c.b16 %v3108, %v3104
        %v4509 = vpack.c.b16 %v3113, %v3109
        %v4510 = vpack.c.b16 %v3114, %v3110
        %v4511 = vpack.c.b16 %v3115, %v3111
        %v4512 = vpack.c.b16 %v3116, %v3112
        %v4513 = vpack.c.b16 %v3121, %v3117
        %v4514 = vpack.c.b16 %v3122, %v3118
        %v4515 = vpack.c.b16 %v3123, %v3119
        %v4516 = vpack.c.b16 %v3124, %v3120
        %v4517 = vpack.c.b16 %v3129, %v3125
        %v4518 = vpack.c.b16 %v3130, %v3126
        %v4519 = vpack.c.b16 %v3131, %v3127
        %v4520 = vpack.c.b16 %v3132, %v3128
        %v4521 = vpack.c.b16 %v3137, %v3133
        %v4522 = vpack.c.b16 %v3138, %v3134
        %v4523 = vpack.c.b16 %v3139, %v3135
        %v4524 = vpack.c.b16 %v3140, %v3136
        %v4525 = vpack.c.b16 %v3145, %v3141
        %v4526 = vpack.c.b16 %v3146, %v3142
        %v4527 = vpack.c.b16 %v3147, %v3143
        %v4528 = vpack.c.b16 %v3148, %v3144
        %v4529 = vpack.c.b16 %v3153, %v3149
        %v4530 = vpack.c.b16 %v3154, %v3150
        %v4531 = vpack.c.b16 %v3155, %v3151
        %v4532 = vpack.c.b16 %v3156, %v3152
        %v4533 = vpack.c.b16 %v3161, %v3157
        %v4534 = vpack.c.b16 %v3162, %v3158
        %v4535 = vpack.c.b16 %v3163, %v3159
        %v4536 = vpack.c.b16 %v3164, %v3160
        %v4537 = vpack.c.b16 %v3169, %v3165
        %v4538 = vpack.c.b16 %v3170, %v3166
        %v4539 = vpack.c.b16 %v3171, %v3167
        %v4540 = vpack.c.b16 %v3172, %v3168
        %v4541 = vpack.c.b16 %v3177, %v3173
        %v4542 = vpack.c.b16 %v3178, %v3174
        %v4543 = vpack.c.b16 %v3179, %v3175
        %v4544 = vpack.c.b16 %v3180, %v3176
        %v4545 = vpack.c.b16 %v3185, %v3181
        %v4546 = vpack.c.b16 %v3186, %v3182
        %v4547 = vpack.c.b16 %v3187, %v3183
        %v4548 = vpack.c.b16 %v3188, %v3184
        %v4549 = vpack.c.b16 %v3193, %v3189
        %v4550 = vpack.c.b16 %v3194, %v3190
        %v4551 = vpack.c.b16 %v3195, %v3191
        %v4552 = vpack.c.b16 %v3196, %v3192
        %v4553 = vpack.c.b16 %v3201, %v3197
        %v4554 = vpack.c.b16 %v3202, %v3198
        %v4555 = vpack.c.b16 %v3203, %v3199
        %v4556 = vpack.c.b16 %v3204, %v3200
        %v4557 = vpack.c.b16 %v3209, %v3205
        %v4558 = vpack.c.b16 %v3210, %v3206
        %v4559 = vpack.c.b16 %v3211, %v3207
        %v4560 = vpack.c.b16 %v3212, %v3208
        %v4561 = vpack.c.b16 %v3217, %v3213
        %v4562 = vpack.c.b16 %v3218, %v3214
        %v4563 = vpack.c.b16 %v3219, %v3215
        %v4564 = vpack.c.b16 %v3220, %v3216
        %v4565 = vpack.c.b16 %v3225, %v3221
        %v4566 = vpack.c.b16 %v3226, %v3222
        %v4567 = vpack.c.b16 %v3227, %v3223
        %v4568 = vpack.c.b16 %v3228, %v3224
        %v4569 = vpack.c.b16 %v3233, %v3229
        %v4570 = vpack.c.b16 %v3234, %v3230
        %v4571 = vpack.c.b16 %v3235, %v3231
        %v4572 = vpack.c.b16 %v3236, %v3232
        %v4573 = vpack.c.b16 %v3241, %v3237
        %v4574 = vpack.c.b16 %v3242, %v3238
        %v4575 = vpack.c.b16 %v3243, %v3239
        %v4576 = vpack.c.b16 %v3244, %v3240
        %v4577 = vpack.c.b16 %v3249, %v3245
        %v4578 = vpack.c.b16 %v3250, %v3246
        %v4579 = vpack.c.b16 %v3251, %v3247
        %v4580 = vpack.c.b16 %v3252, %v3248
        %v4581 = vpack.c.b16 %v3257, %v3253
        %v4582 = vpack.c.b16 %v3258, %v3254
        %v4583 = vpack.c.b16 %v3259, %v3255
        %v4584 = vpack.c.b16 %v3260, %v3256
        %v4585 = vpack.c.b16 %v3265, %v3261
        %v4586 = vpack.c.b16 %v3266, %v3262
        %v4587 = vpack.c.b16 %v3267, %v3263
        %v4588 = vpack.c.b16 %v3268, %v3264
        %v4589 = vpack.c.b16 %v3273, %v3269
        %v4590 = vpack.c.b16 %v3274, %v3270
        %v4591 = vpack.c.b16 %v3275, %v3271
        %v4592 = vpack.c.b16 %v3276, %v3272
        %v4593 = vpack.c.b16 %v3281, %v3277
        %v4594 = vpack.c.b16 %v3282, %v3278
        %v4595 = vpack.c.b16 %v3283, %v3279
        %v4596 = vpack.c.b16 %v3284, %v3280
        %v4597 = vpack.c.b16 %v3289, %v3285
        %v4598 = vpack.c.b16 %v3290, %v3286
        %v4599 = vpack.c.b16 %v3291, %v3287
        %v4600 = vpack.c.b16 %v3292, %v3288
        %v4601 = vpack.c.b16 %v3297, %v3293
        %v4602 = vpack.c.b16 %v3298, %v3294
        %v4603 = vpack.c.b16 %v3299, %v3295
        %v4604 = vpack.c.b16 %v3300, %v3296
        %v4605 = vpack.c.b16 %v3305, %v3301
        %v4606 = vpack.c.b16 %v3306, %v3302
        %v4607 = vpack.c.b16 %v3307, %v3303
        %v4608 = vpack.c.b16 %v3308, %v3304
        %v4609 = vpack.c.b16 %v3313, %v3309
        %v4610 = vpack.c.b16 %v3314, %v3310
        %v4611 = vpack.c.b16 %v3315, %v3311
        %v4612 = vpack.c.b16 %v3316, %v3312
        %v4613 = vpack.c.b16 %v3321, %v3317
        %v4614 = vpack.c.b16 %v3322, %v3318
        %v4615 = vpack.c.b16 %v3323, %v3319
        %v4616 = vpack.c.b16 %v3324, %v3320
        %v4617 = vpack.c.b16 %v3329, %v3325
        %v4618 = vpack.c.b16 %v3330, %v3326
        %v4619 = vpack.c.b16 %v3331, %v3327
        %v4620 = vpack.c.b16 %v3332, %v3328
        %v4621 = vpack.c.b16 %v3337, %v3333
        %v4622 = vpack.c.b16 %v3338, %v3334
        %v4623 = vpack.c.b16 %v3339, %v3335
        %v4624 = vpack.c.b16 %v3340, %v3336
        %v4625 = vpack.c.b16 %v3345, %v3341
        %v4626 = vpack.c.b16 %v3346, %v3342
        %v4627 = vpack.c.b16 %v3347, %v3343
        %v4628 = vpack.c.b16 %v3348, %v3344
        %v4629 = vpack.c.b16 %v3353, %v3349
        %v4630 = vpack.c.b16 %v3354, %v3350
        %v4631 = vpack.c.b16 %v3355, %v3351
        %v4632 = vpack.c.b16 %v3356, %v3352
        %v4633 = vpack.c.b16 %v3361, %v3357
        %v4634 = vpack.c.b16 %v3362, %v3358
        %v4635 = vpack.c.b16 %v3363, %v3359
        %v4636 = vpack.c.b16 %v3364, %v3360
        %v4637 = vpack.c.b16 %v3369, %v3365
        %v4638 = vpack.c.b16 %v3370, %v3366
        %v4639 = vpack.c.b16 %v3371, %v3367
        %v4640 = vpack.c.b16 %v3372, %v3368
        %v4641 = vpack.c.b16 %v3377, %v3373
        %v4642 = vpack.c.b16 %v3378, %v3374
        %v4643 = vpack.c.b16 %v3379, %v3375
        %v4644 = vpack.c.b16 %v3380, %v3376
        %v4645 = vpack.c.b16 %v3385, %v3381
        %v4646 = vpack.c.b16 %v3386, %v3382
        %v4647 = vpack.c.b16 %v3387, %v3383
        %v4648 = vpack.c.b16 %v3388, %v3384
        %v4649 = vpack.c.b16 %v3393, %v3389
        %v4650 = vpack.c.b16 %v3394, %v3390
        %v4651 = vpack.c.b16 %v3395, %v3391
        %v4652 = vpack.c.b16 %v3396, %v3392
        %v4653 = vpack.c.b16 %v3401, %v3397
        %v4654 = vpack.c.b16 %v3402, %v3398
        %v4655 = vpack.c.b16 %v3403, %v3399
        %v4656 = vpack.c.b16 %v3404, %v3400
        %v4657 = vpack.c.b16 %v3409, %v3405
        %v4658 = vpack.c.b16 %v3410, %v3406
        %v4659 = vpack.c.b16 %v3411, %v3407
        %v4660 = vpack.c.b16 %v3412, %v3408
        %v4661 = vpack.c.b16 %v3417, %v3413
        %v4662 = vpack.c.b16 %v3418, %v3414
        %v4663 = vpack.c.b16 %v3419, %v3415
        %v4664 = vpack.c.b16 %v3420, %v3416
        %v4665 = vpack.c.b16 %v3425, %v3421
        %v4666 = vpack.c.b16 %v3426, %v3422
        %v4667 = vpack.c.b16 %v3427, %v3423
        %v4668 = vpack.c.b16 %v3428, %v3424
        %v4669 = vpack.c.b16 %v3433, %v3429
        %v4670 = vpack.c.b16 %v3434, %v3430
        %v4671 = vpack.c.b16 %v3435, %v3431
        %v4672 = vpack.c.b16 %v3436, %v3432
        %v4673 = vpack.c.b16 %v3441, %v3437
        %v4674 = vpack.c.b16 %v3442, %v3438
        %v4675 = vpack.c.b16 %v3443, %v3439
        %v4676 = vpack.c.b16 %v3444, %v3440
        %v4677 = vpack.c.b16 %v3449, %v3445
        %v4678 = vpack.c.b16 %v3450, %v3446
        %v4679 = vpack.c.b16 %v3451, %v3447
        %v4680 = vpack.c.b16 %v3452, %v3448
        %v4681 = vpack.c.b16 %v3457, %v3453
        %v4682 = vpack.c.b16 %v3458, %v3454
        %v4683 = vpack.c.b16 %v3459, %v3455
        %v4684 = vpack.c.b16 %v3460, %v3456
        %v4685 = vpack.c.b16 %v3465, %v3461
        %v4686 = vpack.c.b16 %v3466, %v3462
        %v4687 = vpack.c.b16 %v3467, %v3463
        %v4688 = vpack.c.b16 %v3468, %v3464
        %v4689 = vpack.c.b16 %v3473, %v3469
        %v4690 = vpack.c.b16 %v3474, %v3470
        %v4691 = vpack.c.b16 %v3475, %v3471
        %v4692 = vpack.c.b16 %v3476, %v3472
        %v4693 = vpack.c.b16 %v3481, %v3477
        %v4694 = vpack.c.b16 %v3482, %v3478
        %v4695 = vpack.c.b16 %v3483, %v3479
        %v4696 = vpack.c.b16 %v3484, %v3480
        %v4697 = vpack.c.b16 %v3489, %v3485
        %v4698 = vpack.c.b16 %v3490, %v3486
        %v4699 = vpack.c.b16 %v3491, %v3487
        %v4700 = vpack.c.b16 %v3492, %v3488
        %v4701 = vpack.c.b16 %v3497, %v3493
        %v4702 = vpack.c.b16 %v3498, %v3494
        %v4703 = vpack.c.b16 %v3499, %v3495
        %v4704 = vpack.c.b16 %v3500, %v3496
        %v4705 = vpack.c.b16 %v3505, %v3501
        %v4706 = vpack.c.b16 %v3506, %v3502
        %v4707 = vpack.c.b16 %v3507, %v3503
        %v4708 = vpack.c.b16 %v3508, %v3504
        %v4709 = vpack.c.b16 %v3513, %v3509
        %v4710 = vpack.c.b16 %v3514, %v3510
        %v4711 = vpack.c.b16 %v3515, %v3511
        %v4712 = vpack.c.b16 %v3516, %v3512
        %v4713 = vpack.c.b16 %v3521, %v3517
        %v4714 = vpack.c.b16 %v3522, %v3518
        %v4715 = vpack.c.b16 %v3523, %v3519
        %v4716 = vpack.c.b16 %v3524, %v3520
        %v4717 = vpack.c.b16 %v3529, %v3525
        %v4718 = vpack.c.b16 %v3530, %v3526
        %v4719 = vpack.c.b16 %v3531, %v3527
        %v4720 = vpack.c.b16 %v3532, %v3528
        %v4721 = vpack.c.b16 %v3537, %v3533
        %v4722 = vpack.c.b16 %v3538, %v3534
        %v4723 = vpack.c.b16 %v3539, %v3535
        %v4724 = vpack.c.b16 %v3540, %v3536
        %v4725 = vpack.c.b16 %v3545, %v3541
        %v4726 = vpack.c.b16 %v3546, %v3542
        %v4727 = vpack.c.b16 %v3547, %v3543
        %v4728 = vpack.c.b16 %v3548, %v3544
        %v4729 = vpack.c.b16 %v3553, %v3549
        %v4730 = vpack.c.b16 %v3554, %v3550
        %v4731 = vpack.c.b16 %v3555, %v3551
        %v4732 = vpack.c.b16 %v3556, %v3552
        %v4733 = vpack.c.b16 %v3561, %v3557
        %v4734 = vpack.c.b16 %v3562, %v3558
        %v4735 = vpack.c.b16 %v3563, %v3559
        %v4736 = vpack.c.b16 %v3564, %v3560
        %v4737 = vpack.c.b16 %v3569, %v3565
        %v4738 = vpack.c.b16 %v3570, %v3566
        %v4739 = vpack.c.b16 %v3571, %v3567
        %v4740 = vpack.c.b16 %v3572, %v3568
        %v4741 = vpack.c.b16 %v3577, %v3573
        %v4742 = vpack.c.b16 %v3578, %v3574
        %v4743 = vpack.c.b16 %v3579, %v3575
        %v4744 = vpack.c.b16 %v3580, %v3576
        %v4745 = vpack.c.b16 %v3585, %v3581
        %v4746 = vpack.c.b16 %v3586, %v3582
        %v4747 = vpack.c.b16 %v3587, %v3583
        %v4748 = vpack.c.b16 %v3588, %v3584
        %v4749 = vpack.c.b16 %v3593, %v3589
        %v4750 = vpack.c.b16 %v3594, %v3590
        %v4751 = vpack.c.b16 %v3595, %v3591
        %v4752 = vpack.c.b16 %v3596, %v3592
        %v4753 = vpack.c.b16 %v3601, %v3597
        %v4754 = vpack.c.b16 %v3602, %v3598
        %v4755 = vpack.c.b16 %v3603, %v3599
        %v4756 = vpack.c.b16 %v3604, %v3600
        %v4757 = vpack.c.b16 %v3609, %v3605
        %v4758 = vpack.c.b16 %v3610, %v3606
        %v4759 = vpack.c.b16 %v3611, %v3607
        %v4760 = vpack.c.b16 %v3612, %v3608
        %v4761 = vpack.c.b16 %v3617, %v3613
        %v4762 = vpack.c.b16 %v3618, %v3614
        %v4763 = vpack.c.b16 %v3619, %v3615
        %v4764 = vpack.c.b16 %v3620, %v3616
        %v4765 = vpack.c.b16 %v3625, %v3621
        %v4766 = vpack.c.b16 %v3626, %v3622
        %v4767 = vpack.c.b16 %v3627, %v3623
        %v4768 = vpack.c.b16 %v3628, %v3624
        %v4769 = vpack.c.b16 %v3633, %v3629
        %v4770 = vpack.c.b16 %v3634, %v3630
        %v4771 = vpack.c.b16 %v3635, %v3631
        %v4772 = vpack.c.b16 %v3636, %v3632
        %v4773 = vpack.c.b16 %v3641, %v3637
        %v4774 = vpack.c.b16 %v3642, %v3638
        %v4775 = vpack.c.b16 %v3643, %v3639
        %v4776 = vpack.c.b16 %v3644, %v3640
        %v4777 = vpack.c.b16 %v3649, %v3645
        %v4778 = vpack.c.b16 %v3650, %v3646
        %v4779 = vpack.c.b16 %v3651, %v3647
        %v4780 = vpack.c.b16 %v3652, %v3648
        %v4781 = vpack.c.b16 %v3657, %v3653
        %v4782 = vpack.c.b16 %v3658, %v3654
        %v4783 = vpack.c.b16 %v3659, %v3655
        %v4784 = vpack.c.b16 %v3660, %v3656
        %v4785 = vpack.c.b16 %v3665, %v3661
        %v4786 = vpack.c.b16 %v3666, %v3662
        %v4787 = vpack.c.b16 %v3667, %v3663
        %v4788 = vpack.c.b16 %v3668, %v3664
        %v4789 = vpack.c.b16 %v3673, %v3669
        %v4790 = vpack.c.b16 %v3674, %v3670
        %v4791 = vpack.c.b16 %v3675, %v3671
        %v4792 = vpack.c.b16 %v3676, %v3672
        %v4793 = vpack.c.b16 %v3681, %v3677
        %v4794 = vpack.c.b16 %v3682, %v3678
        %v4795 = vpack.c.b16 %v3683, %v3679
        %v4796 = vpack.c.b16 %v3684, %v3680
        %v4797 = vpack.c.b16 %v3689, %v3685
        %v4798 = vpack.c.b16 %v3690, %v3686
        %v4799 = vpack.c.b16 %v3691, %v3687
        %v4800 = vpack.c.b16 %v3692, %v3688
        %v4801 = vpack.c.b16 %v3697, %v3693
        %v4802 = vpack.c.b16 %v3698, %v3694
        %v4803 = vpack.c.b16 %v3699, %v3695
        %v4804 = vpack.c.b16 %v3700, %v3696
        %v4805 = vpack.c.b16 %v3705, %v3701
        %v4806 = vpack.c.b16 %v3706, %v3702
        %v4807 = vpack.c.b16 %v3707, %v3703
        %v4808 = vpack.c.b16 %v3708, %v3704
        %v4809 = vpack.c.b16 %v3713, %v3709
        %v4810 = vpack.c.b16 %v3714, %v3710
        %v4811 = vpack.c.b16 %v3715, %v3711
        %v4812 = vpack.c.b16 %v3716, %v3712
        %v4813 = vpack.c.b16 %v3721, %v3717
        %v4814 = vpack.c.b16 %v3722, %v3718
        %v4815 = vpack.c.b16 %v3723, %v3719
        %v4816 = vpack.c.b16 %v3724, %v3720
        %v4817 = vpack.c.b16 %v3729, %v3725
        %v4818 = vpack.c.b16 %v3730, %v3726
        %v4819 = vpack.c.b16 %v3731, %v3727
        %v4820 = vpack.c.b16 %v3732, %v3728
        %v4821 = vpack.c.b16 %v3737, %v3733
        %v4822 = vpack.c.b16 %v3738, %v3734
        %v4823 = vpack.c.b16 %v3739, %v3735
        %v4824 = vpack.c.b16 %v3740, %v3736
        %v4825 = vpack.c.b16 %v3745, %v3741
        %v4826 = vpack.c.b16 %v3746, %v3742
        %v4827 = vpack.c.b16 %v3747, %v3743
        %v4828 = vpack.c.b16 %v3748, %v3744
        %v4829 = vpack.c.b16 %v3753, %v3749
        %v4830 = vpack.c.b16 %v3754, %v3750
        %v4831 = vpack.c.b16 %v3755, %v3751
        %v4832 = vpack.c.b16 %v3756, %v3752
        %v4833 = vpack.c.b16 %v3761, %v3757
        %v4834 = vpack.c.b16 %v3762, %v3758
        %v4835 = vpack.c.b16 %v3763, %v3759
        %v4836 = vpack.c.b16 %v3764, %v3760
        %v4837 = vpack.c.b16 %v3769, %v3765
        %v4838 = vpack.c.b16 %v3770, %v3766
        %v4839 = vpack.c.b16 %v3771, %v3767
        %v4840 = vpack.c.b16 %v3772, %v3768
        %v4841 = vpack.c.b16 %v3777, %v3773
        %v4842 = vpack.c.b16 %v3778, %v3774
        %v4843 = vpack.c.b16 %v3779, %v3775
        %v4844 = vpack.c.b16 %v3780, %v3776
        %v4845 = vpack.c.b16 %v3785, %v3781
        %v4846 = vpack.c.b16 %v3786, %v3782
        %v4847 = vpack.c.b16 %v3787, %v3783
        %v4848 = vpack.c.b16 %v3788, %v3784
        %v4849 = vpack.c.b16 %v3793, %v3789
        %v4850 = vpack.c.b16 %v3794, %v3790
        %v4851 = vpack.c.b16 %v3795, %v3791
        %v4852 = vpack.c.b16 %v3796, %v3792
        %v4853 = vpack.c.b16 %v3801, %v3797
        %v4854 = vpack.c.b16 %v3802, %v3798
        %v4855 = vpack.c.b16 %v3803, %v3799
        %v4856 = vpack.c.b16 %v3804, %v3800
        %v4857 = vpack.c.b16 %v3809, %v3805
        %v4858 = vpack.c.b16 %v3810, %v3806
        %v4859 = vpack.c.b16 %v3811, %v3807
        %v4860 = vpack.c.b16 %v3812, %v3808
        %v4861 = vpack.c.b16 %v3817, %v3813
        %v4862 = vpack.c.b16 %v3818, %v3814
        %v4863 = vpack.c.b16 %v3819, %v3815
        %v4864 = vpack.c.b16 %v3820, %v3816
        %v4865 = vpack.c.b16 %v3825, %v3821
        %v4866 = vpack.c.b16 %v3826, %v3822
        %v4867 = vpack.c.b16 %v3827, %v3823
        %v4868 = vpack.c.b16 %v3828, %v3824
        %v4869 = vpack.c.b16 %v3833, %v3829
        %v4870 = vpack.c.b16 %v3834, %v3830
        %v4871 = vpack.c.b16 %v3835, %v3831
        %v4872 = vpack.c.b16 %v3836, %v3832
        %v4873 = vpack.c.b16 %v3841, %v3837
        %v4874 = vpack.c.b16 %v3842, %v3838
        %v4875 = vpack.c.b16 %v3843, %v3839
        %v4876 = vpack.c.b16 %v3844, %v3840
        %v4877 = vpack.c.b16 %v3849, %v3845
        %v4878 = vpack.c.b16 %v3850, %v3846
        %v4879 = vpack.c.b16 %v3851, %v3847
        %v4880 = vpack.c.b16 %v3852, %v3848
        %v4881 = vpack.c.b16 %v3857, %v3853
        %v4882 = vpack.c.b16 %v3858, %v3854
        %v4883 = vpack.c.b16 %v3859, %v3855
        %v4884 = vpack.c.b16 %v3860, %v3856
        %v4885 = vpack.c.b16 %v3865, %v3861
        %v4886 = vpack.c.b16 %v3866, %v3862
        %v4887 = vpack.c.b16 %v3867, %v3863
        %v4888 = vpack.c.b16 %v3868, %v3864
        %v4889 = vpack.c.b16 %v3873, %v3869
        %v4890 = vpack.c.b16 %v3874, %v3870
        %v4891 = vpack.c.b16 %v3875, %v3871
        %v4892 = vpack.c.b16 %v3876, %v3872
        %v4893 = vpack.c.b16 %v3881, %v3877
        %v4894 = vpack.c.b16 %v3882, %v3878
        %v4895 = vpack.c.b16 %v3883, %v3879
        %v4896 = vpack.c.b16 %v3884, %v3880
        %v4897 = vpack.c.b16 %v3889, %v3885
        %v4898 = vpack.c.b16 %v3890, %v3886
        %v4899 = vpack.c.b16 %v3891, %v3887
        %v4900 = vpack.c.b16 %v3892, %v3888
        %v4901 = vpack.c.b16 %v3897, %v3893
        %v4902 = vpack.c.b16 %v3898, %v3894
        %v4903 = vpack.c.b16 %v3899, %v3895
        %v4904 = vpack.c.b16 %v3900, %v3896
        %v4905 = vpack.c.b16 %v3905, %v3901
        %v4906 = vpack.c.b16 %v3906, %v3902
        %v4907 = vpack.c.b16 %v3907, %v3903
        %v4908 = vpack.c.b16 %v3908, %v3904
        %v4909 = vpack.c.b16 %v3913, %v3909
        %v4910 = vpack.c.b16 %v3914, %v3910
        %v4911 = vpack.c.b16 %v3915, %v3911
        %v4912 = vpack.c.b16 %v3916, %v3912
        %v4913 = vpack.c.b16 %v3921, %v3917
        %v4914 = vpack.c.b16 %v3922, %v3918
        %v4915 = vpack.c.b16 %v3923, %v3919
        %v4916 = vpack.c.b16 %v3924, %v3920
        %v4917 = vpack.c.b16 %v3929, %v3925
        %v4918 = vpack.c.b16 %v3930, %v3926
        %v4919 = vpack.c.b16 %v3931, %v3927
        %v4920 = vpack.c.b16 %v3932, %v3928
        %v4921 = vpack.c.b16 %v3937, %v3933
        %v4922 = vpack.c.b16 %v3938, %v3934
        %v4923 = vpack.c.b16 %v3939, %v3935
        %v4924 = vpack.c.b16 %v3940, %v3936
        %v4925 = vpack.c.b16 %v3945, %v3941
        %v4926 = vpack.c.b16 %v3946, %v3942
        %v4927 = vpack.c.b16 %v3947, %v3943
        %v4928 = vpack.c.b16 %v3948, %v3944
        %v4929 = vpack.c.b16 %v3953, %v3949
        %v4930 = vpack.c.b16 %v3954, %v3950
        %v4931 = vpack.c.b16 %v3955, %v3951
        %v4932 = vpack.c.b16 %v3956, %v3952
        %v4933 = vpack.c.b16 %v3961, %v3957
        %v4934 = vpack.c.b16 %v3962, %v3958
        %v4935 = vpack.c.b16 %v3963, %v3959
        %v4936 = vpack.c.b16 %v3964, %v3960
        %v4937 = vpack.c.b16 %v3969, %v3965
        %v4938 = vpack.c.b16 %v3970, %v3966
        %v4939 = vpack.c.b16 %v3971, %v3967
        %v4940 = vpack.c.b16 %v3972, %v3968
        %v4941 = vpack.c.b16 %v3977, %v3973
        %v4942 = vpack.c.b16 %v3978, %v3974
        %v4943 = vpack.c.b16 %v3979, %v3975
        %v4944 = vpack.c.b16 %v3980, %v3976
        %v4945 = vpack.c.b16 %v3985, %v3981
        %v4946 = vpack.c.b16 %v3986, %v3982
        %v4947 = vpack.c.b16 %v3987, %v3983
        %v4948 = vpack.c.b16 %v3988, %v3984
        %v4949 = vpack.c.b16 %v3993, %v3989
        %v4950 = vpack.c.b16 %v3994, %v3990
        %v4951 = vpack.c.b16 %v3995, %v3991
        %v4952 = vpack.c.b16 %v3996, %v3992
        %v4953 = vpack.c.b16 %v4001, %v3997
        %v4954 = vpack.c.b16 %v4002, %v3998
        %v4955 = vpack.c.b16 %v4003, %v3999
        %v4956 = vpack.c.b16 %v4004, %v4000
        %v4957 = vpack.c.b16 %v4009, %v4005
        %v4958 = vpack.c.b16 %v4010, %v4006
        %v4959 = vpack.c.b16 %v4011, %v4007
        %v4960 = vpack.c.b16 %v4012, %v4008
        %v4961 = vpack.c.b16 %v4017, %v4013
        %v4962 = vpack.c.b16 %v4018, %v4014
        %v4963 = vpack.c.b16 %v4019, %v4015
        %v4964 = vpack.c.b16 %v4020, %v4016
        %v4965 = vpack.c.b16 %v4025, %v4021
        %v4966 = vpack.c.b16 %v4026, %v4022
        %v4967 = vpack.c.b16 %v4027, %v4023
        %v4968 = vpack.c.b16 %v4028, %v4024
        %v4969 = vpack.c.b16 %v4033, %v4029
        %v4970 = vpack.c.b16 %v4034, %v4030
        %v4971 = vpack.c.b16 %v4035, %v4031
        %v4972 = vpack.c.b16 %v4036, %v4032
        %v4973 = vpack.c.b16 %v4041, %v4037
        %v4974 = vpack.c.b16 %v4042, %v4038
        %v4975 = vpack.c.b16 %v4043, %v4039
        %v4976 = vpack.c.b16 %v4044, %v4040
        %v4977 = vpack.c.b16 %v4049, %v4045
        %v4978 = vpack.c.b16 %v4050, %v4046
        %v4979 = vpack.c.b16 %v4051, %v4047
        %v4980 = vpack.c.b16 %v4052, %v4048
        %v4981 = vpack.c.b16 %v4057, %v4053
        %v4982 = vpack.c.b16 %v4058, %v4054
        %v4983 = vpack.c.b16 %v4059, %v4055
        %v4984 = vpack.c.b16 %v4060, %v4056
        %v4985 = vpack.c.b16 %v4065, %v4061
        %v4986 = vpack.c.b16 %v4066, %v4062
        %v4987 = vpack.c.b16 %v4067, %v4063
        %v4988 = vpack.c.b16 %v4068, %v4064
        %v4989 = vpack.c.b16 %v4073, %v4069
        %v4990 = vpack.c.b16 %v4074, %v4070
        %v4991 = vpack.c.b16 %v4075, %v4071
        %v4992 = vpack.c.b16 %v4076, %v4072
        %v4993 = vpack.c.b16 %v4081, %v4077
        %v4994 = vpack.c.b16 %v4082, %v4078
        %v4995 = vpack.c.b16 %v4083, %v4079
        %v4996 = vpack.c.b16 %v4084, %v4080
        %v4997 = vpack.c.b16 %v4089, %v4085
        %v4998 = vpack.c.b16 %v4090, %v4086
        %v4999 = vpack.c.b16 %v4091, %v4087
        %v5000 = vpack.c.b16 %v4092, %v4088
        %v5001 = vpack.c.b16 %v4097, %v4093
        %v5002 = vpack.c.b16 %v4098, %v4094
        %v5003 = vpack.c.b16 %v4099, %v4095
        %v5004 = vpack.c.b16 %v4100, %v4096
        %v5005 = vpack.c.b16 %v4105, %v4101
        %v5006 = vpack.c.b16 %v4106, %v4102
        %v5007 = vpack.c.b16 %v4107, %v4103
        %v5008 = vpack.c.b16 %v4108, %v4104
        %v5009 = vpack.c.b16 %v4113, %v4109
        %v5010 = vpack.c.b16 %v4114, %v4110
        %v5011 = vpack.c.b16 %v4115, %v4111
        %v5012 = vpack.c.b16 %v4116, %v4112
        %5909 = vmatprep.subr.bf16.mxu0 %v4118
        %5910 = vmatpush1.bf16.msra.mxu0 %v4117
        %5911 = vmatprep.subr.bf16.mxu0 %v4122
        %5912 = vmatpush1.bf16.msra.mxu0 %v4121
        %5913 = vmatprep.subr.bf16.mxu0 %v4126
        %5914 = vmatpush1.bf16.msra.mxu0 %v4125
        %5915 = vmatprep.subr.bf16.mxu0 %v4130
        %5916 = vmatpush1.bf16.msra.mxu0 %v4129
        %5917 = vmatprep.subr.bf16.mxu0 %v4134
        %5918 = vmatpush1.bf16.msra.mxu0 %v4133
        %5919 = vmatprep.subr.bf16.mxu0 %v4138
        %5920 = vmatpush1.bf16.msra.mxu0 %v4137
        %5921 = vmatprep.subr.bf16.mxu0 %v4142
        %5922 = vmatpush1.bf16.msra.mxu0 %v4141
        %5923 = vmatprep.subr.bf16.mxu0 %v4146
        %5924 = vmatpush1.bf16.msra.mxu0 %v4145
        %5925 = vmatprep.subr.bf16.mxu0 %v4150
        %5926 = vmatpush1.bf16.msra.mxu0 %v4149
        %5927 = vmatprep.subr.bf16.mxu0 %v4154
        %5928 = vmatpush1.bf16.msra.mxu0 %v4153
        %5929 = vmatprep.subr.bf16.mxu0 %v4158
        %5930 = vmatpush1.bf16.msra.mxu0 %v4157
        %5931 = vmatprep.subr.bf16.mxu0 %v4162
        %5932 = vmatpush1.bf16.msra.mxu0 %v4161
        %5933 = vmatprep.subr.bf16.mxu0 %v4166
        %5934 = vmatpush1.bf16.msra.mxu0 %v4165
        %5935 = vmatprep.subr.bf16.mxu0 %v4170
        %5936 = vmatpush1.bf16.msra.mxu0 %v4169
        %5937 = vmatprep.subr.bf16.mxu0 %v4174
        %5938 = vmatpush1.bf16.msra.mxu0 %v4173
        %5939 = vmatprep.subr.bf16.mxu0 %v4178
        %5940 = vmatpush1.bf16.msra.mxu0 %v4177
        %5941 = vmatprep.mubr.bf16.mxu0 %v1267
        %5942 = vmatmul.mubr.bf16.gmra.mrb[0].mxu0 %v1253
        %v5943 = vpop.f32.mrb[0].mxu0
        %v5944 = vadd.f32 0.0, %v5943
        %v5945 = vpop.f32.mrb[0].mxu0
        %v5946 = vadd.f32 0.0, %v5945
        %v5947 = vpop.f32.mrb[0].mxu0
        %v5948 = vpop.f32.mrb[0].mxu0
        %5949 = vdwg.mxu0
        %5950 = vmatprep.subr.bf16.mxu0 %v4182
        %5951 = vmatpush1.bf16.msra.mxu0 %v4181
        %5952 = vmatprep.subr.bf16.mxu0 %v4186
        %5953 = vmatpush1.bf16.msra.mxu0 %v4185
        %5954 = vmatprep.subr.bf16.mxu0 %v4190
        %5955 = vmatpush1.bf16.msra.mxu0 %v4189
        %5956 = vmatprep.subr.bf16.mxu0 %v4194
        %5957 = vmatpush1.bf16.msra.mxu0 %v4193
        %5958 = vmatprep.subr.bf16.mxu0 %v4198
        %5959 = vmatpush1.bf16.msra.mxu0 %v4197
        %5960 = vmatprep.subr.bf16.mxu0 %v4202
        %5961 = vmatpush1.bf16.msra.mxu0 %v4201
        %5962 = vmatprep.subr.bf16.mxu0 %v4206
        %5963 = vmatpush1.bf16.msra.mxu0 %v4205
        %5964 = vmatprep.subr.bf16.mxu0 %v4210
        %5965 = vmatpush1.bf16.msra.mxu0 %v4209
        %5966 = vmatprep.subr.bf16.mxu0 %v4214
        %5967 = vmatpush1.bf16.msra.mxu0 %v4213
        %5968 = vmatprep.subr.bf16.mxu0 %v4218
        %5969 = vmatpush1.bf16.msra.mxu0 %v4217
        %5970 = vmatprep.subr.bf16.mxu0 %v4222
        %5971 = vmatpush1.bf16.msra.mxu0 %v4221
        %5972 = vmatprep.subr.bf16.mxu0 %v4226
        %5973 = vmatpush1.bf16.msra.mxu0 %v4225
        %5974 = vmatprep.subr.bf16.mxu0 %v4230
        %5975 = vmatpush1.bf16.msra.mxu0 %v4229
        %5976 = vmatprep.subr.bf16.mxu0 %v4234
        %5977 = vmatpush1.bf16.msra.mxu0 %v4233
        %5978 = vmatprep.subr.bf16.mxu0 %v4238
        %5979 = vmatpush1.bf16.msra.mxu0 %v4237
        %5980 = vmatprep.subr.bf16.mxu0 %v4242
        %5981 = vmatpush1.bf16.msra.mxu0 %v4241
        %5982 = vmatprep.mubr.bf16.mxu0 %v1277
        %5983 = vmatmul.mubr.bf16.gmra.mrb[0].mxu0 %v1275
        %v5984 = vpop.f32.mrb[0].mxu0
        %v5985 = vadd.f32 %v5944, %v5984
        %v5986 = vpop.f32.mrb[0].mxu0
        %v5987 = vadd.f32 %v5946, %v5986
        %v5988 = vpop.f32.mrb[0].mxu0
        %v5989 = vpop.f32.mrb[0].mxu0
        %5990 = vdwg.mxu0
        %5991 = vmatprep.subr.bf16.mxu0 %v4246
        %5992 = vmatpush1.bf16.msra.mxu0 %v4245
        %5993 = vmatprep.subr.bf16.mxu0 %v4250
        %5994 = vmatpush1.bf16.msra.mxu0 %v4249
        %5995 = vmatprep.subr.bf16.mxu0 %v4254
        %5996 = vmatpush1.bf16.msra.mxu0 %v4253
        %5997 = vmatprep.subr.bf16.mxu0 %v4258
        %5998 = vmatpush1.bf16.msra.mxu0 %v4257
        %5999 = vmatprep.subr.bf16.mxu0 %v4262
        %6000 = vmatpush1.bf16.msra.mxu0 %v4261
        %6001 = vmatprep.subr.bf16.mxu0 %v4266
        %6002 = vmatpush1.bf16.msra.mxu0 %v4265
        %6003 = vmatprep.subr.bf16.mxu0 %v4270
        %6004 = vmatpush1.bf16.msra.mxu0 %v4269
        %6005 = vmatprep.subr.bf16.mxu0 %v4274
        %6006 = vmatpush1.bf16.msra.mxu0 %v4273
        %6007 = vmatprep.subr.bf16.mxu0 %v4278
        %6008 = vmatpush1.bf16.msra.mxu0 %v4277
        %6009 = vmatprep.subr.bf16.mxu0 %v4282
        %6010 = vmatpush1.bf16.msra.mxu0 %v4281
        %6011 = vmatprep.subr.bf16.mxu0 %v4286
        %6012 = vmatpush1.bf16.msra.mxu0 %v4285
        %6013 = vmatprep.subr.bf16.mxu0 %v4290
        %6014 = vmatpush1.bf16.msra.mxu0 %v4289
        %6015 = vmatprep.subr.bf16.mxu0 %v4294
        %6016 = vmatpush1.bf16.msra.mxu0 %v4293
        %6017 = vmatprep.subr.bf16.mxu0 %v4298
        %6018 = vmatpush1.bf16.msra.mxu0 %v4297
        %6019 = vmatprep.subr.bf16.mxu0 %v4302
        %6020 = vmatpush1.bf16.msra.mxu0 %v4301
        %6021 = vmatprep.subr.bf16.mxu0 %v4306
        %6022 = vmatpush1.bf16.msra.mxu0 %v4305
        %6023 = vmatprep.mubr.bf16.mxu0 %v1274
        %6024 = vmatmul.mubr.bf16.gmra.mrb[0].mxu0 %v1260
        %v6025 = vpop.f32.mrb[0].mxu0
        %v6026 = vadd.f32 %v5985, %v6025
        %v6027 = vpop.f32.mrb[0].mxu0
        %v6028 = vadd.f32 %v5987, %v6027
        %v6029 = vpop.f32.mrb[0].mxu0
        %v6030 = vpop.f32.mrb[0].mxu0
        %6031 = vdwg.mxu0
        %6032 = vmatprep.subr.bf16.mxu0 %v4310
        %6033 = vmatpush1.bf16.msra.mxu0 %v4309
        %6034 = vmatprep.subr.bf16.mxu0 %v4314
        %6035 = vmatpush1.bf16.msra.mxu0 %v4313
        %6036 = vmatprep.subr.bf16.mxu0 %v4318
        %6037 = vmatpush1.bf16.msra.mxu0 %v4317
        %6038 = vmatprep.subr.bf16.mxu0 %v4322
        %6039 = vmatpush1.bf16.msra.mxu0 %v4321
        %6040 = vmatprep.subr.bf16.mxu0 %v4326
        %6041 = vmatpush1.bf16.msra.mxu0 %v4325
        %6042 = vmatprep.subr.bf16.mxu0 %v4330
        %6043 = vmatpush1.bf16.msra.mxu0 %v4329
        %6044 = vmatprep.subr.bf16.mxu0 %v4334
        %6045 = vmatpush1.bf16.msra.mxu0 %v4333
        %6046 = vmatprep.subr.bf16.mxu0 %v4338
        %6047 = vmatpush1.bf16.msra.mxu0 %v4337
        %6048 = vmatprep.subr.bf16.mxu0 %v4342
        %6049 = vmatpush1.bf16.msra.mxu0 %v4341
        %6050 = vmatprep.subr.bf16.mxu0 %v4346
        %6051 = vmatpush1.bf16.msra.mxu0 %v4345
        %6052 = vmatprep.subr.bf16.mxu0 %v4350
        %6053 = vmatpush1.bf16.msra.mxu0 %v4349
        %6054 = vmatprep.subr.bf16.mxu0 %v4354
        %6055 = vmatpush1.bf16.msra.mxu0 %v4353
        %6056 = vmatprep.subr.bf16.mxu0 %v4358
        %6057 = vmatpush1.bf16.msra.mxu0 %v4357
        %6058 = vmatprep.subr.bf16.mxu0 %v4362
        %6059 = vmatpush1.bf16.msra.mxu0 %v4361
        %6060 = vmatprep.subr.bf16.mxu0 %v4366
        %6061 = vmatpush1.bf16.msra.mxu0 %v4365
        %6062 = vmatprep.subr.bf16.mxu0 %v4370
        %6063 = vmatpush1.bf16.msra.mxu0 %v4369
        %6064 = vmatprep.mubr.bf16.mxu0 %v1278
        %6065 = vmatmul.mubr.bf16.gmra.mrb[0].mxu0 %v1276
        %v6066 = vpop.f32.mrb[0].mxu0
        %v6067 = vadd.f32 %v6026, %v6066
        %v6068 = vpop.f32.mrb[0].mxu0
        %v6069 = vadd.f32 %v6028, %v6068
        %v6070 = vpop.f32.mrb[0].mxu0
        %v6071 = vpop.f32.mrb[0].mxu0
        %6072 = vdwg.mxu0
        %6073 = vmatprep.subr.bf16.mxu0 %v4374
        %6074 = vmatpush1.bf16.msra.mxu0 %v4373
        %6075 = vmatprep.subr.bf16.mxu0 %v4378
        %6076 = vmatpush1.bf16.msra.mxu0 %v4377
        %6077 = vmatprep.subr.bf16.mxu0 %v4382
        %6078 = vmatpush1.bf16.msra.mxu0 %v4381
        %6079 = vmatprep.subr.bf16.mxu0 %v4386
        %6080 = vmatpush1.bf16.msra.mxu0 %v4385
        %6081 = vmatprep.subr.bf16.mxu0 %v4390
        %6082 = vmatpush1.bf16.msra.mxu0 %v4389
        %6083 = vmatprep.subr.bf16.mxu0 %v4394
        %6084 = vmatpush1.bf16.msra.mxu0 %v4393
        %6085 = vmatprep.subr.bf16.mxu0 %v4398
        %6086 = vmatpush1.bf16.msra.mxu0 %v4397
        %6087 = vmatprep.subr.bf16.mxu0 %v4402
        %6088 = vmatpush1.bf16.msra.mxu0 %v4401
        %6089 = vmatprep.subr.bf16.mxu0 %v4406
        %6090 = vmatpush1.bf16.msra.mxu0 %v4405
        %6091 = vmatprep.subr.bf16.mxu0 %v4410
        %6092 = vmatpush1.bf16.msra.mxu0 %v4409
        %6093 = vmatprep.subr.bf16.mxu0 %v4414
        %6094 = vmatpush1.bf16.msra.mxu0 %v4413
        %6095 = vmatprep.subr.bf16.mxu0 %v4418
        %6096 = vmatpush1.bf16.msra.mxu0 %v4417
        %6097 = vmatprep.subr.bf16.mxu0 %v4422
        %6098 = vmatpush1.bf16.msra.mxu0 %v4421
        %6099 = vmatprep.subr.bf16.mxu0 %v4426
        %6100 = vmatpush1.bf16.msra.mxu0 %v4425
        %6101 = vmatprep.subr.bf16.mxu0 %v4430
        %6102 = vmatpush1.bf16.msra.mxu0 %v4429
        %6103 = vmatprep.subr.bf16.mxu0 %v4434
        %6104 = vmatpush1.bf16.msra.mxu0 %v4433
        %6105 = vmatprep.mubr.bf16.mxu0 %v1316
        %6106 = vmatmul.mubr.bf16.gmra.mrb[0].mxu0 %v1302
        %v6107 = vpop.f32.mrb[0].mxu0
        %v6108 = vadd.f32 %v6067, %v6107
        %v6109 = vpop.f32.mrb[0].mxu0
        %v6110 = vadd.f32 %v6069, %v6109
        %v6111 = vpop.f32.mrb[0].mxu0
        %v6112 = vpop.f32.mrb[0].mxu0
        %6113 = vdwg.mxu0
        %6114 = vmatprep.subr.bf16.mxu0 %v4438
        %6115 = vmatpush1.bf16.msra.mxu0 %v4437
        %6116 = vmatprep.subr.bf16.mxu0 %v4442
        %6117 = vmatpush1.bf16.msra.mxu0 %v4441
        %6118 = vmatprep.subr.bf16.mxu0 %v4446
        %6119 = vmatpush1.bf16.msra.mxu0 %v4445
        %6120 = vmatprep.subr.bf16.mxu0 %v4450
        %6121 = vmatpush1.bf16.msra.mxu0 %v4449
        %6122 = vmatprep.subr.bf16.mxu0 %v4454
        %6123 = vmatpush1.bf16.msra.mxu0 %v4453
        %6124 = vmatprep.subr.bf16.mxu0 %v4458
        %6125 = vmatpush1.bf16.msra.mxu0 %v4457
        %6126 = vmatprep.subr.bf16.mxu0 %v4462
        %6127 = vmatpush1.bf16.msra.mxu0 %v4461
        %6128 = vmatprep.subr.bf16.mxu0 %v4466
        %6129 = vmatpush1.bf16.msra.mxu0 %v4465
        %6130 = vmatprep.subr.bf16.mxu0 %v4470
        %6131 = vmatpush1.bf16.msra.mxu0 %v4469
        %6132 = vmatprep.subr.bf16.mxu0 %v4474
        %6133 = vmatpush1.bf16.msra.mxu0 %v4473
        %6134 = vmatprep.subr.bf16.mxu0 %v4478
        %6135 = vmatpush1.bf16.msra.mxu0 %v4477
        %6136 = vmatprep.subr.bf16.mxu0 %v4482
        %6137 = vmatpush1.bf16.msra.mxu0 %v4481
        %6138 = vmatprep.subr.bf16.mxu0 %v4486
        %6139 = vmatpush1.bf16.msra.mxu0 %v4485
        %6140 = vmatprep.subr.bf16.mxu0 %v4490
        %6141 = vmatpush1.bf16.msra.mxu0 %v4489
        %6142 = vmatprep.subr.bf16.mxu0 %v4494
        %6143 = vmatpush1.bf16.msra.mxu0 %v4493
        %6144 = vmatprep.subr.bf16.mxu0 %v4498
        %6145 = vmatpush1.bf16.msra.mxu0 %v4497
        %6146 = vmatprep.mubr.bf16.mxu0 %v1326
        %6147 = vmatmul.mubr.bf16.gmra.mrb[0].mxu0 %v1324
        %v6148 = vpop.f32.mrb[0].mxu0
        %v6149 = vadd.f32 %v6108, %v6148
        %v6150 = vpop.f32.mrb[0].mxu0
        %v6151 = vadd.f32 %v6110, %v6150
        %v6152 = vpop.f32.mrb[0].mxu0
        %v6153 = vpop.f32.mrb[0].mxu0
        %6154 = vdwg.mxu0
        %6155 = vmatprep.subr.bf16.mxu0 %v4502
        %6156 = vmatpush1.bf16.msra.mxu0 %v4501
        %6157 = vmatprep.subr.bf16.mxu0 %v4506
        %6158 = vmatpush1.bf16.msra.mxu0 %v4505
        %6159 = vmatprep.subr.bf16.mxu0 %v4510
        %6160 = vmatpush1.bf16.msra.mxu0 %v4509
        %6161 = vmatprep.subr.bf16.mxu0 %v4514
        %6162 = vmatpush1.bf16.msra.mxu0 %v4513
        %6163 = vmatprep.subr.bf16.mxu0 %v4518
        %6164 = vmatpush1.bf16.msra.mxu0 %v4517
        %6165 = vmatprep.subr.bf16.mxu0 %v4522
        %6166 = vmatpush1.bf16.msra.mxu0 %v4521
        %6167 = vmatprep.subr.bf16.mxu0 %v4526
        %6168 = vmatpush1.bf16.msra.mxu0 %v4525
        %6169 = vmatprep.subr.bf16.mxu0 %v4530
        %6170 = vmatpush1.bf16.msra.mxu0 %v4529
        %6171 = vmatprep.subr.bf16.mxu0 %v4534
        %6172 = vmatpush1.bf16.msra.mxu0 %v4533
        %6173 = vmatprep.subr.bf16.mxu0 %v4538
        %6174 = vmatpush1.bf16.msra.mxu0 %v4537
        %6175 = vmatprep.subr.bf16.mxu0 %v4542
        %6176 = vmatpush1.bf16.msra.mxu0 %v4541
        %6177 = vmatprep.subr.bf16.mxu0 %v4546
        %6178 = vmatpush1.bf16.msra.mxu0 %v4545
        %6179 = vmatprep.subr.bf16.mxu0 %v4550
        %6180 = vmatpush1.bf16.msra.mxu0 %v4549
        %6181 = vmatprep.subr.bf16.mxu0 %v4554
        %6182 = vmatpush1.bf16.msra.mxu0 %v4553
        %6183 = vmatprep.subr.bf16.mxu0 %v4558
        %6184 = vmatpush1.bf16.msra.mxu0 %v4557
        %6185 = vmatprep.subr.bf16.mxu0 %v4562
        %6186 = vmatpush1.bf16.msra.mxu0 %v4561
        %6187 = vmatprep.mubr.bf16.mxu0 %v1323
        %6188 = vmatmul.mubr.bf16.gmra.mrb[0].mxu0 %v1309
        %v6189 = vpop.f32.mrb[0].mxu0
        %v6190 = vadd.f32 %v6149, %v6189
        %v6191 = vpop.f32.mrb[0].mxu0
        %v6192 = vadd.f32 %v6151, %v6191
        %v6193 = vpop.f32.mrb[0].mxu0
        %v6194 = vpop.f32.mrb[0].mxu0
        %6195 = vdwg.mxu0
        %6196 = vmatprep.subr.bf16.mxu0 %v4566
        %6197 = vmatpush1.bf16.msra.mxu0 %v4565
        %6198 = vmatprep.subr.bf16.mxu0 %v4570
        %6199 = vmatpush1.bf16.msra.mxu0 %v4569
        %6200 = vmatprep.subr.bf16.mxu0 %v4574
        %6201 = vmatpush1.bf16.msra.mxu0 %v4573
        %6202 = vmatprep.subr.bf16.mxu0 %v4578
        %6203 = vmatpush1.bf16.msra.mxu0 %v4577
        %6204 = vmatprep.subr.bf16.mxu0 %v4582
        %6205 = vmatpush1.bf16.msra.mxu0 %v4581
        %6206 = vmatprep.subr.bf16.mxu0 %v4586
        %6207 = vmatpush1.bf16.msra.mxu0 %v4585
        %6208 = vmatprep.subr.bf16.mxu0 %v4590
        %6209 = vmatpush1.bf16.msra.mxu0 %v4589
        %6210 = vmatprep.subr.bf16.mxu0 %v4594
        %6211 = vmatpush1.bf16.msra.mxu0 %v4593
        %6212 = vmatprep.subr.bf16.mxu0 %v4598
        %6213 = vmatpush1.bf16.msra.mxu0 %v4597
        %6214 = vmatprep.subr.bf16.mxu0 %v4602
        %6215 = vmatpush1.bf16.msra.mxu0 %v4601
        %6216 = vmatprep.subr.bf16.mxu0 %v4606
        %6217 = vmatpush1.bf16.msra.mxu0 %v4605
        %6218 = vmatprep.subr.bf16.mxu0 %v4610
        %6219 = vmatpush1.bf16.msra.mxu0 %v4609
        %6220 = vmatprep.subr.bf16.mxu0 %v4614
        %6221 = vmatpush1.bf16.msra.mxu0 %v4613
        %6222 = vmatprep.subr.bf16.mxu0 %v4618
        %6223 = vmatpush1.bf16.msra.mxu0 %v4617
        %6224 = vmatprep.subr.bf16.mxu0 %v4622
        %6225 = vmatpush1.bf16.msra.mxu0 %v4621
        %6226 = vmatprep.subr.bf16.mxu0 %v4626
        %6227 = vmatpush1.bf16.msra.mxu0 %v4625
        %6228 = vmatprep.mubr.bf16.mxu0 %v1327
        %6229 = vmatmul.mubr.bf16.gmra.mrb[0].mxu0 %v1325
        %v6230 = vpop.f32.mrb[0].mxu0
        %v6231 = vadd.f32 %v6190, %v6230
        %v6232 = vpop.f32.mrb[0].mxu0
        %v6233 = vadd.f32 %v6192, %v6232
        %v6234 = vpop.f32.mrb[0].mxu0
        %v6235 = vpop.f32.mrb[0].mxu0
        %6236 = vdwg.mxu0
        %6237 = vmatprep.subr.bf16.mxu0 %v4630
        %6238 = vmatpush1.bf16.msra.mxu0 %v4629
        %6239 = vmatprep.subr.bf16.mxu0 %v4634
        %6240 = vmatpush1.bf16.msra.mxu0 %v4633
        %6241 = vmatprep.subr.bf16.mxu0 %v4638
        %6242 = vmatpush1.bf16.msra.mxu0 %v4637
        %6243 = vmatprep.subr.bf16.mxu0 %v4642
        %6244 = vmatpush1.bf16.msra.mxu0 %v4641
        %6245 = vmatprep.subr.bf16.mxu0 %v4646
        %6246 = vmatpush1.bf16.msra.mxu0 %v4645
        %6247 = vmatprep.subr.bf16.mxu0 %v4650
        %6248 = vmatpush1.bf16.msra.mxu0 %v4649
        %6249 = vmatprep.subr.bf16.mxu0 %v4654
        %6250 = vmatpush1.bf16.msra.mxu0 %v4653
        %6251 = vmatprep.subr.bf16.mxu0 %v4658
        %6252 = vmatpush1.bf16.msra.mxu0 %v4657
        %6253 = vmatprep.subr.bf16.mxu0 %v4662
        %6254 = vmatpush1.bf16.msra.mxu0 %v4661
        %6255 = vmatprep.subr.bf16.mxu0 %v4666
        %6256 = vmatpush1.bf16.msra.mxu0 %v4665
        %6257 = vmatprep.subr.bf16.mxu0 %v4670
        %6258 = vmatpush1.bf16.msra.mxu0 %v4669
        %6259 = vmatprep.subr.bf16.mxu0 %v4674
        %6260 = vmatpush1.bf16.msra.mxu0 %v4673
        %6261 = vmatprep.subr.bf16.mxu0 %v4678
        %6262 = vmatpush1.bf16.msra.mxu0 %v4677
        %6263 = vmatprep.subr.bf16.mxu0 %v4682
        %6264 = vmatpush1.bf16.msra.mxu0 %v4681
        %6265 = vmatprep.subr.bf16.mxu0 %v4686
        %6266 = vmatpush1.bf16.msra.mxu0 %v4685
        %6267 = vmatprep.subr.bf16.mxu0 %v4690
        %6268 = vmatpush1.bf16.msra.mxu0 %v4689
        %6269 = vmatprep.mubr.bf16.mxu0 %v1365
        %6270 = vmatmul.mubr.bf16.gmra.mrb[0].mxu0 %v1351
        %v6271 = vpop.f32.mrb[0].mxu0
        %v6272 = vadd.f32 %v6231, %v6271
        %v6273 = vpop.f32.mrb[0].mxu0
        %v6274 = vadd.f32 %v6233, %v6273
        %v6275 = vpop.f32.mrb[0].mxu0
        %v6276 = vpop.f32.mrb[0].mxu0
        %6277 = vdwg.mxu0
        %6278 = vmatprep.subr.bf16.mxu0 %v4694
        %6279 = vmatpush1.bf16.msra.mxu0 %v4693
        %6280 = vmatprep.subr.bf16.mxu0 %v4698
        %6281 = vmatpush1.bf16.msra.mxu0 %v4697
        %6282 = vmatprep.subr.bf16.mxu0 %v4702
        %6283 = vmatpush1.bf16.msra.mxu0 %v4701
        %6284 = vmatprep.subr.bf16.mxu0 %v4706
        %6285 = vmatpush1.bf16.msra.mxu0 %v4705
        %6286 = vmatprep.subr.bf16.mxu0 %v4710
        %6287 = vmatpush1.bf16.msra.mxu0 %v4709
        %6288 = vmatprep.subr.bf16.mxu0 %v4714
        %6289 = vmatpush1.bf16.msra.mxu0 %v4713
        %6290 = vmatprep.subr.bf16.mxu0 %v4718
        %6291 = vmatpush1.bf16.msra.mxu0 %v4717
        %6292 = vmatprep.subr.bf16.mxu0 %v4722
        %6293 = vmatpush1.bf16.msra.mxu0 %v4721
        %6294 = vmatprep.subr.bf16.mxu0 %v4726
        %6295 = vmatpush1.bf16.msra.mxu0 %v4725
        %6296 = vmatprep.subr.bf16.mxu0 %v4730
        %6297 = vmatpush1.bf16.msra.mxu0 %v4729
        %6298 = vmatprep.subr.bf16.mxu0 %v4734
        %6299 = vmatpush1.bf16.msra.mxu0 %v4733
        %6300 = vmatprep.subr.bf16.mxu0 %v4738
        %6301 = vmatpush1.bf16.msra.mxu0 %v4737
        %6302 = vmatprep.subr.bf16.mxu0 %v4742
        %6303 = vmatpush1.bf16.msra.mxu0 %v4741
        %6304 = vmatprep.subr.bf16.mxu0 %v4746
        %6305 = vmatpush1.bf16.msra.mxu0 %v4745
        %6306 = vmatprep.subr.bf16.mxu0 %v4750
        %6307 = vmatpush1.bf16.msra.mxu0 %v4749
        %6308 = vmatprep.subr.bf16.mxu0 %v4754
        %6309 = vmatpush1.bf16.msra.mxu0 %v4753
        %6310 = vmatprep.mubr.bf16.mxu0 %v1375
        %6311 = vmatmul.mubr.bf16.gmra.mrb[0].mxu0 %v1373
        %v6312 = vpop.f32.mrb[0].mxu0
        %v6313 = vadd.f32 %v6272, %v6312
        %v6314 = vpop.f32.mrb[0].mxu0
        %v6315 = vadd.f32 %v6274, %v6314
        %v6316 = vpop.f32.mrb[0].mxu0
        %v6317 = vpop.f32.mrb[0].mxu0
        %6318 = vdwg.mxu0
        %6319 = vmatprep.subr.bf16.mxu0 %v4758
        %6320 = vmatpush1.bf16.msra.mxu0 %v4757
        %6321 = vmatprep.subr.bf16.mxu0 %v4762
        %6322 = vmatpush1.bf16.msra.mxu0 %v4761
        %6323 = vmatprep.subr.bf16.mxu0 %v4766
        %6324 = vmatpush1.bf16.msra.mxu0 %v4765
        %6325 = vmatprep.subr.bf16.mxu0 %v4770
        %6326 = vmatpush1.bf16.msra.mxu0 %v4769
        %6327 = vmatprep.subr.bf16.mxu0 %v4774
        %6328 = vmatpush1.bf16.msra.mxu0 %v4773
        %6329 = vmatprep.subr.bf16.mxu0 %v4778
        %6330 = vmatpush1.bf16.msra.mxu0 %v4777
        %6331 = vmatprep.subr.bf16.mxu0 %v4782
        %6332 = vmatpush1.bf16.msra.mxu0 %v4781
        %6333 = vmatprep.subr.bf16.mxu0 %v4786
        %6334 = vmatpush1.bf16.msra.mxu0 %v4785
        %6335 = vmatprep.subr.bf16.mxu0 %v4790
        %6336 = vmatpush1.bf16.msra.mxu0 %v4789
        %6337 = vmatprep.subr.bf16.mxu0 %v4794
        %6338 = vmatpush1.bf16.msra.mxu0 %v4793
        %6339 = vmatprep.subr.bf16.mxu0 %v4798
        %6340 = vmatpush1.bf16.msra.mxu0 %v4797
        %6341 = vmatprep.subr.bf16.mxu0 %v4802
        %6342 = vmatpush1.bf16.msra.mxu0 %v4801
        %6343 = vmatprep.subr.bf16.mxu0 %v4806
        %6344 = vmatpush1.bf16.msra.mxu0 %v4805
        %6345 = vmatprep.subr.bf16.mxu0 %v4810
        %6346 = vmatpush1.bf16.msra.mxu0 %v4809
        %6347 = vmatprep.subr.bf16.mxu0 %v4814
        %6348 = vmatpush1.bf16.msra.mxu0 %v4813
        %6349 = vmatprep.subr.bf16.mxu0 %v4818
        %6350 = vmatpush1.bf16.msra.mxu0 %v4817
        %6351 = vmatprep.mubr.bf16.mxu0 %v1372
        %6352 = vmatmul.mubr.bf16.gmra.mrb[0].mxu0 %v1358
        %v6353 = vpop.f32.mrb[0].mxu0
        %v6354 = vadd.f32 %v6313, %v6353
        %v6355 = vpop.f32.mrb[0].mxu0
        %v6356 = vadd.f32 %v6315, %v6355
        %v6357 = vpop.f32.mrb[0].mxu0
        %v6358 = vpop.f32.mrb[0].mxu0
        %6359 = vdwg.mxu0
        %6360 = vmatprep.subr.bf16.mxu0 %v4822
        %6361 = vmatpush1.bf16.msra.mxu0 %v4821
        %6362 = vmatprep.subr.bf16.mxu0 %v4826
        %6363 = vmatpush1.bf16.msra.mxu0 %v4825
        %6364 = vmatprep.subr.bf16.mxu0 %v4830
        %6365 = vmatpush1.bf16.msra.mxu0 %v4829
        %6366 = vmatprep.subr.bf16.mxu0 %v4834
        %6367 = vmatpush1.bf16.msra.mxu0 %v4833
        %6368 = vmatprep.subr.bf16.mxu0 %v4838
        %6369 = vmatpush1.bf16.msra.mxu0 %v4837
        %6370 = vmatprep.subr.bf16.mxu0 %v4842
        %6371 = vmatpush1.bf16.msra.mxu0 %v4841
        %6372 = vmatprep.subr.bf16.mxu0 %v4846
        %6373 = vmatpush1.bf16.msra.mxu0 %v4845
        %6374 = vmatprep.subr.bf16.mxu0 %v4850
        %6375 = vmatpush1.bf16.msra.mxu0 %v4849
        %6376 = vmatprep.subr.bf16.mxu0 %v4854
        %6377 = vmatpush1.bf16.msra.mxu0 %v4853
        %6378 = vmatprep.subr.bf16.mxu0 %v4858
        %6379 = vmatpush1.bf16.msra.mxu0 %v4857
        %6380 = vmatprep.subr.bf16.mxu0 %v4862
        %6381 = vmatpush1.bf16.msra.mxu0 %v4861
        %6382 = vmatprep.subr.bf16.mxu0 %v4866
        %6383 = vmatpush1.bf16.msra.mxu0 %v4865
        %6384 = vmatprep.subr.bf16.mxu0 %v4870
        %6385 = vmatpush1.bf16.msra.mxu0 %v4869
        %6386 = vmatprep.subr.bf16.mxu0 %v4874
        %6387 = vmatpush1.bf16.msra.mxu0 %v4873
        %6388 = vmatprep.subr.bf16.mxu0 %v4878
        %6389 = vmatpush1.bf16.msra.mxu0 %v4877
        %6390 = vmatprep.subr.bf16.mxu0 %v4882
        %6391 = vmatpush1.bf16.msra.mxu0 %v4881
        %6392 = vmatprep.mubr.bf16.mxu0 %v1376
        %6393 = vmatmul.mubr.bf16.gmra.mrb[0].mxu0 %v1374
        %v6394 = vpop.f32.mrb[0].mxu0
        %v6395 = vadd.f32 %v6354, %v6394
        %v6396 = vpop.f32.mrb[0].mxu0
        %v6397 = vadd.f32 %v6356, %v6396
        %v6398 = vpop.f32.mrb[0].mxu0
        %v6399 = vpop.f32.mrb[0].mxu0
        %6400 = vdwg.mxu0
        %6401 = vmatprep.subr.bf16.mxu0 %v4886
        %6402 = vmatpush1.bf16.msra.mxu0 %v4885
        %6403 = vmatprep.subr.bf16.mxu0 %v4890
        %6404 = vmatpush1.bf16.msra.mxu0 %v4889
        %6405 = vmatprep.subr.bf16.mxu0 %v4894
        %6406 = vmatpush1.bf16.msra.mxu0 %v4893
        %6407 = vmatprep.subr.bf16.mxu0 %v4898
        %6408 = vmatpush1.bf16.msra.mxu0 %v4897
        %6409 = vmatprep.subr.bf16.mxu0 %v4902
        %6410 = vmatpush1.bf16.msra.mxu0 %v4901
        %6411 = vmatprep.subr.bf16.mxu0 %v4906
        %6412 = vmatpush1.bf16.msra.mxu0 %v4905
        %6413 = vmatprep.subr.bf16.mxu0 %v4910
        %6414 = vmatpush1.bf16.msra.mxu0 %v4909
        %6415 = vmatprep.subr.bf16.mxu0 %v4914
        %6416 = vmatpush1.bf16.msra.mxu0 %v4913
        %6417 = vmatprep.subr.bf16.mxu0 %v4918
        %6418 = vmatpush1.bf16.msra.mxu0 %v4917
        %6419 = vmatprep.subr.bf16.mxu0 %v4922
        %6420 = vmatpush1.bf16.msra.mxu0 %v4921
        %6421 = vmatprep.subr.bf16.mxu0 %v4926
        %6422 = vmatpush1.bf16.msra.mxu0 %v4925
        %6423 = vmatprep.subr.bf16.mxu0 %v4930
        %6424 = vmatpush1.bf16.msra.mxu0 %v4929
        %6425 = vmatprep.subr.bf16.mxu0 %v4934
        %6426 = vmatpush1.bf16.msra.mxu0 %v4933
        %6427 = vmatprep.subr.bf16.mxu0 %v4938
        %6428 = vmatpush1.bf16.msra.mxu0 %v4937
        %6429 = vmatprep.subr.bf16.mxu0 %v4942
        %6430 = vmatpush1.bf16.msra.mxu0 %v4941
        %6431 = vmatprep.subr.bf16.mxu0 %v4946
        %6432 = vmatpush1.bf16.msra.mxu0 %v4945
        %6433 = vmatprep.mubr.bf16.mxu0 %v1398
        %6434 = vmatmul.mubr.bf16.gmra.mrb[0].mxu0 %v1391
        %v6435 = vpop.f32.mrb[0].mxu0
        %v6436 = vadd.f32 %v6395, %v6435
        %v6437 = vpop.f32.mrb[0].mxu0
        %v6438 = vadd.f32 %v6397, %v6437
        %v6439 = vpop.f32.mrb[0].mxu0
        %v6440 = vpop.f32.mrb[0].mxu0
        %6441 = vdwg.mxu0
        %6442 = vmatprep.subr.bf16.mxu0 %v4950
        %6443 = vmatpush1.bf16.msra.mxu0 %v4949
        %6444 = vmatprep.subr.bf16.mxu0 %v4954
        %6445 = vmatpush1.bf16.msra.mxu0 %v4953
        %6446 = vmatprep.subr.bf16.mxu0 %v4958
        %6447 = vmatpush1.bf16.msra.mxu0 %v4957
        %6448 = vmatprep.subr.bf16.mxu0 %v4962
        %6449 = vmatpush1.bf16.msra.mxu0 %v4961
        %6450 = vmatprep.subr.bf16.mxu0 %v4966
        %6451 = vmatpush1.bf16.msra.mxu0 %v4965
        %6452 = vmatprep.subr.bf16.mxu0 %v4970
        %6453 = vmatpush1.bf16.msra.mxu0 %v4969
        %6454 = vmatprep.subr.bf16.mxu0 %v4974
        %6455 = vmatpush1.bf16.msra.mxu0 %v4973
        %6456 = vmatprep.subr.bf16.mxu0 %v4978
        %6457 = vmatpush1.bf16.msra.mxu0 %v4977
        %6458 = vmatprep.subr.bf16.mxu0 %v4982
        %6459 = vmatpush1.bf16.msra.mxu0 %v4981
        %6460 = vmatprep.subr.bf16.mxu0 %v4986
        %6461 = vmatpush1.bf16.msra.mxu0 %v4985
        %6462 = vmatprep.subr.bf16.mxu0 %v4990
        %6463 = vmatpush1.bf16.msra.mxu0 %v4989
        %6464 = vmatprep.subr.bf16.mxu0 %v4994
        %6465 = vmatpush1.bf16.msra.mxu0 %v4993
        %6466 = vmatprep.subr.bf16.mxu0 %v4998
        %6467 = vmatpush1.bf16.msra.mxu0 %v4997
        %6468 = vmatprep.subr.bf16.mxu0 %v5002
        %6469 = vmatpush1.bf16.msra.mxu0 %v5001
        %6470 = vmatprep.subr.bf16.mxu0 %v5006
        %6471 = vmatpush1.bf16.msra.mxu0 %v5005
        %6472 = vmatprep.subr.bf16.mxu0 %v5010
        %6473 = vmatpush1.bf16.msra.mxu0 %v5009
        %6474 = vmatprep.mubr.bf16.mxu0 %v1400
        %6475 = vmatmul.mubr.bf16.gmra.mrb[0].mxu0 %v1399
        %v6476 = vpop.f32.mrb[0].mxu0
        %v6477 = vadd.f32 %v6436, %v6476
        %v6478 = vpop.f32.mrb[0].mxu0
        %v6479 = vadd.f32 %v6438, %v6478
        %v6480 = vpop.f32.mrb[0].mxu0
        %v6481 = vpop.f32.mrb[0].mxu0
        %6482 = vdwg.mxu0
        %6483 = vmatprep.subr.bf16.mxu0 %v4120
        %6484 = vmatpush1.bf16.msra.mxu0 %v4119
        %6485 = vmatprep.subr.bf16.mxu0 %v4124
        %6486 = vmatpush1.bf16.msra.mxu0 %v4123
        %6487 = vmatprep.subr.bf16.mxu0 %v4128
        %6488 = vmatpush1.bf16.msra.mxu0 %v4127
        %6489 = vmatprep.subr.bf16.mxu0 %v4132
        %6490 = vmatpush1.bf16.msra.mxu0 %v4131
        %6491 = vmatprep.subr.bf16.mxu0 %v4136
        %6492 = vmatpush1.bf16.msra.mxu0 %v4135
        %6493 = vmatprep.subr.bf16.mxu0 %v4140
        %6494 = vmatpush1.bf16.msra.mxu0 %v4139
        %6495 = vmatprep.subr.bf16.mxu0 %v4144
        %6496 = vmatpush1.bf16.msra.mxu0 %v4143
        %6497 = vmatprep.subr.bf16.mxu0 %v4148
        %6498 = vmatpush1.bf16.msra.mxu0 %v4147
        %6499 = vmatprep.subr.bf16.mxu0 %v4152
        %6500 = vmatpush1.bf16.msra.mxu0 %v4151
        %6501 = vmatprep.subr.bf16.mxu0 %v4156
        %6502 = vmatpush1.bf16.msra.mxu0 %v4155
        %6503 = vmatprep.subr.bf16.mxu0 %v4160
        %6504 = vmatpush1.bf16.msra.mxu0 %v4159
        %6505 = vmatprep.subr.bf16.mxu0 %v4164
        %6506 = vmatpush1.bf16.msra.mxu0 %v4163
        %6507 = vmatprep.subr.bf16.mxu0 %v4168
        %6508 = vmatpush1.bf16.msra.mxu0 %v4167
        %6509 = vmatprep.subr.bf16.mxu0 %v4172
        %6510 = vmatpush1.bf16.msra.mxu0 %v4171
        %6511 = vmatprep.subr.bf16.mxu0 %v4176
        %6512 = vmatpush1.bf16.msra.mxu0 %v4175
        %6513 = vmatprep.subr.bf16.mxu0 %v4180
        %6514 = vmatpush1.bf16.msra.mxu0 %v4179
        %6515 = vmatprep.mubr.bf16.mxu0 %v1267
        %6516 = vmatmul.mubr.bf16.gmra.mrb[0].mxu0 %v1253
        %v6517 = vpop.f32.mrb[0].mxu0
        %v6518 = vadd.f32 0.0, %v6517
        %v6519 = vpop.f32.mrb[0].mxu0
        %v6520 = vadd.f32 0.0, %v6519
        %v6521 = vpop.f32.mrb[0].mxu0
        %v6522 = vpop.f32.mrb[0].mxu0
        %6523 = vdwg.mxu0
        %6524 = vmatprep.subr.bf16.mxu0 %v4184
        %6525 = vmatpush1.bf16.msra.mxu0 %v4183
        %6526 = vmatprep.subr.bf16.mxu0 %v4188
        %6527 = vmatpush1.bf16.msra.mxu0 %v4187
        %6528 = vmatprep.subr.bf16.mxu0 %v4192
        %6529 = vmatpush1.bf16.msra.mxu0 %v4191
        %6530 = vmatprep.subr.bf16.mxu0 %v4196
        %6531 = vmatpush1.bf16.msra.mxu0 %v4195
        %6532 = vmatprep.subr.bf16.mxu0 %v4200
        %6533 = vmatpush1.bf16.msra.mxu0 %v4199
        %6534 = vmatprep.subr.bf16.mxu0 %v4204
        %6535 = vmatpush1.bf16.msra.mxu0 %v4203
        %6536 = vmatprep.subr.bf16.mxu0 %v4208
        %6537 = vmatpush1.bf16.msra.mxu0 %v4207
        %6538 = vmatprep.subr.bf16.mxu0 %v4212
        %6539 = vmatpush1.bf16.msra.mxu0 %v4211
        %6540 = vmatprep.subr.bf16.mxu0 %v4216
        %6541 = vmatpush1.bf16.msra.mxu0 %v4215
        %6542 = vmatprep.subr.bf16.mxu0 %v4220
        %6543 = vmatpush1.bf16.msra.mxu0 %v4219
        %6544 = vmatprep.subr.bf16.mxu0 %v4224
        %6545 = vmatpush1.bf16.msra.mxu0 %v4223
        %6546 = vmatprep.subr.bf16.mxu0 %v4228
        %6547 = vmatpush1.bf16.msra.mxu0 %v4227
        %6548 = vmatprep.subr.bf16.mxu0 %v4232
        %6549 = vmatpush1.bf16.msra.mxu0 %v4231
        %6550 = vmatprep.subr.bf16.mxu0 %v4236
        %6551 = vmatpush1.bf16.msra.mxu0 %v4235
        %6552 = vmatprep.subr.bf16.mxu0 %v4240
        %6553 = vmatpush1.bf16.msra.mxu0 %v4239
        %6554 = vmatprep.subr.bf16.mxu0 %v4244
        %6555 = vmatpush1.bf16.msra.mxu0 %v4243
        %6556 = vmatprep.mubr.bf16.mxu0 %v1277
        %6557 = vmatmul.mubr.bf16.gmra.mrb[0].mxu0 %v1275
        %v6558 = vpop.f32.mrb[0].mxu0
        %v6559 = vadd.f32 %v6518, %v6558
        %v6560 = vpop.f32.mrb[0].mxu0
        %v6561 = vadd.f32 %v6520, %v6560
        %v6562 = vpop.f32.mrb[0].mxu0
        %v6563 = vpop.f32.mrb[0].mxu0
        %6564 = vdwg.mxu0
        %6565 = vmatprep.subr.bf16.mxu0 %v4248
        %6566 = vmatpush1.bf16.msra.mxu0 %v4247
        %6567 = vmatprep.subr.bf16.mxu0 %v4252
        %6568 = vmatpush1.bf16.msra.mxu0 %v4251
        %6569 = vmatprep.subr.bf16.mxu0 %v4256
        %6570 = vmatpush1.bf16.msra.mxu0 %v4255
        %6571 = vmatprep.subr.bf16.mxu0 %v4260
        %6572 = vmatpush1.bf16.msra.mxu0 %v4259
        %6573 = vmatprep.subr.bf16.mxu0 %v4264
        %6574 = vmatpush1.bf16.msra.mxu0 %v4263
        %6575 = vmatprep.subr.bf16.mxu0 %v4268
        %6576 = vmatpush1.bf16.msra.mxu0 %v4267
        %6577 = vmatprep.subr.bf16.mxu0 %v4272
        %6578 = vmatpush1.bf16.msra.mxu0 %v4271
        %6579 = vmatprep.subr.bf16.mxu0 %v4276
        %6580 = vmatpush1.bf16.msra.mxu0 %v4275
        %6581 = vmatprep.subr.bf16.mxu0 %v4280
        %6582 = vmatpush1.bf16.msra.mxu0 %v4279
        %6583 = vmatprep.subr.bf16.mxu0 %v4284
        %6584 = vmatpush1.bf16.msra.mxu0 %v4283
        %6585 = vmatprep.subr.bf16.mxu0 %v4288
        %6586 = vmatpush1.bf16.msra.mxu0 %v4287
        %6587 = vmatprep.subr.bf16.mxu0 %v4292
        %6588 = vmatpush1.bf16.msra.mxu0 %v4291
        %6589 = vmatprep.subr.bf16.mxu0 %v4296
        %6590 = vmatpush1.bf16.msra.mxu0 %v4295
        %6591 = vmatprep.subr.bf16.mxu0 %v4300
        %6592 = vmatpush1.bf16.msra.mxu0 %v4299
        %6593 = vmatprep.subr.bf16.mxu0 %v4304
        %6594 = vmatpush1.bf16.msra.mxu0 %v4303
        %6595 = vmatprep.subr.bf16.mxu0 %v4308
        %6596 = vmatpush1.bf16.msra.mxu0 %v4307
        %6597 = vmatprep.mubr.bf16.mxu0 %v1274
        %6598 = vmatmul.mubr.bf16.gmra.mrb[0].mxu0 %v1260
        %v6599 = vpop.f32.mrb[0].mxu0
        %v6600 = vadd.f32 %v6559, %v6599
        %v6601 = vpop.f32.mrb[0].mxu0
        %v6602 = vadd.f32 %v6561, %v6601
        %v6603 = vpop.f32.mrb[0].mxu0
        %v6604 = vpop.f32.mrb[0].mxu0
        %6605 = vdwg.mxu0
        %6606 = vmatprep.subr.bf16.mxu0 %v4312
        %6607 = vmatpush1.bf16.msra.mxu0 %v4311
        %6608 = vmatprep.subr.bf16.mxu0 %v4316
        %6609 = vmatpush1.bf16.msra.mxu0 %v4315
        %6610 = vmatprep.subr.bf16.mxu0 %v4320
        %6611 = vmatpush1.bf16.msra.mxu0 %v4319
        %6612 = vmatprep.subr.bf16.mxu0 %v4324
        %6613 = vmatpush1.bf16.msra.mxu0 %v4323
        %6614 = vmatprep.subr.bf16.mxu0 %v4328
        %6615 = vmatpush1.bf16.msra.mxu0 %v4327
        %6616 = vmatprep.subr.bf16.mxu0 %v4332
        %6617 = vmatpush1.bf16.msra.mxu0 %v4331
        %6618 = vmatprep.subr.bf16.mxu0 %v4336
        %6619 = vmatpush1.bf16.msra.mxu0 %v4335
        %6620 = vmatprep.subr.bf16.mxu0 %v4340
        %6621 = vmatpush1.bf16.msra.mxu0 %v4339
        %6622 = vmatprep.subr.bf16.mxu0 %v4344
        %6623 = vmatpush1.bf16.msra.mxu0 %v4343
        %6624 = vmatprep.subr.bf16.mxu0 %v4348
        %6625 = vmatpush1.bf16.msra.mxu0 %v4347
        %6626 = vmatprep.subr.bf16.mxu0 %v4352
        %6627 = vmatpush1.bf16.msra.mxu0 %v4351
        %6628 = vmatprep.subr.bf16.mxu0 %v4356
        %6629 = vmatpush1.bf16.msra.mxu0 %v4355
        %6630 = vmatprep.subr.bf16.mxu0 %v4360
        %6631 = vmatpush1.bf16.msra.mxu0 %v4359
        %6632 = vmatprep.subr.bf16.mxu0 %v4364
        %6633 = vmatpush1.bf16.msra.mxu0 %v4363
        %6634 = vmatprep.subr.bf16.mxu0 %v4368
        %6635 = vmatpush1.bf16.msra.mxu0 %v4367
        %6636 = vmatprep.subr.bf16.mxu0 %v4372
        %6637 = vmatpush1.bf16.msra.mxu0 %v4371
        %6638 = vmatprep.mubr.bf16.mxu0 %v1278
        %6639 = vmatmul.mubr.bf16.gmra.mrb[0].mxu0 %v1276
        %v6640 = vpop.f32.mrb[0].mxu0
        %v6641 = vadd.f32 %v6600, %v6640
        %v6642 = vpop.f32.mrb[0].mxu0
        %v6643 = vadd.f32 %v6602, %v6642
        %v6644 = vpop.f32.mrb[0].mxu0
        %v6645 = vpop.f32.mrb[0].mxu0
        %6646 = vdwg.mxu0
        %6647 = vmatprep.subr.bf16.mxu0 %v4376
        %6648 = vmatpush1.bf16.msra.mxu0 %v4375
        %6649 = vmatprep.subr.bf16.mxu0 %v4380
        %6650 = vmatpush1.bf16.msra.mxu0 %v4379
        %6651 = vmatprep.subr.bf16.mxu0 %v4384
        %6652 = vmatpush1.bf16.msra.mxu0 %v4383
        %6653 = vmatprep.subr.bf16.mxu0 %v4388
        %6654 = vmatpush1.bf16.msra.mxu0 %v4387
        %6655 = vmatprep.subr.bf16.mxu0 %v4392
        %6656 = vmatpush1.bf16.msra.mxu0 %v4391
        %6657 = vmatprep.subr.bf16.mxu0 %v4396
        %6658 = vmatpush1.bf16.msra.mxu0 %v4395
        %6659 = vmatprep.subr.bf16.mxu0 %v4400
        %6660 = vmatpush1.bf16.msra.mxu0 %v4399
        %6661 = vmatprep.subr.bf16.mxu0 %v4404
        %6662 = vmatpush1.bf16.msra.mxu0 %v4403
        %6663 = vmatprep.subr.bf16.mxu0 %v4408
        %6664 = vmatpush1.bf16.msra.mxu0 %v4407
        %6665 = vmatprep.subr.bf16.mxu0 %v4412
        %6666 = vmatpush1.bf16.msra.mxu0 %v4411
        %6667 = vmatprep.subr.bf16.mxu0 %v4416
        %6668 = vmatpush1.bf16.msra.mxu0 %v4415
        %6669 = vmatprep.subr.bf16.mxu0 %v4420
        %6670 = vmatpush1.bf16.msra.mxu0 %v4419
        %6671 = vmatprep.subr.bf16.mxu0 %v4424
        %6672 = vmatpush1.bf16.msra.mxu0 %v4423
        %6673 = vmatprep.subr.bf16.mxu0 %v4428
        %6674 = vmatpush1.bf16.msra.mxu0 %v4427
        %6675 = vmatprep.subr.bf16.mxu0 %v4432
        %6676 = vmatpush1.bf16.msra.mxu0 %v4431
        %6677 = vmatprep.subr.bf16.mxu0 %v4436
        %6678 = vmatpush1.bf16.msra.mxu0 %v4435
        %6679 = vmatprep.mubr.bf16.mxu0 %v1316
        %6680 = vmatmul.mubr.bf16.gmra.mrb[0].mxu0 %v1302
        %v6681 = vpop.f32.mrb[0].mxu0
        %v6682 = vadd.f32 %v6641, %v6681
        %v6683 = vpop.f32.mrb[0].mxu0
        %v6684 = vadd.f32 %v6643, %v6683
        %v6685 = vpop.f32.mrb[0].mxu0
        %v6686 = vpop.f32.mrb[0].mxu0
        %6687 = vdwg.mxu0
        %6688 = vmatprep.subr.bf16.mxu0 %v4440
        %6689 = vmatpush1.bf16.msra.mxu0 %v4439
        %6690 = vmatprep.subr.bf16.mxu0 %v4444
        %6691 = vmatpush1.bf16.msra.mxu0 %v4443
        %6692 = vmatprep.subr.bf16.mxu0 %v4448
        %6693 = vmatpush1.bf16.msra.mxu0 %v4447
        %6694 = vmatprep.subr.bf16.mxu0 %v4452
        %6695 = vmatpush1.bf16.msra.mxu0 %v4451
        %6696 = vmatprep.subr.bf16.mxu0 %v4456
        %6697 = vmatpush1.bf16.msra.mxu0 %v4455
        %6698 = vmatprep.subr.bf16.mxu0 %v4460
        %6699 = vmatpush1.bf16.msra.mxu0 %v4459
        %6700 = vmatprep.subr.bf16.mxu0 %v4464
        %6701 = vmatpush1.bf16.msra.mxu0 %v4463
        %6702 = vmatprep.subr.bf16.mxu0 %v4468
        %6703 = vmatpush1.bf16.msra.mxu0 %v4467
        %6704 = vmatprep.subr.bf16.mxu0 %v4472
        %6705 = vmatpush1.bf16.msra.mxu0 %v4471
        %6706 = vmatprep.subr.bf16.mxu0 %v4476
        %6707 = vmatpush1.bf16.msra.mxu0 %v4475
        %6708 = vmatprep.subr.bf16.mxu0 %v4480
        %6709 = vmatpush1.bf16.msra.mxu0 %v4479
        %6710 = vmatprep.subr.bf16.mxu0 %v4484
        %6711 = vmatpush1.bf16.msra.mxu0 %v4483
        %6712 = vmatprep.subr.bf16.mxu0 %v4488
        %6713 = vmatpush1.bf16.msra.mxu0 %v4487
        %6714 = vmatprep.subr.bf16.mxu0 %v4492
        %6715 = vmatpush1.bf16.msra.mxu0 %v4491
        %6716 = vmatprep.subr.bf16.mxu0 %v4496
        %6717 = vmatpush1.bf16.msra.mxu0 %v4495
        %6718 = vmatprep.subr.bf16.mxu0 %v4500
        %6719 = vmatpush1.bf16.msra.mxu0 %v4499
        %6720 = vmatprep.mubr.bf16.mxu0 %v1326
        %6721 = vmatmul.mubr.bf16.gmra.mrb[0].mxu0 %v1324
        %v6722 = vpop.f32.mrb[0].mxu0
        %v6723 = vadd.f32 %v6682, %v6722
        %v6724 = vpop.f32.mrb[0].mxu0
        %v6725 = vadd.f32 %v6684, %v6724
        %v6726 = vpop.f32.mrb[0].mxu0
        %v6727 = vpop.f32.mrb[0].mxu0
        %6728 = vdwg.mxu0
        %6729 = vmatprep.subr.bf16.mxu0 %v4504
        %6730 = vmatpush1.bf16.msra.mxu0 %v4503
        %6731 = vmatprep.subr.bf16.mxu0 %v4508
        %6732 = vmatpush1.bf16.msra.mxu0 %v4507
        %6733 = vmatprep.subr.bf16.mxu0 %v4512
        %6734 = vmatpush1.bf16.msra.mxu0 %v4511
        %6735 = vmatprep.subr.bf16.mxu0 %v4516
        %6736 = vmatpush1.bf16.msra.mxu0 %v4515
        %6737 = vmatprep.subr.bf16.mxu0 %v4520
        %6738 = vmatpush1.bf16.msra.mxu0 %v4519
        %6739 = vmatprep.subr.bf16.mxu0 %v4524
        %6740 = vmatpush1.bf16.msra.mxu0 %v4523
        %6741 = vmatprep.subr.bf16.mxu0 %v4528
        %6742 = vmatpush1.bf16.msra.mxu0 %v4527
        %6743 = vmatprep.subr.bf16.mxu0 %v4532
        %6744 = vmatpush1.bf16.msra.mxu0 %v4531
        %6745 = vmatprep.subr.bf16.mxu0 %v4536
        %6746 = vmatpush1.bf16.msra.mxu0 %v4535
        %6747 = vmatprep.subr.bf16.mxu0 %v4540
        %6748 = vmatpush1.bf16.msra.mxu0 %v4539
        %6749 = vmatprep.subr.bf16.mxu0 %v4544
        %6750 = vmatpush1.bf16.msra.mxu0 %v4543
        %6751 = vmatprep.subr.bf16.mxu0 %v4548
        %6752 = vmatpush1.bf16.msra.mxu0 %v4547
        %6753 = vmatprep.subr.bf16.mxu0 %v4552
        %6754 = vmatpush1.bf16.msra.mxu0 %v4551
        %6755 = vmatprep.subr.bf16.mxu0 %v4556
        %6756 = vmatpush1.bf16.msra.mxu0 %v4555
        %6757 = vmatprep.subr.bf16.mxu0 %v4560
        %6758 = vmatpush1.bf16.msra.mxu0 %v4559
        %6759 = vmatprep.subr.bf16.mxu0 %v4564
        %6760 = vmatpush1.bf16.msra.mxu0 %v4563
        %6761 = vmatprep.mubr.bf16.mxu0 %v1323
        %6762 = vmatmul.mubr.bf16.gmra.mrb[0].mxu0 %v1309
        %v6763 = vpop.f32.mrb[0].mxu0
        %v6764 = vadd.f32 %v6723, %v6763
        %v6765 = vpop.f32.mrb[0].mxu0
        %v6766 = vadd.f32 %v6725, %v6765
        %v6767 = vpop.f32.mrb[0].mxu0
        %v6768 = vpop.f32.mrb[0].mxu0
        %6769 = vdwg.mxu0
        %6770 = vmatprep.subr.bf16.mxu0 %v4568
        %6771 = vmatpush1.bf16.msra.mxu0 %v4567
        %6772 = vmatprep.subr.bf16.mxu0 %v4572
        %6773 = vmatpush1.bf16.msra.mxu0 %v4571
        %6774 = vmatprep.subr.bf16.mxu0 %v4576
        %6775 = vmatpush1.bf16.msra.mxu0 %v4575
        %6776 = vmatprep.subr.bf16.mxu0 %v4580
        %6777 = vmatpush1.bf16.msra.mxu0 %v4579
        %6778 = vmatprep.subr.bf16.mxu0 %v4584
        %6779 = vmatpush1.bf16.msra.mxu0 %v4583
        %6780 = vmatprep.subr.bf16.mxu0 %v4588
        %6781 = vmatpush1.bf16.msra.mxu0 %v4587
        %6782 = vmatprep.subr.bf16.mxu0 %v4592
        %6783 = vmatpush1.bf16.msra.mxu0 %v4591
        %6784 = vmatprep.subr.bf16.mxu0 %v4596
        %6785 = vmatpush1.bf16.msra.mxu0 %v4595
        %6786 = vmatprep.subr.bf16.mxu0 %v4600
        %6787 = vmatpush1.bf16.msra.mxu0 %v4599
        %6788 = vmatprep.subr.bf16.mxu0 %v4604
        %6789 = vmatpush1.bf16.msra.mxu0 %v4603
        %6790 = vmatprep.subr.bf16.mxu0 %v4608
        %6791 = vmatpush1.bf16.msra.mxu0 %v4607
        %6792 = vmatprep.subr.bf16.mxu0 %v4612
        %6793 = vmatpush1.bf16.msra.mxu0 %v4611
        %6794 = vmatprep.subr.bf16.mxu0 %v4616
        %6795 = vmatpush1.bf16.msra.mxu0 %v4615
        %6796 = vmatprep.subr.bf16.mxu0 %v4620
        %6797 = vmatpush1.bf16.msra.mxu0 %v4619
        %6798 = vmatprep.subr.bf16.mxu0 %v4624
        %6799 = vmatpush1.bf16.msra.mxu0 %v4623
        %6800 = vmatprep.subr.bf16.mxu0 %v4628
        %6801 = vmatpush1.bf16.msra.mxu0 %v4627
        %6802 = vmatprep.mubr.bf16.mxu0 %v1327
        %6803 = vmatmul.mubr.bf16.gmra.mrb[0].mxu0 %v1325
        %v6804 = vpop.f32.mrb[0].mxu0
        %v6805 = vadd.f32 %v6764, %v6804
        %v6806 = vpop.f32.mrb[0].mxu0
        %v6807 = vadd.f32 %v6766, %v6806
        %v6808 = vpop.f32.mrb[0].mxu0
        %v6809 = vpop.f32.mrb[0].mxu0
        %6810 = vdwg.mxu0
        %6811 = vmatprep.subr.bf16.mxu0 %v4632
        %6812 = vmatpush1.bf16.msra.mxu0 %v4631
        %6813 = vmatprep.subr.bf16.mxu0 %v4636
        %6814 = vmatpush1.bf16.msra.mxu0 %v4635
        %6815 = vmatprep.subr.bf16.mxu0 %v4640
        %6816 = vmatpush1.bf16.msra.mxu0 %v4639
        %6817 = vmatprep.subr.bf16.mxu0 %v4644
        %6818 = vmatpush1.bf16.msra.mxu0 %v4643
        %6819 = vmatprep.subr.bf16.mxu0 %v4648
        %6820 = vmatpush1.bf16.msra.mxu0 %v4647
        %6821 = vmatprep.subr.bf16.mxu0 %v4652
        %6822 = vmatpush1.bf16.msra.mxu0 %v4651
        %6823 = vmatprep.subr.bf16.mxu0 %v4656
        %6824 = vmatpush1.bf16.msra.mxu0 %v4655
        %6825 = vmatprep.subr.bf16.mxu0 %v4660
        %6826 = vmatpush1.bf16.msra.mxu0 %v4659
        %6827 = vmatprep.subr.bf16.mxu0 %v4664
        %6828 = vmatpush1.bf16.msra.mxu0 %v4663
        %6829 = vmatprep.subr.bf16.mxu0 %v4668
        %6830 = vmatpush1.bf16.msra.mxu0 %v4667
        %6831 = vmatprep.subr.bf16.mxu0 %v4672
        %6832 = vmatpush1.bf16.msra.mxu0 %v4671
        %6833 = vmatprep.subr.bf16.mxu0 %v4676
        %6834 = vmatpush1.bf16.msra.mxu0 %v4675
        %6835 = vmatprep.subr.bf16.mxu0 %v4680
        %6836 = vmatpush1.bf16.msra.mxu0 %v4679
        %6837 = vmatprep.subr.bf16.mxu0 %v4684
        %6838 = vmatpush1.bf16.msra.mxu0 %v4683
        %6839 = vmatprep.subr.bf16.mxu0 %v4688
        %6840 = vmatpush1.bf16.msra.mxu0 %v4687
        %6841 = vmatprep.subr.bf16.mxu0 %v4692
        %6842 = vmatpush1.bf16.msra.mxu0 %v4691
        %6843 = vmatprep.mubr.bf16.mxu0 %v1365
        %6844 = vmatmul.mubr.bf16.gmra.mrb[0].mxu0 %v1351
        %v6845 = vpop.f32.mrb[0].mxu0
        %v6846 = vadd.f32 %v6805, %v6845
        %v6847 = vpop.f32.mrb[0].mxu0
        %v6848 = vadd.f32 %v6807, %v6847
        %v6849 = vpop.f32.mrb[0].mxu0
        %v6850 = vpop.f32.mrb[0].mxu0
        %6851 = vdwg.mxu0
        %6852 = vmatprep.subr.bf16.mxu0 %v4696
        %6853 = vmatpush1.bf16.msra.mxu0 %v4695
        %6854 = vmatprep.subr.bf16.mxu0 %v4700
        %6855 = vmatpush1.bf16.msra.mxu0 %v4699
        %6856 = vmatprep.subr.bf16.mxu0 %v4704
        %6857 = vmatpush1.bf16.msra.mxu0 %v4703
        %6858 = vmatprep.subr.bf16.mxu0 %v4708
        %6859 = vmatpush1.bf16.msra.mxu0 %v4707
        %6860 = vmatprep.subr.bf16.mxu0 %v4712
        %6861 = vmatpush1.bf16.msra.mxu0 %v4711
        %6862 = vmatprep.subr.bf16.mxu0 %v4716
        %6863 = vmatpush1.bf16.msra.mxu0 %v4715
        %6864 = vmatprep.subr.bf16.mxu0 %v4720
        %6865 = vmatpush1.bf16.msra.mxu0 %v4719
        %6866 = vmatprep.subr.bf16.mxu0 %v4724
        %6867 = vmatpush1.bf16.msra.mxu0 %v4723
        %6868 = vmatprep.subr.bf16.mxu0 %v4728
        %6869 = vmatpush1.bf16.msra.mxu0 %v4727
        %6870 = vmatprep.subr.bf16.mxu0 %v4732
        %6871 = vmatpush1.bf16.msra.mxu0 %v4731
        %6872 = vmatprep.subr.bf16.mxu0 %v4736
        %6873 = vmatpush1.bf16.msra.mxu0 %v4735
        %6874 = vmatprep.subr.bf16.mxu0 %v4740
        %6875 = vmatpush1.bf16.msra.mxu0 %v4739
        %6876 = vmatprep.subr.bf16.mxu0 %v4744
        %6877 = vmatpush1.bf16.msra.mxu0 %v4743
        %6878 = vmatprep.subr.bf16.mxu0 %v4748
        %6879 = vmatpush1.bf16.msra.mxu0 %v4747
        %6880 = vmatprep.subr.bf16.mxu0 %v4752
        %6881 = vmatpush1.bf16.msra.mxu0 %v4751
        %6882 = vmatprep.subr.bf16.mxu0 %v4756
        %6883 = vmatpush1.bf16.msra.mxu0 %v4755
        %6884 = vmatprep.mubr.bf16.mxu0 %v1375
        %6885 = vmatmul.mubr.bf16.gmra.mrb[0].mxu0 %v1373
        %v6886 = vpop.f32.mrb[0].mxu0
        %v6887 = vadd.f32 %v6846, %v6886
        %v6888 = vpop.f32.mrb[0].mxu0
        %v6889 = vadd.f32 %v6848, %v6888
        %v6890 = vpop.f32.mrb[0].mxu0
        %v6891 = vpop.f32.mrb[0].mxu0
        %6892 = vdwg.mxu0
        %6893 = vmatprep.subr.bf16.mxu0 %v4760
        %6894 = vmatpush1.bf16.msra.mxu0 %v4759
        %6895 = vmatprep.subr.bf16.mxu0 %v4764
        %6896 = vmatpush1.bf16.msra.mxu0 %v4763
        %6897 = vmatprep.subr.bf16.mxu0 %v4768
        %6898 = vmatpush1.bf16.msra.mxu0 %v4767
        %6899 = vmatprep.subr.bf16.mxu0 %v4772
        %6900 = vmatpush1.bf16.msra.mxu0 %v4771
        %6901 = vmatprep.subr.bf16.mxu0 %v4776
        %6902 = vmatpush1.bf16.msra.mxu0 %v4775
        %6903 = vmatprep.subr.bf16.mxu0 %v4780
        %6904 = vmatpush1.bf16.msra.mxu0 %v4779
        %6905 = vmatprep.subr.bf16.mxu0 %v4784
        %6906 = vmatpush1.bf16.msra.mxu0 %v4783
        %6907 = vmatprep.subr.bf16.mxu0 %v4788
        %6908 = vmatpush1.bf16.msra.mxu0 %v4787
        %6909 = vmatprep.subr.bf16.mxu0 %v4792
        %6910 = vmatpush1.bf16.msra.mxu0 %v4791
        %6911 = vmatprep.subr.bf16.mxu0 %v4796
        %6912 = vmatpush1.bf16.msra.mxu0 %v4795
        %6913 = vmatprep.subr.bf16.mxu0 %v4800
        %6914 = vmatpush1.bf16.msra.mxu0 %v4799
        %6915 = vmatprep.subr.bf16.mxu0 %v4804
        %6916 = vmatpush1.bf16.msra.mxu0 %v4803
        %6917 = vmatprep.subr.bf16.mxu0 %v4808
        %6918 = vmatpush1.bf16.msra.mxu0 %v4807
        %6919 = vmatprep.subr.bf16.mxu0 %v4812
        %6920 = vmatpush1.bf16.msra.mxu0 %v4811
        %6921 = vmatprep.subr.bf16.mxu0 %v4816
        %6922 = vmatpush1.bf16.msra.mxu0 %v4815
        %6923 = vmatprep.subr.bf16.mxu0 %v4820
        %6924 = vmatpush1.bf16.msra.mxu0 %v4819
        %6925 = vmatprep.mubr.bf16.mxu0 %v1372
        %6926 = vmatmul.mubr.bf16.gmra.mrb[0].mxu0 %v1358
        %v6927 = vpop.f32.mrb[0].mxu0
        %v6928 = vadd.f32 %v6887, %v6927
        %v6929 = vpop.f32.mrb[0].mxu0
        %v6930 = vadd.f32 %v6889, %v6929
        %v6931 = vpop.f32.mrb[0].mxu0
        %v6932 = vpop.f32.mrb[0].mxu0
        %6933 = vdwg.mxu0
        %6934 = vmatprep.subr.bf16.mxu0 %v4824
        %6935 = vmatpush1.bf16.msra.mxu0 %v4823
        %6936 = vmatprep.subr.bf16.mxu0 %v4828
        %6937 = vmatpush1.bf16.msra.mxu0 %v4827
        %6938 = vmatprep.subr.bf16.mxu0 %v4832
        %6939 = vmatpush1.bf16.msra.mxu0 %v4831
        %6940 = vmatprep.subr.bf16.mxu0 %v4836
        %6941 = vmatpush1.bf16.msra.mxu0 %v4835
        %6942 = vmatprep.subr.bf16.mxu0 %v4840
        %6943 = vmatpush1.bf16.msra.mxu0 %v4839
        %6944 = vmatprep.subr.bf16.mxu0 %v4844
        %6945 = vmatpush1.bf16.msra.mxu0 %v4843
        %6946 = vmatprep.subr.bf16.mxu0 %v4848
        %6947 = vmatpush1.bf16.msra.mxu0 %v4847
        %6948 = vmatprep.subr.bf16.mxu0 %v4852
        %6949 = vmatpush1.bf16.msra.mxu0 %v4851
        %6950 = vmatprep.subr.bf16.mxu0 %v4856
        %6951 = vmatpush1.bf16.msra.mxu0 %v4855
        %6952 = vmatprep.subr.bf16.mxu0 %v4860
        %6953 = vmatpush1.bf16.msra.mxu0 %v4859
        %6954 = vmatprep.subr.bf16.mxu0 %v4864
        %6955 = vmatpush1.bf16.msra.mxu0 %v4863
        %6956 = vmatprep.subr.bf16.mxu0 %v4868
        %6957 = vmatpush1.bf16.msra.mxu0 %v4867
        %6958 = vmatprep.subr.bf16.mxu0 %v4872
        %6959 = vmatpush1.bf16.msra.mxu0 %v4871
        %6960 = vmatprep.subr.bf16.mxu0 %v4876
        %6961 = vmatpush1.bf16.msra.mxu0 %v4875
        %6962 = vmatprep.subr.bf16.mxu0 %v4880
        %6963 = vmatpush1.bf16.msra.mxu0 %v4879
        %6964 = vmatprep.subr.bf16.mxu0 %v4884
        %6965 = vmatpush1.bf16.msra.mxu0 %v4883
        %6966 = vmatprep.mubr.bf16.mxu0 %v1376
        %6967 = vmatmul.mubr.bf16.gmra.mrb[0].mxu0 %v1374
        %v6968 = vpop.f32.mrb[0].mxu0
        %v6969 = vadd.f32 %v6928, %v6968
        %v6970 = vpop.f32.mrb[0].mxu0
        %v6971 = vadd.f32 %v6930, %v6970
        %v6972 = vpop.f32.mrb[0].mxu0
        %v6973 = vpop.f32.mrb[0].mxu0
        %6974 = vdwg.mxu0
        %6975 = vmatprep.subr.bf16.mxu0 %v4888
        %6976 = vmatpush1.bf16.msra.mxu0 %v4887
        %6977 = vmatprep.subr.bf16.mxu0 %v4892
        %6978 = vmatpush1.bf16.msra.mxu0 %v4891
        %6979 = vmatprep.subr.bf16.mxu0 %v4896
        %6980 = vmatpush1.bf16.msra.mxu0 %v4895
        %6981 = vmatprep.subr.bf16.mxu0 %v4900
        %6982 = vmatpush1.bf16.msra.mxu0 %v4899
        %6983 = vmatprep.subr.bf16.mxu0 %v4904
        %6984 = vmatpush1.bf16.msra.mxu0 %v4903
        %6985 = vmatprep.subr.bf16.mxu0 %v4908
        %6986 = vmatpush1.bf16.msra.mxu0 %v4907
        %6987 = vmatprep.subr.bf16.mxu0 %v4912
        %6988 = vmatpush1.bf16.msra.mxu0 %v4911
        %6989 = vmatprep.subr.bf16.mxu0 %v4916
        %6990 = vmatpush1.bf16.msra.mxu0 %v4915
        %6991 = vmatprep.subr.bf16.mxu0 %v4920
        %6992 = vmatpush1.bf16.msra.mxu0 %v4919
        %6993 = vmatprep.subr.bf16.mxu0 %v4924
        %6994 = vmatpush1.bf16.msra.mxu0 %v4923
        %6995 = vmatprep.subr.bf16.mxu0 %v4928
        %6996 = vmatpush1.bf16.msra.mxu0 %v4927
        %6997 = vmatprep.subr.bf16.mxu0 %v4932
        %6998 = vmatpush1.bf16.msra.mxu0 %v4931
        %6999 = vmatprep.subr.bf16.mxu0 %v4936
        %7000 = vmatpush1.bf16.msra.mxu0 %v4935
        %7001 = vmatprep.subr.bf16.mxu0 %v4940
        %7002 = vmatpush1.bf16.msra.mxu0 %v4939
        %7003 = vmatprep.subr.bf16.mxu0 %v4944
        %7004 = vmatpush1.bf16.msra.mxu0 %v4943
        %7005 = vmatprep.subr.bf16.mxu0 %v4948
        %7006 = vmatpush1.bf16.msra.mxu0 %v4947
        %7007 = vmatprep.mubr.bf16.mxu0 %v1398
        %7008 = vmatmul.mubr.bf16.gmra.mrb[0].mxu0 %v1391
        %v7009 = vpop.f32.mrb[0].mxu0
        %v7010 = vadd.f32 %v6969, %v7009
        %v7011 = vpop.f32.mrb[0].mxu0
        %v7012 = vadd.f32 %v6971, %v7011
        %v7013 = vpop.f32.mrb[0].mxu0
        %v7014 = vpop.f32.mrb[0].mxu0
        %7015 = vdwg.mxu0
        %7016 = vmatprep.subr.bf16.mxu0 %v4952
        %7017 = vmatpush1.bf16.msra.mxu0 %v4951
        %7018 = vmatprep.subr.bf16.mxu0 %v4956
        %7019 = vmatpush1.bf16.msra.mxu0 %v4955
        %7020 = vmatprep.subr.bf16.mxu0 %v4960
        %7021 = vmatpush1.bf16.msra.mxu0 %v4959
        %7022 = vmatprep.subr.bf16.mxu0 %v4964
        %7023 = vmatpush1.bf16.msra.mxu0 %v4963
        %7024 = vmatprep.subr.bf16.mxu0 %v4968
        %7025 = vmatpush1.bf16.msra.mxu0 %v4967
        %7026 = vmatprep.subr.bf16.mxu0 %v4972
        %7027 = vmatpush1.bf16.msra.mxu0 %v4971
        %7028 = vmatprep.subr.bf16.mxu0 %v4976
        %7029 = vmatpush1.bf16.msra.mxu0 %v4975
        %7030 = vmatprep.subr.bf16.mxu0 %v4980
        %7031 = vmatpush1.bf16.msra.mxu0 %v4979
        %7032 = vmatprep.subr.bf16.mxu0 %v4984
        %7033 = vmatpush1.bf16.msra.mxu0 %v4983
        %7034 = vmatprep.subr.bf16.mxu0 %v4988
        %7035 = vmatpush1.bf16.msra.mxu0 %v4987
        %7036 = vmatprep.subr.bf16.mxu0 %v4992
        %7037 = vmatpush1.bf16.msra.mxu0 %v4991
        %7038 = vmatprep.subr.bf16.mxu0 %v4996
        %7039 = vmatpush1.bf16.msra.mxu0 %v4995
        %7040 = vmatprep.subr.bf16.mxu0 %v5000
        %7041 = vmatpush1.bf16.msra.mxu0 %v4999
        %7042 = vmatprep.subr.bf16.mxu0 %v5004
        %7043 = vmatpush1.bf16.msra.mxu0 %v5003
        %7044 = vmatprep.subr.bf16.mxu0 %v5008
        %7045 = vmatpush1.bf16.msra.mxu0 %v5007
        %7046 = vmatprep.subr.bf16.mxu0 %v5012
        %7047 = vmatpush1.bf16.msra.mxu0 %v5011
        %7048 = vmatprep.mubr.bf16.mxu0 %v1400
        %7049 = vmatmul.mubr.bf16.gmra.mrb[0].mxu0 %v1399
        %v7050 = vpop.f32.mrb[0].mxu0
        %v7051 = vadd.f32 %v7010, %v7050
        %v7052 = vpop.f32.mrb[0].mxu0
        %v7053 = vadd.f32 %v7012, %v7052
        %v7054 = vpop.f32.mrb[0].mxu0
        %v7055 = vpop.f32.mrb[0].mxu0
        %7056 = vdwg.mxu0
        %v7061 = vcombine.low %v6477, %v6479
        %v7062 = vcombine.low %v7051, %v7053
        %v7064 = vunpack.c.l.s4 1983009808
        %v7065 = vunpack.c.0.s8 %v7064
        %v7066 = vlaneseq
        %v7067 = vshrl.u32 %v7066, 7
        %v7068 = vsub.s32 %v7065, %v7067
        %v7069 = vrot.slane %v7061, %v7068
        %v7071 = vunpack.c.l.s4 1983009808
        %v7072 = vunpack.c.0.s8 %v7071
        %v7073 = vlaneseq
        %v7074 = vshrl.u32 %v7073, 7
        %v7075 = vsub.s32 %v7072, %v7074
        %v7076 = vrot.slane %v7062, %v7075
        %v7077 = vcombine.low %v7069, %v7076
        %v7079 = vadd.f32 %v325, %v7077
        %7080 = vst [vmem:[%s278] sm:$0xff] %v7079
        %p7081 = scmp.eq.s32.totalorder %s28, 6
        // Predicated region
        $region49: #{tpu_custom_call.1} parent=31 // pred_check
          %p7082 = pneg %p7081
        $region50: #{tpu_custom_call.1} parent=31 // pred_check_branch
          %7084 = sbr.rel (%p7082) target = $region52
        $region51: #{tpu_custom_call.1} parent=31 // pred_region
          %v7085 = vld [vmem:[%s278] sm:$0xff]
          %v7086 = vmax.f32 %v7085, 0.0
          %7087 = vst [vmem:[%s278] sm:$0xff] %v7086
        $region52: #{tpu_custom_call.1} parent=31 // pred_fallthru
          _
        %s7088 = sand.u32 %s123, 1
        %s7089 = scalar_lea.sflag [#allocation4], %s7088
        %s7090 = sand.u32 %s123, 1
        %s7091 = smul.addr %s7090, 8
        %s7092 = scalar_lea.vmem [#allocation8], %s7091
        // Predicated region
        $region53: #{tpu_custom_call.1} parent=31 // pred_check
          %p7093 = pneg %p133
        $region54: #{tpu_custom_call.1} parent=31 // pred_check_branch
          %7095 = sbr.rel (%p7093) target = $region56
        $region55: #{tpu_custom_call.1} parent=31 // pred_region
          %s7096 = smul.u32 4, %s27
          %s7098 = ssub.s32 128, 128
          %7099 = vsyncadd %s7089, %s7098
          %s7100 = smul.addr %s7096, 32
          %s7101 = scalar_lea.hbm %s3, %s7100
          %s7103 = sshll.u32 %s7092, 4
          %s7104 = int_to_ptr.vmem [resolvable:$true] %s7103
          %7106 = dma.vmem_to_hbm [thread:$0]  %s7104, 128, %s7101, %s7089
        $region56: #{tpu_custom_call.1} parent=31 // pred_fallthru
          _
      $region32: #{tpu_custom_call.1} parent=5 // pred_fallthru
        _
      %p7107 = scmp.le.s32.totalorder 2, %s18
      // Predicated region
      $region57: #{tpu_custom_call.1} parent=5 // pred_check
        %p7108 = pneg %p7107
      $region58: #{tpu_custom_call.1} parent=5 // pred_check_branch
        %7110 = sbr.rel (%p7108) target = $region60
      $region59: #{tpu_custom_call.1} parent=5 // pred_region
        %s7111 = ssub.s32 %s18, 2
        // Predicated region
        $region61: #{tpu_custom_call.1} parent=59 // pred_check
          %p7112 = pneg %p139
        $region62: #{tpu_custom_call.1} parent=59 // pred_check_branch
          %7114 = sbr.rel (%p7112) target = $region64
        $region63: #{tpu_custom_call.1} parent=59 // pred_region
          %s7115 = sand.u32 %s124, 1
          %s7116 = scalar_lea.sflag [#allocation4], %s7115
          %s7117 = sand.u32 %s124, 1
          %s7118 = smul.addr %s7117, 8
          %s7119 = scalar_lea.vmem [#allocation8], %s7118
          %7120 = dma.done %s7116, 128
        $region64: #{tpu_custom_call.1} parent=59 // pred_fallthru
          _
      $region60: #{tpu_custom_call.1} parent=5 // pred_fallthru
        _
    $region6: #{tpu_custom_call.1} parent=1 // loop_footer
      %s22 = sadd.s32 1, %s18
    $region7: #{tpu_custom_call.1} parent=1 // loop_footer_branch
      %17 = sbr.rel target = $region3
    $region8: #{tpu_custom_call.1} parent=1 // loop_exit
      _
    %7121 = vsyncpa [#allocation3], 1
    %s7122 = scalar_lea.sflag [#allocation3], 1
    %7123 = vsyncpa %s7122, 1
    %7124 = vsyncpa [#allocation6], 1
    %s7125 = scalar_lea.sflag [#allocation6], 1
    %7126 = vsyncpa %s7125, 1
    %7127 = vsyncpa [#allocation4], 1
    %s7128 = scalar_lea.sflag [#allocation4], 1
    %7129 = vsyncpa %s7128, 1

</llo_original>
